<compile_context>
chip_gen: v7x
topology: tpu7x:2x2x1
jax: 0.10.0
libtpu: 0.0.40
codegen_flags: <defaults>
</compile_context>

<pallas_src>
import functools

import jax
import jax.numpy as jnp
from jax.experimental import pallas as pl
from jax.experimental.pallas import tpu as pltpu

NUM_CLASSES = 10
L1 = 48                    # conv output channels
GRID_HW = 8                # 32 / 4 patches per side
PATCH_ROW = 128            # 4 (kh) * 32 (w) input values per (channel, patch-row)
CHAN_STRIDE = 32 * 32      # 1024 flat pixels per channel
KCAT = 3 * PATCH_ROW       # 384: channel-fused contraction depth of the conv matmul
HID = GRID_HW * L1         # 384 = per-patch-row hidden width, cols = (pw, o)
IN_FLAT = 3 * 32 * 32      # 3072 flat input pixels per sample
NPAD = 128                 # lane-padded class count


def lda_kernel(x_ref, wc_ref, cb_ref, lw_ref, lb_ref, out_ref):
    """x_ref: (bt, 3072) flat NCHW pixels.  Every per-sample value stays on one
    sublane row, so all slices are lane-tile aligned and no relayout occurs."""
    wc = wc_ref[...]                                  # (384, 384) conv weights (resident)
    cb = cb_ref[...]                                  # (1, 384)  conv bias per (pw, o)

    acc = None
    for ph in range(GRID_HW):                         # unrolled: 8 patch-rows
        # Lane l = kh*32 + w of image rows 4*ph + kh, for each channel c.
        lhs = jnp.concatenate(
            [x_ref[:, c * CHAN_STRIDE + ph * PATCH_ROW:
                      c * CHAN_STRIDE + (ph + 1) * PATCH_ROW] for c in range(3)],
            axis=1)                                   # (bt, 384), K fused over channels
        h = jnp.dot(lhs, wc, preferred_element_type=jnp.float32) + cb   # (bt, 384)
        # Swish; exp runs on the EUP.  (v5e option: pl.reciprocal(1+e, approx=True))
        h = h * (1.0 / (1.0 + jnp.exp(-h)))
        p = jnp.dot(h, lw_ref[ph], preferred_element_type=jnp.float32)  # (bt, 128)
        acc = p if acc is None else acc + p
    out_ref[...] = acc + lb_ref[...]


def prepare_params(conv_w, conv_b, lin_w, lin_b):
    """One-time weight re-layout (hoisted out of the per-call path)."""
    num_classes = lin_w.shape[0]

    # Conv weight (O,3,4,4) -> permutation-embedded, channel-fused (384, 384):
    #   Wcat[c*128 + kh*32 + pw*4 + kw, q*48 + o] = conv_w[o,c,kh,kw] * (pw == q)
    cw_t = conv_w.transpose(1, 2, 3, 0)                       # (c, kh, kw, o)
    eye8 = jnp.eye(GRID_HW, dtype=conv_w.dtype)                # pw selector
    wcat = jnp.einsum("chko,pq->chpkqo", cw_t, eye8).reshape(KCAT, HID)
    cb = jnp.tile(conv_b, GRID_HW).reshape(1, HID)             # bias per (pw, o)

    # Linear weight (C, 3072), torch flatten index = o*64 + ph*8 + pw.
    # Re-layout to (8, 384, 128): lw3[ph, pw*48 + o, n], classes zero-padded.
    lw4 = lin_w.reshape(num_classes, L1, GRID_HW, GRID_HW)     # (n, o, ph, pw)
    lw3 = lw4.transpose(2, 3, 1, 0).reshape(GRID_HW, HID, num_classes)
    lw3 = jnp.pad(lw3, ((0, 0), (0, 0), (0, NPAD - num_classes)))
    lb = jnp.pad(lin_b, (0, NPAD - num_classes)).reshape(1, NPAD)
    return wcat, cb, lw3, lb


def _pick_block(batch, block_b):
    """Block size heuristic: big blocks, but >= 2 grid steps so both v7x
    TensorCores get work on the 'parallel' batch axis; partial blocks are
    multiples of 8 (sublane constraint)."""
    bt = min(block_b, batch)
    if bt == batch and batch >= 16:
        bt = 8 * pl.cdiv(pl.cdiv(batch, 2), 8)
    if bt < batch:
        bt = max(8, (bt // 8) * 8)
    return bt


@functools.partial(jax.jit, static_argnames=("block_b",))
def lda_simple_forward(x, params, block_b=256):
    """x: (B, 3, 32, 32) float32 NCHW. Returns (B, NUM_CLASSES) float32."""
    wcat, cb, lw3, lb = params
    B = x.shape[0]
    bt = _pick_block(B, block_b)

    xr = x.reshape(B, IN_FLAT)        # free reshape: NCHW is contiguous per sample

    cost = pl.CostEstimate(
        flops=2 * B * GRID_HW * (KCAT * HID + HID * NPAD),
        transcendentals=B * GRID_HW * HID,
        bytes_accessed=4 * (xr.size + wcat.size + cb.size + lw3.size + lb.size
                            + B * NPAD),
    )

    out = pl.pallas_call(
        lda_kernel,
        out_shape=jax.ShapeDtypeStruct((B, NPAD), jnp.float32),
        grid=(pl.cdiv(B, bt),),
        in_specs=[
            pl.BlockSpec((bt, IN_FLAT), lambda i: (i, 0)),
            pl.BlockSpec((KCAT, HID), lambda i: (0, 0)),              # resident
            pl.BlockSpec((1, HID), lambda i: (0, 0)),                 # resident
            pl.BlockSpec((GRID_HW, HID, NPAD), lambda i: (0, 0, 0)),  # resident
            pl.BlockSpec((1, NPAD), lambda i: (0, 0)),                # resident
        ],
        out_specs=pl.BlockSpec((bt, NPAD), lambda i: (i, 0)),
        compiler_params=pltpu.CompilerParams(
            dimension_semantics=("parallel",),
            vmem_limit_bytes=32 * 1024 * 1024),
        cost_estimate=cost,
    )(xr, wcat, cb, lw3, lb)

    return out[:, :NUM_CLASSES]


def reference_forward(x, conv_w, conv_b, lin_w, lin_b):
    """Pure-JAX reference matching PyTorch semantics (for correctness check)."""
    y = jax.lax.conv_general_dilated(
        x, conv_w, window_strides=(4, 4), padding="VALID",
        dimension_numbers=("NCHW", "OIHW", "NCHW"),
        precision=jax.lax.Precision.HIGHEST)
    y = y + conv_b.reshape(1, L1, 1, 1)
    y = y * jax.nn.sigmoid(y)
    y = y.reshape(x.shape[0], -1)                     # channel-major flatten, like torch
    return jnp.dot(y, lin_w.T, precision=jax.lax.Precision.HIGHEST) + lin_b


if __name__ == "__main__":
    key = jax.random.PRNGKey(0)
    k_x, k_cw, k_cb, k_lw, k_lb = jax.random.split(key, 5)

    conv_w = jax.random.normal(k_cw, (L1, 3, 4, 4), dtype=jnp.float32) * 0.1
    conv_b = jax.random.normal(k_cb, (L1,), dtype=jnp.float32) * 0.1
    lin_w = jax.random.normal(k_lw, (NUM_CLASSES, GRID_HW * GRID_HW * L1),
                              dtype=jnp.float32) * 0.02
    lin_b = jax.random.normal(k_lb, (NUM_CLASSES,), dtype=jnp.float32) * 0.02

    params = prepare_params(conv_w, conv_b, lin_w, lin_b)

    # Single-block path (B = 2: block equals the full batch dim).
    x = jax.random.normal(k_x, (2, 3, 32, 32), dtype=jnp.float32)
    out = jax.block_until_ready(lda_simple_forward(x, params))
    ref = reference_forward(x, conv_w, conv_b, lin_w, lin_b)
    assert out.shape == (2, NUM_CLASSES)
    assert jnp.allclose(out, ref, atol=1e-3, rtol=1e-3), "mismatch vs reference (B=2)"

    # Multi-block pipelined path (B = 16 -> auto block 8 -> 2 grid steps).
    x16 = jax.random.normal(jax.random.PRNGKey(1), (16, 3, 32, 32), dtype=jnp.float32)
    out16 = jax.block_until_ready(lda_simple_forward(x16, params))
    ref16 = reference_forward(x16, conv_w, conv_b, lin_w, lin_b)
    assert jnp.allclose(out16, ref16, atol=1e-3, rtol=1e-3), "mismatch vs reference (B=16)"

    print("KERNEL_OK")
</pallas_src>

<mosaic_0001>
module attributes {stable_mosaic.version = 11 : i64} {
  func.func @lda_kernel(%arg0: i32, %arg1: memref<2x3072xf32, #tpu.memory_space<vmem>>, %arg2: memref<384x384xf32, #tpu.memory_space<vmem>>, %arg3: memref<1x384xf32, #tpu.memory_space<vmem>>, %arg4: memref<8x384x128xf32, #tpu.memory_space<vmem>>, %arg5: memref<1x128xf32, #tpu.memory_space<vmem>>, %arg6: memref<2x128xf32, #tpu.memory_space<vmem>>) attributes {dimension_semantics = [#tpu.dimension_semantics<parallel>], iteration_bounds = array<i64: 1>, scalar_prefetch = 0 : i64, scratch_operands = 0 : i64, tpu.core_type = #tpu.core_type<tc>, window_params = [{transform_indices = @transform_0, window_bounds = array<i64: 2, 3072>}, {pipeline_mode = #tpu.pipeline_mode<synchronous>, transform_indices = @transform_1, window_bounds = array<i64: 384, 384>}, {pipeline_mode = #tpu.pipeline_mode<synchronous>, transform_indices = @transform_2, window_bounds = array<i64: 1, 384>}, {pipeline_mode = #tpu.pipeline_mode<synchronous>, transform_indices = @transform_3, window_bounds = array<i64: 8, 384, 128>}, {pipeline_mode = #tpu.pipeline_mode<synchronous>, transform_indices = @transform_4, window_bounds = array<i64: 1, 128>}, {transform_indices = @transform_5, window_bounds = array<i64: 2, 128>}]} {
    %c0 = arith.constant 0 : index
    %c0_0 = arith.constant 0 : index
    %0 = vector.load %arg2[%c0, %c0_0] : memref<384x384xf32, #tpu.memory_space<vmem>>, vector<384x384xf32>
    %c0_1 = arith.constant 0 : index
    %c0_2 = arith.constant 0 : index
    %1 = vector.load %arg3[%c0_1, %c0_2] : memref<1x384xf32, #tpu.memory_space<vmem>>, vector<1x384xf32>
    %c0_3 = arith.constant 0 : index
    %c0_4 = arith.constant 0 : index
    %2 = vector.load %arg1[%c0_3, %c0_4] : memref<2x3072xf32, #tpu.memory_space<vmem>>, vector<2x128xf32>
    %c0_5 = arith.constant 0 : index
    %c1024 = arith.constant 1024 : index
    %3 = vector.load %arg1[%c0_5, %c1024] : memref<2x3072xf32, #tpu.memory_space<vmem>>, vector<2x128xf32>
    %c0_6 = arith.constant 0 : index
    %c2048 = arith.constant 2048 : index
    %4 = vector.load %arg1[%c0_6, %c2048] : memref<2x3072xf32, #tpu.memory_space<vmem>>, vector<2x128xf32>
    %5 = tpu.concatenate %2, %3, %4 in 1 : vector<2x128xf32>, vector<2x128xf32>, vector<2x128xf32> -> vector<2x384xf32>
    %cst = arith.constant dense<0.000000e+00> : vector<2x384xf32>
    %6 = tpu.matmul %5, %0, %cst {dimension_numbers = #tpu.dot_dimension_numbers<[1], [0], [0], [1], [0, 0, 1, 1], [], []>} : vector<2x384xf32>, vector<384x384xf32>, vector<2x384xf32> -> vector<2x384xf32>
    %7 = vector.broadcast %1 : vector<1x384xf32> to vector<2x384xf32>
    %8 = arith.addf %6, %7 : vector<2x384xf32>
    %cst_7 = arith.constant 0.000000e+00 : f32
    %9 = vector.broadcast %cst_7 : f32 to vector<2x384xf32>
    %10 = arith.subf %9, %8 : vector<2x384xf32>
    %11 = math.exp %10 : vector<2x384xf32>
    %cst_8 = arith.constant 1.000000e+00 : f32
    %12 = vector.broadcast %cst_8 : f32 to vector<2x384xf32>
    %13 = arith.addf %12, %11 : vector<2x384xf32>
    %cst_9 = arith.constant 1.000000e+00 : f32
    %14 = vector.broadcast %cst_9 : f32 to vector<2x384xf32>
    %15 = arith.divf %14, %13 : vector<2x384xf32>
    %16 = arith.mulf %8, %15 : vector<2x384xf32>
    %c0_10 = arith.constant 0 : index
    %c0_11 = arith.constant 0 : index
    %c0_12 = arith.constant 0 : index
    %17 = vector.load %arg4[%c0_10, %c0_11, %c0_12] : memref<8x384x128xf32, #tpu.memory_space<vmem>>, vector<1x384x128xf32>
    %18 = vector.shape_cast %17 : vector<1x384x128xf32> to vector<384x128xf32>
    %cst_13 = arith.constant dense<0.000000e+00> : vector<2x128xf32>
    %19 = tpu.matmul %16, %18, %cst_13 {dimension_numbers = #tpu.dot_dimension_numbers<[1], [0], [0], [1], [0, 0, 1, 1], [], []>} : vector<2x384xf32>, vector<384x128xf32>, vector<2x128xf32> -> vector<2x128xf32>
    %c0_14 = arith.constant 0 : index
    %c128 = arith.constant 128 : index
    %20 = vector.load %arg1[%c0_14, %c128] : memref<2x3072xf32, #tpu.memory_space<vmem>>, vector<2x128xf32>
    %c0_15 = arith.constant 0 : index
    %c1152 = arith.constant 1152 : index
    %21 = vector.load %arg1[%c0_15, %c1152] : memref<2x3072xf32, #tpu.memory_space<vmem>>, vector<2x128xf32>
    %c0_16 = arith.constant 0 : index
    %c2176 = arith.constant 2176 : index
    %22 = vector.load %arg1[%c0_16, %c2176] : memref<2x3072xf32, #tpu.memory_space<vmem>>, vector<2x128xf32>
    %23 = tpu.concatenate %20, %21, %22 in 1 : vector<2x128xf32>, vector<2x128xf32>, vector<2x128xf32> -> vector<2x384xf32>
    %cst_17 = arith.constant dense<0.000000e+00> : vector<2x384xf32>
    %24 = tpu.matmul %23, %0, %cst_17 {dimension_numbers = #tpu.dot_dimension_numbers<[1], [0], [0], [1], [0, 0, 1, 1], [], []>} : vector<2x384xf32>, vector<384x384xf32>, vector<2x384xf32> -> vector<2x384xf32>
    %25 = vector.broadcast %1 : vector<1x384xf32> to vector<2x384xf32>
    %26 = arith.addf %24, %25 : vector<2x384xf32>
    %cst_18 = arith.constant 0.000000e+00 : f32
    %27 = vector.broadcast %cst_18 : f32 to vector<2x384xf32>
    %28 = arith.subf %27, %26 : vector<2x384xf32>
    %29 = math.exp %28 : vector<2x384xf32>
    %cst_19 = arith.constant 1.000000e+00 : f32
    %30 = vector.broadcast %cst_19 : f32 to vector<2x384xf32>
    %31 = arith.addf %30, %29 : vector<2x384xf32>
    %cst_20 = arith.constant 1.000000e+00 : f32
    %32 = vector.broadcast %cst_20 : f32 to vector<2x384xf32>
    %33 = arith.divf %32, %31 : vector<2x384xf32>
    %34 = arith.mulf %26, %33 : vector<2x384xf32>
    %c1 = arith.constant 1 : index
    %c0_21 = arith.constant 0 : index
    %c0_22 = arith.constant 0 : index
    %35 = vector.load %arg4[%c1, %c0_21, %c0_22] : memref<8x384x128xf32, #tpu.memory_space<vmem>>, vector<1x384x128xf32>
    %36 = vector.shape_cast %35 : vector<1x384x128xf32> to vector<384x128xf32>
    %cst_23 = arith.constant dense<0.000000e+00> : vector<2x128xf32>
    %37 = tpu.matmul %34, %36, %cst_23 {dimension_numbers = #tpu.dot_dimension_numbers<[1], [0], [0], [1], [0, 0, 1, 1], [], []>} : vector<2x384xf32>, vector<384x128xf32>, vector<2x128xf32> -> vector<2x128xf32>
    %38 = arith.addf %19, %37 : vector<2x128xf32>
    %c0_24 = arith.constant 0 : index
    %c256 = arith.constant 256 : index
    %39 = vector.load %arg1[%c0_24, %c256] : memref<2x3072xf32, #tpu.memory_space<vmem>>, vector<2x128xf32>
    %c0_25 = arith.constant 0 : index
    %c1280 = arith.constant 1280 : index
    %40 = vector.load %arg1[%c0_25, %c1280] : memref<2x3072xf32, #tpu.memory_space<vmem>>, vector<2x128xf32>
    %c0_26 = arith.constant 0 : index
    %c2304 = arith.constant 2304 : index
    %41 = vector.load %arg1[%c0_26, %c2304] : memref<2x3072xf32, #tpu.memory_space<vmem>>, vector<2x128xf32>
    %42 = tpu.concatenate %39, %40, %41 in 1 : vector<2x128xf32>, vector<2x128xf32>, vector<2x128xf32> -> vector<2x384xf32>
    %cst_27 = arith.constant dense<0.000000e+00> : vector<2x384xf32>
    %43 = tpu.matmul %42, %0, %cst_27 {dimension_numbers = #tpu.dot_dimension_numbers<[1], [0], [0], [1], [0, 0, 1, 1], [], []>} : vector<2x384xf32>, vector<384x384xf32>, vector<2x384xf32> -> vector<2x384xf32>
    %44 = vector.broadcast %1 : vector<1x384xf32> to vector<2x384xf32>
    %45 = arith.addf %43, %44 : vector<2x384xf32>
    %cst_28 = arith.constant 0.000000e+00 : f32
    %46 = vector.broadcast %cst_28 : f32 to vector<2x384xf32>
    %47 = arith.subf %46, %45 : vector<2x384xf32>
    %48 = math.exp %47 : vector<2x384xf32>
    %cst_29 = arith.constant 1.000000e+00 : f32
    %49 = vector.broadcast %cst_29 : f32 to vector<2x384xf32>
    %50 = arith.addf %49, %48 : vector<2x384xf32>
    %cst_30 = arith.constant 1.000000e+00 : f32
    %51 = vector.broadcast %cst_30 : f32 to vector<2x384xf32>
    %52 = arith.divf %51, %50 : vector<2x384xf32>
    %53 = arith.mulf %45, %52 : vector<2x384xf32>
    %c2 = arith.constant 2 : index
    %c0_31 = arith.constant 0 : index
    %c0_32 = arith.constant 0 : index
    %54 = vector.load %arg4[%c2, %c0_31, %c0_32] : memref<8x384x128xf32, #tpu.memory_space<vmem>>, vector<1x384x128xf32>
    %55 = vector.shape_cast %54 : vector<1x384x128xf32> to vector<384x128xf32>
    %cst_33 = arith.constant dense<0.000000e+00> : vector<2x128xf32>
    %56 = tpu.matmul %53, %55, %cst_33 {dimension_numbers = #tpu.dot_dimension_numbers<[1], [0], [0], [1], [0, 0, 1, 1], [], []>} : vector<2x384xf32>, vector<384x128xf32>, vector<2x128xf32> -> vector<2x128xf32>
    %57 = arith.addf %38, %56 : vector<2x128xf32>
    %c0_34 = arith.constant 0 : index
    %c384 = arith.constant 384 : index
    %58 = vector.load %arg1[%c0_34, %c384] : memref<2x3072xf32, #tpu.memory_space<vmem>>, vector<2x128xf32>
    %c0_35 = arith.constant 0 : index
    %c1408 = arith.constant 1408 : index
    %59 = vector.load %arg1[%c0_35, %c1408] : memref<2x3072xf32, #tpu.memory_space<vmem>>, vector<2x128xf32>
    %c0_36 = arith.constant 0 : index
    %c2432 = arith.constant 2432 : index
    %60 = vector.load %arg1[%c0_36, %c2432] : memref<2x3072xf32, #tpu.memory_space<vmem>>, vector<2x128xf32>
    %61 = tpu.concatenate %58, %59, %60 in 1 : vector<2x128xf32>, vector<2x128xf32>, vector<2x128xf32> -> vector<2x384xf32>
    %cst_37 = arith.constant dense<0.000000e+00> : vector<2x384xf32>
    %62 = tpu.matmul %61, %0, %cst_37 {dimension_numbers = #tpu.dot_dimension_numbers<[1], [0], [0], [1], [0, 0, 1, 1], [], []>} : vector<2x384xf32>, vector<384x384xf32>, vector<2x384xf32> -> vector<2x384xf32>
    %63 = vector.broadcast %1 : vector<1x384xf32> to vector<2x384xf32>
    %64 = arith.addf %62, %63 : vector<2x384xf32>
    %cst_38 = arith.constant 0.000000e+00 : f32
    %65 = vector.broadcast %cst_38 : f32 to vector<2x384xf32>
    %66 = arith.subf %65, %64 : vector<2x384xf32>
    %67 = math.exp %66 : vector<2x384xf32>
    %cst_39 = arith.constant 1.000000e+00 : f32
    %68 = vector.broadcast %cst_39 : f32 to vector<2x384xf32>
    %69 = arith.addf %68, %67 : vector<2x384xf32>
    %cst_40 = arith.constant 1.000000e+00 : f32
    %70 = vector.broadcast %cst_40 : f32 to vector<2x384xf32>
    %71 = arith.divf %70, %69 : vector<2x384xf32>
    %72 = arith.mulf %64, %71 : vector<2x384xf32>
    %c3 = arith.constant 3 : index
    %c0_41 = arith.constant 0 : index
    %c0_42 = arith.constant 0 : index
    %73 = vector.load %arg4[%c3, %c0_41, %c0_42] : memref<8x384x128xf32, #tpu.memory_space<vmem>>, vector<1x384x128xf32>
    %74 = vector.shape_cast %73 : vector<1x384x128xf32> to vector<384x128xf32>
    %cst_43 = arith.constant dense<0.000000e+00> : vector<2x128xf32>
    %75 = tpu.matmul %72, %74, %cst_43 {dimension_numbers = #tpu.dot_dimension_numbers<[1], [0], [0], [1], [0, 0, 1, 1], [], []>} : vector<2x384xf32>, vector<384x128xf32>, vector<2x128xf32> -> vector<2x128xf32>
    %76 = arith.addf %57, %75 : vector<2x128xf32>
    %c0_44 = arith.constant 0 : index
    %c512 = arith.constant 512 : index
    %77 = vector.load %arg1[%c0_44, %c512] : memref<2x3072xf32, #tpu.memory_space<vmem>>, vector<2x128xf32>
    %c0_45 = arith.constant 0 : index
    %c1536 = arith.constant 1536 : index
    %78 = vector.load %arg1[%c0_45, %c1536] : memref<2x3072xf32, #tpu.memory_space<vmem>>, vector<2x128xf32>
    %c0_46 = arith.constant 0 : index
    %c2560 = arith.constant 2560 : index
    %79 = vector.load %arg1[%c0_46, %c2560] : memref<2x3072xf32, #tpu.memory_space<vmem>>, vector<2x128xf32>
    %80 = tpu.concatenate %77, %78, %79 in 1 : vector<2x128xf32>, vector<2x128xf32>, vector<2x128xf32> -> vector<2x384xf32>
    %cst_47 = arith.constant dense<0.000000e+00> : vector<2x384xf32>
    %81 = tpu.matmul %80, %0, %cst_47 {dimension_numbers = #tpu.dot_dimension_numbers<[1], [0], [0], [1], [0, 0, 1, 1], [], []>} : vector<2x384xf32>, vector<384x384xf32>, vector<2x384xf32> -> vector<2x384xf32>
    %82 = vector.broadcast %1 : vector<1x384xf32> to vector<2x384xf32>
    %83 = arith.addf %81, %82 : vector<2x384xf32>
    %cst_48 = arith.constant 0.000000e+00 : f32
    %84 = vector.broadcast %cst_48 : f32 to vector<2x384xf32>
    %85 = arith.subf %84, %83 : vector<2x384xf32>
    %86 = math.exp %85 : vector<2x384xf32>
    %cst_49 = arith.constant 1.000000e+00 : f32
    %87 = vector.broadcast %cst_49 : f32 to vector<2x384xf32>
    %88 = arith.addf %87, %86 : vector<2x384xf32>
    %cst_50 = arith.constant 1.000000e+00 : f32
    %89 = vector.broadcast %cst_50 : f32 to vector<2x384xf32>
    %90 = arith.divf %89, %88 : vector<2x384xf32>
    %91 = arith.mulf %83, %90 : vector<2x384xf32>
    %c4 = arith.constant 4 : index
    %c0_51 = arith.constant 0 : index
    %c0_52 = arith.constant 0 : index
    %92 = vector.load %arg4[%c4, %c0_51, %c0_52] : memref<8x384x128xf32, #tpu.memory_space<vmem>>, vector<1x384x128xf32>
    %93 = vector.shape_cast %92 : vector<1x384x128xf32> to vector<384x128xf32>
    %cst_53 = arith.constant dense<0.000000e+00> : vector<2x128xf32>
    %94 = tpu.matmul %91, %93, %cst_53 {dimension_numbers = #tpu.dot_dimension_numbers<[1], [0], [0], [1], [0, 0, 1, 1], [], []>} : vector<2x384xf32>, vector<384x128xf32>, vector<2x128xf32> -> vector<2x128xf32>
    %95 = arith.addf %76, %94 : vector<2x128xf32>
    %c0_54 = arith.constant 0 : index
    %c640 = arith.constant 640 : index
    %96 = vector.load %arg1[%c0_54, %c640] : memref<2x3072xf32, #tpu.memory_space<vmem>>, vector<2x128xf32>
    %c0_55 = arith.constant 0 : index
    %c1664 = arith.constant 1664 : index
    %97 = vector.load %arg1[%c0_55, %c1664] : memref<2x3072xf32, #tpu.memory_space<vmem>>, vector<2x128xf32>
    %c0_56 = arith.constant 0 : index
    %c2688 = arith.constant 2688 : index
    %98 = vector.load %arg1[%c0_56, %c2688] : memref<2x3072xf32, #tpu.memory_space<vmem>>, vector<2x128xf32>
    %99 = tpu.concatenate %96, %97, %98 in 1 : vector<2x128xf32>, vector<2x128xf32>, vector<2x128xf32> -> vector<2x384xf32>
    %cst_57 = arith.constant dense<0.000000e+00> : vector<2x384xf32>
    %100 = tpu.matmul %99, %0, %cst_57 {dimension_numbers = #tpu.dot_dimension_numbers<[1], [0], [0], [1], [0, 0, 1, 1], [], []>} : vector<2x384xf32>, vector<384x384xf32>, vector<2x384xf32> -> vector<2x384xf32>
    %101 = vector.broadcast %1 : vector<1x384xf32> to vector<2x384xf32>
    %102 = arith.addf %100, %101 : vector<2x384xf32>
    %cst_58 = arith.constant 0.000000e+00 : f32
    %103 = vector.broadcast %cst_58 : f32 to vector<2x384xf32>
    %104 = arith.subf %103, %102 : vector<2x384xf32>
    %105 = math.exp %104 : vector<2x384xf32>
    %cst_59 = arith.constant 1.000000e+00 : f32
    %106 = vector.broadcast %cst_59 : f32 to vector<2x384xf32>
    %107 = arith.addf %106, %105 : vector<2x384xf32>
    %cst_60 = arith.constant 1.000000e+00 : f32
    %108 = vector.broadcast %cst_60 : f32 to vector<2x384xf32>
    %109 = arith.divf %108, %107 : vector<2x384xf32>
    %110 = arith.mulf %102, %109 : vector<2x384xf32>
    %c5 = arith.constant 5 : index
    %c0_61 = arith.constant 0 : index
    %c0_62 = arith.constant 0 : index
    %111 = vector.load %arg4[%c5, %c0_61, %c0_62] : memref<8x384x128xf32, #tpu.memory_space<vmem>>, vector<1x384x128xf32>
    %112 = vector.shape_cast %111 : vector<1x384x128xf32> to vector<384x128xf32>
    %cst_63 = arith.constant dense<0.000000e+00> : vector<2x128xf32>
    %113 = tpu.matmul %110, %112, %cst_63 {dimension_numbers = #tpu.dot_dimension_numbers<[1], [0], [0], [1], [0, 0, 1, 1], [], []>} : vector<2x384xf32>, vector<384x128xf32>, vector<2x128xf32> -> vector<2x128xf32>
    %114 = arith.addf %95, %113 : vector<2x128xf32>
    %c0_64 = arith.constant 0 : index
    %c768 = arith.constant 768 : index
    %115 = vector.load %arg1[%c0_64, %c768] : memref<2x3072xf32, #tpu.memory_space<vmem>>, vector<2x128xf32>
    %c0_65 = arith.constant 0 : index
    %c1792 = arith.constant 1792 : index
    %116 = vector.load %arg1[%c0_65, %c1792] : memref<2x3072xf32, #tpu.memory_space<vmem>>, vector<2x128xf32>
    %c0_66 = arith.constant 0 : index
    %c2816 = arith.constant 2816 : index
    %117 = vector.load %arg1[%c0_66, %c2816] : memref<2x3072xf32, #tpu.memory_space<vmem>>, vector<2x128xf32>
    %118 = tpu.concatenate %115, %116, %117 in 1 : vector<2x128xf32>, vector<2x128xf32>, vector<2x128xf32> -> vector<2x384xf32>
    %cst_67 = arith.constant dense<0.000000e+00> : vector<2x384xf32>
    %119 = tpu.matmul %118, %0, %cst_67 {dimension_numbers = #tpu.dot_dimension_numbers<[1], [0], [0], [1], [0, 0, 1, 1], [], []>} : vector<2x384xf32>, vector<384x384xf32>, vector<2x384xf32> -> vector<2x384xf32>
    %120 = vector.broadcast %1 : vector<1x384xf32> to vector<2x384xf32>
    %121 = arith.addf %119, %120 : vector<2x384xf32>
    %cst_68 = arith.constant 0.000000e+00 : f32
    %122 = vector.broadcast %cst_68 : f32 to vector<2x384xf32>
    %123 = arith.subf %122, %121 : vector<2x384xf32>
    %124 = math.exp %123 : vector<2x384xf32>
    %cst_69 = arith.constant 1.000000e+00 : f32
    %125 = vector.broadcast %cst_69 : f32 to vector<2x384xf32>
    %126 = arith.addf %125, %124 : vector<2x384xf32>
    %cst_70 = arith.constant 1.000000e+00 : f32
    %127 = vector.broadcast %cst_70 : f32 to vector<2x384xf32>
    %128 = arith.divf %127, %126 : vector<2x384xf32>
    %129 = arith.mulf %121, %128 : vector<2x384xf32>
    %c6 = arith.constant 6 : index
    %c0_71 = arith.constant 0 : index
    %c0_72 = arith.constant 0 : index
    %130 = vector.load %arg4[%c6, %c0_71, %c0_72] : memref<8x384x128xf32, #tpu.memory_space<vmem>>, vector<1x384x128xf32>
    %131 = vector.shape_cast %130 : vector<1x384x128xf32> to vector<384x128xf32>
    %cst_73 = arith.constant dense<0.000000e+00> : vector<2x128xf32>
    %132 = tpu.matmul %129, %131, %cst_73 {dimension_numbers = #tpu.dot_dimension_numbers<[1], [0], [0], [1], [0, 0, 1, 1], [], []>} : vector<2x384xf32>, vector<384x128xf32>, vector<2x128xf32> -> vector<2x128xf32>
    %133 = arith.addf %114, %132 : vector<2x128xf32>
    %c0_74 = arith.constant 0 : index
    %c896 = arith.constant 896 : index
    %134 = vector.load %arg1[%c0_74, %c896] : memref<2x3072xf32, #tpu.memory_space<vmem>>, vector<2x128xf32>
    %c0_75 = arith.constant 0 : index
    %c1920 = arith.constant 1920 : index
    %135 = vector.load %arg1[%c0_75, %c1920] : memref<2x3072xf32, #tpu.memory_space<vmem>>, vector<2x128xf32>
    %c0_76 = arith.constant 0 : index
    %c2944 = arith.constant 2944 : index
    %136 = vector.load %arg1[%c0_76, %c2944] : memref<2x3072xf32, #tpu.memory_space<vmem>>, vector<2x128xf32>
    %137 = tpu.concatenate %134, %135, %136 in 1 : vector<2x128xf32>, vector<2x128xf32>, vector<2x128xf32> -> vector<2x384xf32>
    %cst_77 = arith.constant dense<0.000000e+00> : vector<2x384xf32>
    %138 = tpu.matmul %137, %0, %cst_77 {dimension_numbers = #tpu.dot_dimension_numbers<[1], [0], [0], [1], [0, 0, 1, 1], [], []>} : vector<2x384xf32>, vector<384x384xf32>, vector<2x384xf32> -> vector<2x384xf32>
    %139 = vector.broadcast %1 : vector<1x384xf32> to vector<2x384xf32>
    %140 = arith.addf %138, %139 : vector<2x384xf32>
    %cst_78 = arith.constant 0.000000e+00 : f32
    %141 = vector.broadcast %cst_78 : f32 to vector<2x384xf32>
    %142 = arith.subf %141, %140 : vector<2x384xf32>
    %143 = math.exp %142 : vector<2x384xf32>
    %cst_79 = arith.constant 1.000000e+00 : f32
    %144 = vector.broadcast %cst_79 : f32 to vector<2x384xf32>
    %145 = arith.addf %144, %143 : vector<2x384xf32>
    %cst_80 = arith.constant 1.000000e+00 : f32
    %146 = vector.broadcast %cst_80 : f32 to vector<2x384xf32>
    %147 = arith.divf %146, %145 : vector<2x384xf32>
    %148 = arith.mulf %140, %147 : vector<2x384xf32>
    %c7 = arith.constant 7 : index
    %c0_81 = arith.constant 0 : index
    %c0_82 = arith.constant 0 : index
    %149 = vector.load %arg4[%c7, %c0_81, %c0_82] : memref<8x384x128xf32, #tpu.memory_space<vmem>>, vector<1x384x128xf32>
    %150 = vector.shape_cast %149 : vector<1x384x128xf32> to vector<384x128xf32>
    %cst_83 = arith.constant dense<0.000000e+00> : vector<2x128xf32>
    %151 = tpu.matmul %148, %150, %cst_83 {dimension_numbers = #tpu.dot_dimension_numbers<[1], [0], [0], [1], [0, 0, 1, 1], [], []>} : vector<2x384xf32>, vector<384x128xf32>, vector<2x128xf32> -> vector<2x128xf32>
    %152 = arith.addf %133, %151 : vector<2x128xf32>
    %c0_84 = arith.constant 0 : index
    %c0_85 = arith.constant 0 : index
    %153 = vector.load %arg5[%c0_84, %c0_85] : memref<1x128xf32, #tpu.memory_space<vmem>>, vector<1x128xf32>
    %154 = vector.broadcast %153 : vector<1x128xf32> to vector<2x128xf32>
    %155 = arith.addf %152, %154 : vector<2x128xf32>
    %c0_86 = arith.constant 0 : index
    %c0_87 = arith.constant 0 : index
    %156 = vector.load %arg6[%c0_86, %c0_87] : memref<2x128xf32, #tpu.memory_space<vmem>>, vector<2x128xf32>
    tpu.vector_store %arg6[%c0_86, %c0_87], %155 {strides = array<i32>} : memref<2x128xf32, #tpu.memory_space<vmem>>, vector<2x128xf32>,
    return
  }
  func.func @transform_0(%arg0: i32) -> (i32, i32) {
    %c0_i32 = arith.constant 0 : i32
    %c0_i32_0 = arith.constant 0 : i32
    return %arg0, %c0_i32 : i32, i32
  }
  func.func @transform_1(%arg0: i32) -> (i32, i32) {
    %c0_i32 = arith.constant 0 : i32
    %c0_i32_0 = arith.constant 0 : i32
    %c0_i32_1 = arith.constant 0 : i32
    return %c0_i32, %c0_i32_0 : i32, i32
  }
  func.func @transform_2(%arg0: i32) -> (i32, i32) {
    %c0_i32 = arith.constant 0 : i32
    %c0_i32_0 = arith.constant 0 : i32
    %c0_i32_1 = arith.constant 0 : i32
    return %c0_i32, %c0_i32_0 : i32, i32
  }
  func.func @transform_3(%arg0: i32) -> (i32, i32, i32) {
    %c0_i32 = arith.constant 0 : i32
    %c0_i32_0 = arith.constant 0 : i32
    %c0_i32_1 = arith.constant 0 : i32
    %c0_i32_2 = arith.constant 0 : i32
    return %c0_i32, %c0_i32_0, %c0_i32_1 : i32, i32, i32
  }
  func.func @transform_4(%arg0: i32) -> (i32, i32) {
    %c0_i32 = arith.constant 0 : i32
    %c0_i32_0 = arith.constant 0 : i32
    %c0_i32_1 = arith.constant 0 : i32
    return %c0_i32, %c0_i32_0 : i32, i32
  }
  func.func @transform_5(%arg0: i32) -> (i32, i32) {
    %c0_i32 = arith.constant 0 : i32
    %c0_i32_0 = arith.constant 0 : i32
    return %arg0, %c0_i32 : i32, i32
  }
}

</mosaic_0001>

<llo_original>
// kernel: lda_simple_forward.1
$region0: #{lda_simple_forward.1}
  #allocation0 [shape = 'u32[]', space=smem, size = 0x4, offset = 0x4, fixed_abs, tag = 'smem constant byte address 0x4 - core index']
  #allocation1 [shape = 'u32[144,128]{1,0:T(1,128)}', space=vmem, size = 0x12000, scoped, tag = 'internal scratch']
  %s0 = inlined_call_operand.vmem [shape: f32[2,3072], index: 0, kind: input, shape index: {}]
  %s1 = inlined_call_operand.hbm [shape: f32[384,384], index: 1, kind: input, shape index: {}]
  %s2 = inlined_call_operand.hbm [shape: f32[1,384], index: 2, kind: input, shape index: {}]
  %s3 = inlined_call_operand.hbm [shape: f32[8,384,128], index: 3, kind: input, shape index: {}]
  %s4 = inlined_call_operand.hbm [shape: f32[1,128], index: 4, kind: input, shape index: {}]
  %s5 = inlined_call_operand.hbm [shape: f32[2,128], index: 5, kind: output, shape index: {}]
  %s6 = sld [smem:[#allocation0]]
  $region46: #{lda_simple_forward.1} parent=0
    _
  %s8 = ssub.s32 1, %s6
  %s9 = scalar_select 0, %s8, %s6
  $region1: #{lda_simple_forward.1} parent=0
    #allocation2 [shape = 'u8[589824]{0}', space=vmem, size = 0x90000, scoped, tag = 'input window, operand 1, single buffered']
    #allocation3 [shape = 's32[1]{0}', space=sflag, size = 0x4, scoped, tag = 'scoped memory for lda_simple_forward.1']
    #allocation4 [shape = 's32[1]{0}', space=sflag, size = 0x4, scoped, tag = 'scoped memory for lda_simple_forward.1']
    #allocation5 [shape = 'u8[1536]{0}', space=vmem, size = 0x800, scoped, tag = 'input window, operand 2, single buffered']
    #allocation6 [shape = 's32[1]{0}', space=sflag, size = 0x4, scoped, tag = 'scoped memory for lda_simple_forward.1']
    #allocation7 [shape = 'u8[1572864]{0}', space=vmem, size = 0x180000, scoped, tag = 'input window, operand 3, single buffered']
    #allocation8 [shape = 'u8[512]{0}', space=vmem, size = 0x400, scoped, tag = 'input window, operand 4, single buffered']
    #allocation9 [shape = 's32[1]{0}', space=sflag, size = 0x4, scoped, tag = 'scoped memory for lda_simple_forward.1']
    #allocation10 [shape = 'u8[1024]{0}', space=vmem, size = 0x400, scoped, tag = 'output window, operand 0, single buffered']
    %10 = vsyncpa [#allocation3], 0
    %11 = vsyncpa [#allocation6], 0
    %12 = vsyncpa [#allocation9], 0
    %13 = vsyncpa [#allocation4], 0
    // Predicated region
    $region2: #{lda_simple_forward.1} parent=1 // pred_check
      _
    $region3: #{lda_simple_forward.1} parent=1 // pred_check_branch
      %15 = sbr.rel (0) target = $region5
    $region4: #{lda_simple_forward.1} parent=1 // pred_region
      _
    $region5: #{lda_simple_forward.1} parent=1 // pred_fallthru
      _
    // Predicated region
    $region6: #{lda_simple_forward.1} parent=1 // pred_check
      _
    $region7: #{lda_simple_forward.1} parent=1 // pred_check_branch
      %17 = sbr.rel (0) target = $region9
    $region8: #{lda_simple_forward.1} parent=1 // pred_region
      %s19 = ssub.s32 18432, 18432
      %20 = vsyncadd [#allocation3], %s19
      %s21 = sshll.u32 [#allocation2], 4
      %s22 = int_to_ptr.vmem [resolvable:$true] %s21
      %27 = dma.hbm_to_vmem [thread:$0]  %s1, 18432, %s22, [#allocation3], 384, 384, 24
    $region9: #{lda_simple_forward.1} parent=1 // pred_fallthru
      _
    // Predicated region
    $region10: #{lda_simple_forward.1} parent=1 // pred_check
      _
    $region11: #{lda_simple_forward.1} parent=1 // pred_check_branch
      %29 = sbr.rel (0) target = $region13
    $region12: #{lda_simple_forward.1} parent=1 // pred_region
      %s31 = ssub.s32 48, 48
      %32 = vsyncadd [#allocation6], %s31
      %s34 = sshll.u32 [#allocation5], 4
      %s35 = int_to_ptr.vmem [resolvable:$true] %s34
      %37 = dma.hbm_to_vmem [thread:$0]  %s2, 48, %s35, [#allocation6]
    $region13: #{lda_simple_forward.1} parent=1 // pred_fallthru
      _
    // Predicated region
    $region14: #{lda_simple_forward.1} parent=1 // pred_check
      _
    $region15: #{lda_simple_forward.1} parent=1 // pred_check_branch
      %39 = sbr.rel (0) target = $region17
    $region16: #{lda_simple_forward.1} parent=1 // pred_region
      %s41 = ssub.s32 49152, 49152
      %42 = vsyncadd [#allocation6], %s41
      %s43 = sshll.u32 [#allocation7], 4
      %s44 = int_to_ptr.vmem [resolvable:$true] %s43
      %49 = dma.hbm_to_vmem [thread:$0]  %s3, 49152, %s44, [#allocation6], 128, 128, 8
    $region17: #{lda_simple_forward.1} parent=1 // pred_fallthru
      _
    // Predicated region
    $region18: #{lda_simple_forward.1} parent=1 // pred_check
      _
    $region19: #{lda_simple_forward.1} parent=1 // pred_check_branch
      %51 = sbr.rel (0) target = $region21
    $region20: #{lda_simple_forward.1} parent=1 // pred_region
      %s53 = ssub.s32 16, 16
      %54 = vsyncadd [#allocation9], %s53
      %s56 = sshll.u32 [#allocation8], 4
      %s57 = int_to_ptr.vmem [resolvable:$true] %s56
      %59 = dma.hbm_to_vmem [thread:$0]  %s4, 16, %s57, [#allocation9]
    $region21: #{lda_simple_forward.1} parent=1 // pred_fallthru
      _
    // Predicated region
    $region22: #{lda_simple_forward.1} parent=1 // pred_check
      _
    $region23: #{lda_simple_forward.1} parent=1 // pred_check_branch
      %61 = sbr.rel (0) target = $region25
    $region24: #{lda_simple_forward.1} parent=1 // pred_region
      %62 = dma.done [#allocation3], 18432
    $region25: #{lda_simple_forward.1} parent=1 // pred_fallthru
      _
    // Predicated region
    $region26: #{lda_simple_forward.1} parent=1 // pred_check
      _
    $region27: #{lda_simple_forward.1} parent=1 // pred_check_branch
      %64 = sbr.rel (0) target = $region29
    $region28: #{lda_simple_forward.1} parent=1 // pred_region
      %65 = dma.done [#allocation6], 48
    $region29: #{lda_simple_forward.1} parent=1 // pred_fallthru
      _
    // Predicated region
    $region30: #{lda_simple_forward.1} parent=1 // pred_check
      _
    $region31: #{lda_simple_forward.1} parent=1 // pred_check_branch
      %67 = sbr.rel (0) target = $region33
    $region32: #{lda_simple_forward.1} parent=1 // pred_region
      %68 = dma.done [#allocation6], 49152
    $region33: #{lda_simple_forward.1} parent=1 // pred_fallthru
      _
    // Predicated region
    $region34: #{lda_simple_forward.1} parent=1 // pred_check
      _
    $region35: #{lda_simple_forward.1} parent=1 // pred_check_branch
      %70 = sbr.rel (0) target = $region37
    $region36: #{lda_simple_forward.1} parent=1 // pred_region
      %71 = dma.done [#allocation9], 16
    $region37: #{lda_simple_forward.1} parent=1 // pred_fallthru
      _
    %v72 = vld [vmem:[#allocation2] sm:$0xff]
    %v73 = vld [vmem:[#allocation2 + $0x8] sm:$0xff]
    %v74 = vld [vmem:[#allocation2 + $0x10] sm:$0xff]
    %v75 = vld [vmem:[#allocation2 + $0x18] sm:$0xff]
    %v76 = vld [vmem:[#allocation2 + $0x20] sm:$0xff]
    %v77 = vld [vmem:[#allocation2 + $0x28] sm:$0xff]
    %v78 = vld [vmem:[#allocation2 + $0x30] sm:$0xff]
    %v79 = vld [vmem:[#allocation2 + $0x38] sm:$0xff]
    %v80 = vld [vmem:[#allocation2 + $0x40] sm:$0xff]
    %v81 = vld [vmem:[#allocation2 + $0x48] sm:$0xff]
    %v82 = vld [vmem:[#allocation2 + $0x50] sm:$0xff]
    %v83 = vld [vmem:[#allocation2 + $0x58] sm:$0xff]
    %v84 = vld [vmem:[#allocation2 + $0x60] sm:$0xff]
    %v85 = vld [vmem:[#allocation2 + $0x68] sm:$0xff]
    %v86 = vld [vmem:[#allocation2 + $0x70] sm:$0xff]
    %v87 = vld [vmem:[#allocation2 + $0x78] sm:$0xff]
    %v88 = vld [vmem:[#allocation2 + $0x80] sm:$0xff]
    %v89 = vld [vmem:[#allocation2 + $0x88] sm:$0xff]
    %v90 = vld [vmem:[#allocation2 + $0x90] sm:$0xff]
    %v91 = vld [vmem:[#allocation2 + $0x98] sm:$0xff]
    %v92 = vld [vmem:[#allocation2 + $0xa0] sm:$0xff]
    %v93 = vld [vmem:[#allocation2 + $0xa8] sm:$0xff]
    %v94 = vld [vmem:[#allocation2 + $0xb0] sm:$0xff]
    %v95 = vld [vmem:[#allocation2 + $0xb8] sm:$0xff]
    %v96 = vld [vmem:[#allocation2 + $0xc0] sm:$0xff]
    %v97 = vld [vmem:[#allocation2 + $0xc8] sm:$0xff]
    %v98 = vld [vmem:[#allocation2 + $0xd0] sm:$0xff]
    %v99 = vld [vmem:[#allocation2 + $0xd8] sm:$0xff]
    %v100 = vld [vmem:[#allocation2 + $0xe0] sm:$0xff]
    %v101 = vld [vmem:[#allocation2 + $0xe8] sm:$0xff]
    %v102 = vld [vmem:[#allocation2 + $0xf0] sm:$0xff]
    %v103 = vld [vmem:[#allocation2 + $0xf8] sm:$0xff]
    %v104 = vld [vmem:[#allocation2 + $0x100] sm:$0xff]
    %v105 = vld [vmem:[#allocation2 + $0x108] sm:$0xff]
    %v106 = vld [vmem:[#allocation2 + $0x110] sm:$0xff]
    %v107 = vld [vmem:[#allocation2 + $0x118] sm:$0xff]
    %v108 = vld [vmem:[#allocation2 + $0x120] sm:$0xff]
    %v109 = vld [vmem:[#allocation2 + $0x128] sm:$0xff]
    %v110 = vld [vmem:[#allocation2 + $0x130] sm:$0xff]
    %v111 = vld [vmem:[#allocation2 + $0x138] sm:$0xff]
    %v112 = vld [vmem:[#allocation2 + $0x140] sm:$0xff]
    %v113 = vld [vmem:[#allocation2 + $0x148] sm:$0xff]
    %v114 = vld [vmem:[#allocation2 + $0x150] sm:$0xff]
    %v115 = vld [vmem:[#allocation2 + $0x158] sm:$0xff]
    %v116 = vld [vmem:[#allocation2 + $0x160] sm:$0xff]
    %v117 = vld [vmem:[#allocation2 + $0x168] sm:$0xff]
    %v118 = vld [vmem:[#allocation2 + $0x170] sm:$0xff]
    %v119 = vld [vmem:[#allocation2 + $0x178] sm:$0xff]
    %v120 = vld [vmem:[#allocation2 + $0x180] sm:$0xff]
    %v121 = vld [vmem:[#allocation2 + $0x188] sm:$0xff]
    %v122 = vld [vmem:[#allocation2 + $0x190] sm:$0xff]
    %v123 = vld [vmem:[#allocation2 + $0x198] sm:$0xff]
    %v124 = vld [vmem:[#allocation2 + $0x1a0] sm:$0xff]
    %v125 = vld [vmem:[#allocation2 + $0x1a8] sm:$0xff]
    %v126 = vld [vmem:[#allocation2 + $0x1b0] sm:$0xff]
    %v127 = vld [vmem:[#allocation2 + $0x1b8] sm:$0xff]
    %v128 = vld [vmem:[#allocation2 + $0x1c0] sm:$0xff]
    %v129 = vld [vmem:[#allocation2 + $0x1c8] sm:$0xff]
    %v130 = vld [vmem:[#allocation2 + $0x1d0] sm:$0xff]
    %v131 = vld [vmem:[#allocation2 + $0x1d8] sm:$0xff]
    %v132 = vld [vmem:[#allocation2 + $0x1e0] sm:$0xff]
    %v133 = vld [vmem:[#allocation2 + $0x1e8] sm:$0xff]
    %v134 = vld [vmem:[#allocation2 + $0x1f0] sm:$0xff]
    %v135 = vld [vmem:[#allocation2 + $0x1f8] sm:$0xff]
    %v136 = vld [vmem:[#allocation2 + $0x200] sm:$0xff]
    %v137 = vld [vmem:[#allocation2 + $0x208] sm:$0xff]
    %v138 = vld [vmem:[#allocation2 + $0x210] sm:$0xff]
    %v139 = vld [vmem:[#allocation2 + $0x218] sm:$0xff]
    %v140 = vld [vmem:[#allocation2 + $0x220] sm:$0xff]
    %v141 = vld [vmem:[#allocation2 + $0x228] sm:$0xff]
    %v142 = vld [vmem:[#allocation2 + $0x230] sm:$0xff]
    %v143 = vld [vmem:[#allocation2 + $0x238] sm:$0xff]
    %v144 = vld [vmem:[#allocation2 + $0x240] sm:$0xff]
    %v145 = vld [vmem:[#allocation2 + $0x248] sm:$0xff]
    %v146 = vld [vmem:[#allocation2 + $0x250] sm:$0xff]
    %v147 = vld [vmem:[#allocation2 + $0x258] sm:$0xff]
    %v148 = vld [vmem:[#allocation2 + $0x260] sm:$0xff]
    %v149 = vld [vmem:[#allocation2 + $0x268] sm:$0xff]
    %v150 = vld [vmem:[#allocation2 + $0x270] sm:$0xff]
    %v151 = vld [vmem:[#allocation2 + $0x278] sm:$0xff]
    %v152 = vld [vmem:[#allocation2 + $0x280] sm:$0xff]
    %v153 = vld [vmem:[#allocation2 + $0x288] sm:$0xff]
    %v154 = vld [vmem:[#allocation2 + $0x290] sm:$0xff]
    %v155 = vld [vmem:[#allocation2 + $0x298] sm:$0xff]
    %v156 = vld [vmem:[#allocation2 + $0x2a0] sm:$0xff]
    %v157 = vld [vmem:[#allocation2 + $0x2a8] sm:$0xff]
    %v158 = vld [vmem:[#allocation2 + $0x2b0] sm:$0xff]
    %v159 = vld [vmem:[#allocation2 + $0x2b8] sm:$0xff]
    %v160 = vld [vmem:[#allocation2 + $0x2c0] sm:$0xff]
    %v161 = vld [vmem:[#allocation2 + $0x2c8] sm:$0xff]
    %v162 = vld [vmem:[#allocation2 + $0x2d0] sm:$0xff]
    %v163 = vld [vmem:[#allocation2 + $0x2d8] sm:$0xff]
    %v164 = vld [vmem:[#allocation2 + $0x2e0] sm:$0xff]
    %v165 = vld [vmem:[#allocation2 + $0x2e8] sm:$0xff]
    %v166 = vld [vmem:[#allocation2 + $0x2f0] sm:$0xff]
    %v167 = vld [vmem:[#allocation2 + $0x2f8] sm:$0xff]
    %v168 = vld [vmem:[#allocation2 + $0x300] sm:$0xff]
    %v169 = vld [vmem:[#allocation2 + $0x308] sm:$0xff]
    %v170 = vld [vmem:[#allocation2 + $0x310] sm:$0xff]
    %v171 = vld [vmem:[#allocation2 + $0x318] sm:$0xff]
    %v172 = vld [vmem:[#allocation2 + $0x320] sm:$0xff]
    %v173 = vld [vmem:[#allocation2 + $0x328] sm:$0xff]
    %v174 = vld [vmem:[#allocation2 + $0x330] sm:$0xff]
    %v175 = vld [vmem:[#allocation2 + $0x338] sm:$0xff]
    %v176 = vld [vmem:[#allocation2 + $0x340] sm:$0xff]
    %v177 = vld [vmem:[#allocation2 + $0x348] sm:$0xff]
    %v178 = vld [vmem:[#allocation2 + $0x350] sm:$0xff]
    %v179 = vld [vmem:[#allocation2 + $0x358] sm:$0xff]
    %v180 = vld [vmem:[#allocation2 + $0x360] sm:$0xff]
    %v181 = vld [vmem:[#allocation2 + $0x368] sm:$0xff]
    %v182 = vld [vmem:[#allocation2 + $0x370] sm:$0xff]
    %v183 = vld [vmem:[#allocation2 + $0x378] sm:$0xff]
    %v184 = vld [vmem:[#allocation2 + $0x380] sm:$0xff]
    %v185 = vld [vmem:[#allocation2 + $0x388] sm:$0xff]
    %v186 = vld [vmem:[#allocation2 + $0x390] sm:$0xff]
    %v187 = vld [vmem:[#allocation2 + $0x398] sm:$0xff]
    %v188 = vld [vmem:[#allocation2 + $0x3a0] sm:$0xff]
    %v189 = vld [vmem:[#allocation2 + $0x3a8] sm:$0xff]
    %v190 = vld [vmem:[#allocation2 + $0x3b0] sm:$0xff]
    %v191 = vld [vmem:[#allocation2 + $0x3b8] sm:$0xff]
    %v192 = vld [vmem:[#allocation2 + $0x3c0] sm:$0xff]
    %v193 = vld [vmem:[#allocation2 + $0x3c8] sm:$0xff]
    %v194 = vld [vmem:[#allocation2 + $0x3d0] sm:$0xff]
    %v195 = vld [vmem:[#allocation2 + $0x3d8] sm:$0xff]
    %v196 = vld [vmem:[#allocation2 + $0x3e0] sm:$0xff]
    %v197 = vld [vmem:[#allocation2 + $0x3e8] sm:$0xff]
    %v198 = vld [vmem:[#allocation2 + $0x3f0] sm:$0xff]
    %v199 = vld [vmem:[#allocation2 + $0x3f8] sm:$0xff]
    %v200 = vld [vmem:[#allocation2 + $0x400] sm:$0xff]
    %v201 = vld [vmem:[#allocation2 + $0x408] sm:$0xff]
    %v202 = vld [vmem:[#allocation2 + $0x410] sm:$0xff]
    %v203 = vld [vmem:[#allocation2 + $0x418] sm:$0xff]
    %v204 = vld [vmem:[#allocation2 + $0x420] sm:$0xff]
    %v205 = vld [vmem:[#allocation2 + $0x428] sm:$0xff]
    %v206 = vld [vmem:[#allocation2 + $0x430] sm:$0xff]
    %v207 = vld [vmem:[#allocation2 + $0x438] sm:$0xff]
    %v208 = vld [vmem:[#allocation2 + $0x440] sm:$0xff]
    %v209 = vld [vmem:[#allocation2 + $0x448] sm:$0xff]
    %v210 = vld [vmem:[#allocation2 + $0x450] sm:$0xff]
    %v211 = vld [vmem:[#allocation2 + $0x458] sm:$0xff]
    %v212 = vld [vmem:[#allocation2 + $0x460] sm:$0xff]
    %v213 = vld [vmem:[#allocation2 + $0x468] sm:$0xff]
    %v214 = vld [vmem:[#allocation2 + $0x470] sm:$0xff]
    %v215 = vld [vmem:[#allocation2 + $0x478] sm:$0xff]
    %v216 = vld [vmem:[#allocation5] sm:$0x7]
    %v217 = vld [vmem:[%s0] sm:$0x3]
    %v218 = vld [vmem:[%s0 + $0x10] sm:$0x3]
    %v219 = vld [vmem:[%s0 + $0x20] sm:$0x3]
    %v221 = vlaneseq
    %v222 = vshrl.u32 %v221, 7
    %v223 = vsub.s32 0, %v222
    %v224 = vrot.slane %v216, %v223
    %v225 = vlaneseq
    %v226 = vshrl.u32 %v225, 7
    %v227 = vsub.s32 1, %v226
    %v228 = vrot.slane %v216, %v227
    %v229 = vlaneseq
    %v230 = vshrl.u32 %v229, 7
    %v231 = vsub.s32 2, %v230
    %v232 = vrot.slane %v216, %v231
    %236 = vmatprep.subr.mxu0 %v73
    %237 = vmatpush1.msra.mxu0 %v72
    %238 = vmatprep.subr.mxu0 %v76
    %239 = vmatpush1.msra.mxu0 %v75
    %240 = vmatprep.subr.mxu0 %v79
    %241 = vmatpush1.msra.mxu0 %v78
    %242 = vmatprep.subr.mxu0 %v82
    %243 = vmatpush1.msra.mxu0 %v81
    %244 = vmatprep.subr.mxu0 %v85
    %245 = vmatpush1.msra.mxu0 %v84
    %246 = vmatprep.subr.mxu0 %v88
    %247 = vmatpush1.msra.mxu0 %v87
    %248 = vmatprep.subr.mxu0 %v91
    %249 = vmatpush1.msra.mxu0 %v90
    %250 = vmatprep.subr.mxu0 %v94
    %251 = vmatpush1.msra.mxu0 %v93
    %252 = vmatprep.subr.mxu0 %v97
    %253 = vmatpush1.msra.mxu0 %v96
    %254 = vmatprep.subr.mxu0 %v100
    %255 = vmatpush1.msra.mxu0 %v99
    %256 = vmatprep.subr.mxu0 %v103
    %257 = vmatpush1.msra.mxu0 %v102
    %258 = vmatprep.subr.mxu0 %v106
    %259 = vmatpush1.msra.mxu0 %v105
    %260 = vmatprep.subr.mxu0 %v109
    %261 = vmatpush1.msra.mxu0 %v108
    %262 = vmatprep.subr.mxu0 %v112
    %263 = vmatpush1.msra.mxu0 %v111
    %264 = vmatprep.subr.mxu0 %v115
    %265 = vmatpush1.msra.mxu0 %v114
    %266 = vmatprep.subr.mxu0 %v118
    %267 = vmatpush1.msra.mxu0 %v117
    %268 = vmatprep.subr.mxu0 %v121
    %269 = vmatpush1.msra.mxu0 %v120
    %270 = vmatprep.subr.mxu0 %v124
    %271 = vmatpush1.msra.mxu0 %v123
    %272 = vmatprep.subr.mxu0 %v127
    %273 = vmatpush1.msra.mxu0 %v126
    %274 = vmatprep.subr.mxu0 %v130
    %275 = vmatpush1.msra.mxu0 %v129
    %276 = vmatprep.subr.mxu0 %v133
    %277 = vmatpush1.msra.mxu0 %v132
    %278 = vmatprep.subr.mxu0 %v136
    %279 = vmatpush1.msra.mxu0 %v135
    %280 = vmatprep.subr.mxu0 %v139
    %281 = vmatpush1.msra.mxu0 %v138
    %282 = vmatprep.subr.mxu0 %v142
    %283 = vmatpush1.msra.mxu0 %v141
    %284 = vmatprep.subr.mxu0 %v145
    %285 = vmatpush1.msra.mxu0 %v144
    %286 = vmatprep.subr.mxu0 %v148
    %287 = vmatpush1.msra.mxu0 %v147
    %288 = vmatprep.subr.mxu0 %v151
    %289 = vmatpush1.msra.mxu0 %v150
    %290 = vmatprep.subr.mxu0 %v154
    %291 = vmatpush1.msra.mxu0 %v153
    %292 = vmatprep.subr.mxu0 %v157
    %293 = vmatpush1.msra.mxu0 %v156
    %294 = vmatprep.subr.mxu0 %v160
    %295 = vmatpush1.msra.mxu0 %v159
    %296 = vmatprep.subr.mxu0 %v163
    %297 = vmatpush1.msra.mxu0 %v162
    %298 = vmatprep.subr.mxu0 %v166
    %299 = vmatpush1.msra.mxu0 %v165
    %300 = vmatprep.mubr.f32.mxu0 %v218
    %301 = vmatmul.mubr.f32.gmra.mrb[0].mxu0 %v217
    %v302 = vpop.f32.mrb[0].mxu0
    %v303 = vadd.f32 %v224, %v302
    %v304 = vpop.f32.mrb[0].mxu0
    %v305 = vadd.f32 %v228, %v304
    %306 = vdwg.mxu0
    %307 = vmatprep.subr.mxu0 %v169
    %308 = vmatpush1.msra.mxu0 %v168
    %309 = vmatprep.subr.mxu0 %v172
    %310 = vmatpush1.msra.mxu0 %v171
    %311 = vmatprep.subr.mxu0 %v175
    %312 = vmatpush1.msra.mxu0 %v174
    %313 = vmatprep.subr.mxu0 %v178
    %314 = vmatpush1.msra.mxu0 %v177
    %315 = vmatprep.subr.mxu0 %v181
    %316 = vmatpush1.msra.mxu0 %v180
    %317 = vmatprep.subr.mxu0 %v184
    %318 = vmatpush1.msra.mxu0 %v183
    %319 = vmatprep.subr.mxu0 %v187
    %320 = vmatpush1.msra.mxu0 %v186
    %321 = vmatprep.subr.mxu0 %v190
    %322 = vmatpush1.msra.mxu0 %v189
    %323 = vmatprep.subr.mxu0 %v193
    %324 = vmatpush1.msra.mxu0 %v192
    %325 = vmatprep.subr.mxu0 %v196
    %326 = vmatpush1.msra.mxu0 %v195
    %327 = vmatprep.subr.mxu0 %v199
    %328 = vmatpush1.msra.mxu0 %v198
    %329 = vmatprep.subr.mxu0 %v202
    %330 = vmatpush1.msra.mxu0 %v201
    %331 = vmatprep.subr.mxu0 %v205
    %332 = vmatpush1.msra.mxu0 %v204
    %333 = vmatprep.subr.mxu0 %v208
    %334 = vmatpush1.msra.mxu0 %v207
    %335 = vmatprep.subr.mxu0 %v211
    %336 = vmatpush1.msra.mxu0 %v210
    %337 = vmatprep.subr.mxu0 %v214
    %338 = vmatpush1.msra.mxu0 %v213
    %339 = vmatprep.subr.mxu0 0.0
    %340 = vmatpush1.msra.mxu0 0.0
    %341 = vmatprep.subr.mxu0 0.0
    %342 = vmatpush1.msra.mxu0 0.0
    %343 = vmatprep.subr.mxu0 0.0
    %344 = vmatpush1.msra.mxu0 0.0
    %345 = vmatprep.subr.mxu0 0.0
    %346 = vmatpush1.msra.mxu0 0.0
    %347 = vmatprep.subr.mxu0 0.0
    %348 = vmatpush1.msra.mxu0 0.0
    %349 = vmatprep.subr.mxu0 0.0
    %350 = vmatpush1.msra.mxu0 0.0
    %351 = vmatprep.subr.mxu0 0.0
    %352 = vmatpush1.msra.mxu0 0.0
    %353 = vmatprep.subr.mxu0 0.0
    %354 = vmatpush1.msra.mxu0 0.0
    %355 = vmatprep.subr.mxu0 0.0
    %356 = vmatpush1.msra.mxu0 0.0
    %357 = vmatprep.subr.mxu0 0.0
    %358 = vmatpush1.msra.mxu0 0.0
    %359 = vmatprep.subr.mxu0 0.0
    %360 = vmatpush1.msra.mxu0 0.0
    %361 = vmatprep.subr.mxu0 0.0
    %362 = vmatpush1.msra.mxu0 0.0
    %363 = vmatprep.subr.mxu0 0.0
    %364 = vmatpush1.msra.mxu0 0.0
    %365 = vmatprep.subr.mxu0 0.0
    %366 = vmatpush1.msra.mxu0 0.0
    %367 = vmatprep.subr.mxu0 0.0
    %368 = vmatpush1.msra.mxu0 0.0
    %369 = vmatprep.subr.mxu0 0.0
    %370 = vmatpush1.msra.mxu0 0.0
    %371 = vmatprep.mubr.f32.mxu0 0.0
    %372 = vmatmul.mubr.f32.gmra.mrb[0].mxu0 %v219
    %v373 = vpop.f32.mrb[0].mxu0
    %v374 = vadd.f32 %v303, %v373
    %v375 = vpop.f32.mrb[0].mxu0
    %v376 = vadd.f32 %v305, %v375
    %377 = vdwg.mxu0
    %378 = vmatprep.subr.mxu0 0.0
    %379 = vmatpush1.msra.mxu0 %v74
    %380 = vmatprep.subr.mxu0 0.0
    %381 = vmatpush1.msra.mxu0 %v77
    %382 = vmatprep.subr.mxu0 0.0
    %383 = vmatpush1.msra.mxu0 %v80
    %384 = vmatprep.subr.mxu0 0.0
    %385 = vmatpush1.msra.mxu0 %v83
    %386 = vmatprep.subr.mxu0 0.0
    %387 = vmatpush1.msra.mxu0 %v86
    %388 = vmatprep.subr.mxu0 0.0
    %389 = vmatpush1.msra.mxu0 %v89
    %390 = vmatprep.subr.mxu0 0.0
    %391 = vmatpush1.msra.mxu0 %v92
    %392 = vmatprep.subr.mxu0 0.0
    %393 = vmatpush1.msra.mxu0 %v95
    %394 = vmatprep.subr.mxu0 0.0
    %395 = vmatpush1.msra.mxu0 %v98
    %396 = vmatprep.subr.mxu0 0.0
    %397 = vmatpush1.msra.mxu0 %v101
    %398 = vmatprep.subr.mxu0 0.0
    %399 = vmatpush1.msra.mxu0 %v104
    %400 = vmatprep.subr.mxu0 0.0
    %401 = vmatpush1.msra.mxu0 %v107
    %402 = vmatprep.subr.mxu0 0.0
    %403 = vmatpush1.msra.mxu0 %v110
    %404 = vmatprep.subr.mxu0 0.0
    %405 = vmatpush1.msra.mxu0 %v113
    %406 = vmatprep.subr.mxu0 0.0
    %407 = vmatpush1.msra.mxu0 %v116
    %408 = vmatprep.subr.mxu0 0.0
    %409 = vmatpush1.msra.mxu0 %v119
    %410 = vmatprep.subr.mxu0 0.0
    %411 = vmatpush1.msra.mxu0 %v122
    %412 = vmatprep.subr.mxu0 0.0
    %413 = vmatpush1.msra.mxu0 %v125
    %414 = vmatprep.subr.mxu0 0.0
    %415 = vmatpush1.msra.mxu0 %v128
    %416 = vmatprep.subr.mxu0 0.0
    %417 = vmatpush1.msra.mxu0 %v131
    %418 = vmatprep.subr.mxu0 0.0
    %419 = vmatpush1.msra.mxu0 %v134
    %420 = vmatprep.subr.mxu0 0.0
    %421 = vmatpush1.msra.mxu0 %v137
    %422 = vmatprep.subr.mxu0 0.0
    %423 = vmatpush1.msra.mxu0 %v140
    %424 = vmatprep.subr.mxu0 0.0
    %425 = vmatpush1.msra.mxu0 %v143
    %426 = vmatprep.subr.mxu0 0.0
    %427 = vmatpush1.msra.mxu0 %v146
    %428 = vmatprep.subr.mxu0 0.0
    %429 = vmatpush1.msra.mxu0 %v149
    %430 = vmatprep.subr.mxu0 0.0
    %431 = vmatpush1.msra.mxu0 %v152
    %432 = vmatprep.subr.mxu0 0.0
    %433 = vmatpush1.msra.mxu0 %v155
    %434 = vmatprep.subr.mxu0 0.0
    %435 = vmatpush1.msra.mxu0 %v158
    %436 = vmatprep.subr.mxu0 0.0
    %437 = vmatpush1.msra.mxu0 %v161
    %438 = vmatprep.subr.mxu0 0.0
    %439 = vmatpush1.msra.mxu0 %v164
    %440 = vmatprep.subr.mxu0 0.0
    %441 = vmatpush1.msra.mxu0 %v167
    %442 = vmatprep.mubr.f32.mxu0 %v218
    %443 = vmatmul.mubr.f32.gmra.mrb[0].mxu0 %v217
    %v444 = vpop.f32.mrb[0].mxu0
    %v445 = vadd.f32 %v232, %v444
    %v446 = vpop.f32.mrb[0].mxu0
    %447 = vdwg.mxu0
    %448 = vmatprep.subr.mxu0 0.0
    %449 = vmatpush1.msra.mxu0 %v170
    %450 = vmatprep.subr.mxu0 0.0
    %451 = vmatpush1.msra.mxu0 %v173
    %452 = vmatprep.subr.mxu0 0.0
    %453 = vmatpush1.msra.mxu0 %v176
    %454 = vmatprep.subr.mxu0 0.0
    %455 = vmatpush1.msra.mxu0 %v179
    %456 = vmatprep.subr.mxu0 0.0
    %457 = vmatpush1.msra.mxu0 %v182
    %458 = vmatprep.subr.mxu0 0.0
    %459 = vmatpush1.msra.mxu0 %v185
    %460 = vmatprep.subr.mxu0 0.0
    %461 = vmatpush1.msra.mxu0 %v188
    %462 = vmatprep.subr.mxu0 0.0
    %463 = vmatpush1.msra.mxu0 %v191
    %464 = vmatprep.subr.mxu0 0.0
    %465 = vmatpush1.msra.mxu0 %v194
    %466 = vmatprep.subr.mxu0 0.0
    %467 = vmatpush1.msra.mxu0 %v197
    %468 = vmatprep.subr.mxu0 0.0
    %469 = vmatpush1.msra.mxu0 %v200
    %470 = vmatprep.subr.mxu0 0.0
    %471 = vmatpush1.msra.mxu0 %v203
    %472 = vmatprep.subr.mxu0 0.0
    %473 = vmatpush1.msra.mxu0 %v206
    %474 = vmatprep.subr.mxu0 0.0
    %475 = vmatpush1.msra.mxu0 %v209
    %476 = vmatprep.subr.mxu0 0.0
    %477 = vmatpush1.msra.mxu0 %v212
    %478 = vmatprep.subr.mxu0 0.0
    %479 = vmatpush1.msra.mxu0 %v215
    %480 = vmatprep.subr.mxu0 0.0
    %481 = vmatpush1.msra.mxu0 0.0
    %482 = vmatprep.subr.mxu0 0.0
    %483 = vmatpush1.msra.mxu0 0.0
    %484 = vmatprep.subr.mxu0 0.0
    %485 = vmatpush1.msra.mxu0 0.0
    %486 = vmatprep.subr.mxu0 0.0
    %487 = vmatpush1.msra.mxu0 0.0
    %488 = vmatprep.subr.mxu0 0.0
    %489 = vmatpush1.msra.mxu0 0.0
    %490 = vmatprep.subr.mxu0 0.0
    %491 = vmatpush1.msra.mxu0 0.0
    %492 = vmatprep.subr.mxu0 0.0
    %493 = vmatpush1.msra.mxu0 0.0
    %494 = vmatprep.subr.mxu0 0.0
    %495 = vmatpush1.msra.mxu0 0.0
    %496 = vmatprep.subr.mxu0 0.0
    %497 = vmatpush1.msra.mxu0 0.0
    %498 = vmatprep.subr.mxu0 0.0
    %499 = vmatpush1.msra.mxu0 0.0
    %500 = vmatprep.subr.mxu0 0.0
    %501 = vmatpush1.msra.mxu0 0.0
    %502 = vmatprep.subr.mxu0 0.0
    %503 = vmatpush1.msra.mxu0 0.0
    %504 = vmatprep.subr.mxu0 0.0
    %505 = vmatpush1.msra.mxu0 0.0
    %506 = vmatprep.subr.mxu0 0.0
    %507 = vmatpush1.msra.mxu0 0.0
    %508 = vmatprep.subr.mxu0 0.0
    %509 = vmatpush1.msra.mxu0 0.0
    %510 = vmatprep.subr.mxu0 0.0
    %511 = vmatpush1.msra.mxu0 0.0
    %512 = vmatprep.mubr.f32.mxu0 0.0
    %513 = vmatmul.mubr.f32.gmra.mrb[0].mxu0 %v219
    %v514 = vpop.f32.mrb[0].mxu0
    %v515 = vadd.f32 %v445, %v514
    %v516 = vpop.f32.mrb[0].mxu0
    %517 = vdwg.mxu0
    %v518 = vsub.f32 0.0, %v374
    %v519 = vsub.f32 0.0, %v376
    %v520 = vsub.f32 0.0, %v515
    %v521 = vmul.f32 %v518, 1.442695
    %v522 = vpow.pop %v521
    %v523 = vmul.f32 %v519, 1.442695
    %v524 = vpow.pop %v523
    %v525 = vmul.f32 %v520, 1.442695
    %v526 = vpow.pop %v525
    %v527 = vadd.f32 %v522, 1.0
    %v528 = vadd.f32 %v524, 1.0
    %v529 = vadd.f32 %v526, 1.0
    %v530 = vrcp.pop %v527
    %v531 = vmul.f32 1.0, %v530
    %v532 = vrcp.pop %v528
    %v533 = vmul.f32 1.0, %v532
    %v534 = vrcp.pop %v529
    %v535 = vmul.f32 1.0, %v534
    %v536 = vmul.f32 %v374, %v531
    %v537 = vmul.f32 %v376, %v533
    %v538 = vmul.f32 %v515, %v535
    %v539 = vld [vmem:[#allocation7] sm:$0xff]
    %v540 = vld [vmem:[#allocation7 + $0x8] sm:$0xff]
    %v541 = vld [vmem:[#allocation7 + $0x10] sm:$0xff]
    %v542 = vld [vmem:[#allocation7 + $0x18] sm:$0xff]
    %v543 = vld [vmem:[#allocation7 + $0x20] sm:$0xff]
    %v544 = vld [vmem:[#allocation7 + $0x28] sm:$0xff]
    %v545 = vld [vmem:[#allocation7 + $0x30] sm:$0xff]
    %v546 = vld [vmem:[#allocation7 + $0x38] sm:$0xff]
    %v547 = vld [vmem:[#allocation7 + $0x40] sm:$0xff]
    %v548 = vld [vmem:[#allocation7 + $0x48] sm:$0xff]
    %v549 = vld [vmem:[#allocation7 + $0x50] sm:$0xff]
    %v550 = vld [vmem:[#allocation7 + $0x58] sm:$0xff]
    %v551 = vld [vmem:[#allocation7 + $0x60] sm:$0xff]
    %v552 = vld [vmem:[#allocation7 + $0x68] sm:$0xff]
    %v553 = vld [vmem:[#allocation7 + $0x70] sm:$0xff]
    %v554 = vld [vmem:[#allocation7 + $0x78] sm:$0xff]
    %v555 = vld [vmem:[#allocation7 + $0x80] sm:$0xff]
    %v556 = vld [vmem:[#allocation7 + $0x88] sm:$0xff]
    %v557 = vld [vmem:[#allocation7 + $0x90] sm:$0xff]
    %v558 = vld [vmem:[#allocation7 + $0x98] sm:$0xff]
    %v559 = vld [vmem:[#allocation7 + $0xa0] sm:$0xff]
    %v560 = vld [vmem:[#allocation7 + $0xa8] sm:$0xff]
    %v561 = vld [vmem:[#allocation7 + $0xb0] sm:$0xff]
    %v562 = vld [vmem:[#allocation7 + $0xb8] sm:$0xff]
    %v563 = vld [vmem:[#allocation7 + $0xc0] sm:$0xff]
    %v564 = vld [vmem:[#allocation7 + $0xc8] sm:$0xff]
    %v565 = vld [vmem:[#allocation7 + $0xd0] sm:$0xff]
    %v566 = vld [vmem:[#allocation7 + $0xd8] sm:$0xff]
    %v567 = vld [vmem:[#allocation7 + $0xe0] sm:$0xff]
    %v568 = vld [vmem:[#allocation7 + $0xe8] sm:$0xff]
    %v569 = vld [vmem:[#allocation7 + $0xf0] sm:$0xff]
    %v570 = vld [vmem:[#allocation7 + $0xf8] sm:$0xff]
    %v571 = vld [vmem:[#allocation7 + $0x100] sm:$0xff]
    %v572 = vld [vmem:[#allocation7 + $0x108] sm:$0xff]
    %v573 = vld [vmem:[#allocation7 + $0x110] sm:$0xff]
    %v574 = vld [vmem:[#allocation7 + $0x118] sm:$0xff]
    %v575 = vld [vmem:[#allocation7 + $0x120] sm:$0xff]
    %v576 = vld [vmem:[#allocation7 + $0x128] sm:$0xff]
    %v577 = vld [vmem:[#allocation7 + $0x130] sm:$0xff]
    %v578 = vld [vmem:[#allocation7 + $0x138] sm:$0xff]
    %v579 = vld [vmem:[#allocation7 + $0x140] sm:$0xff]
    %v580 = vld [vmem:[#allocation7 + $0x148] sm:$0xff]
    %v581 = vld [vmem:[#allocation7 + $0x150] sm:$0xff]
    %v582 = vld [vmem:[#allocation7 + $0x158] sm:$0xff]
    %v583 = vld [vmem:[#allocation7 + $0x160] sm:$0xff]
    %v584 = vld [vmem:[#allocation7 + $0x168] sm:$0xff]
    %v585 = vld [vmem:[#allocation7 + $0x170] sm:$0xff]
    %v586 = vld [vmem:[#allocation7 + $0x178] sm:$0xff]
    %v587 = vld [vmem:[%s0 + $0x2] sm:$0x3]
    %v588 = vld [vmem:[%s0 + $0x12] sm:$0x3]
    %v589 = vld [vmem:[%s0 + $0x22] sm:$0x3]
    %590 = vmatprep.subr.mxu0 %v73
    %591 = vmatpush1.msra.mxu0 %v72
    %592 = vmatprep.subr.mxu0 %v76
    %593 = vmatpush1.msra.mxu0 %v75
    %594 = vmatprep.subr.mxu0 %v79
    %595 = vmatpush1.msra.mxu0 %v78
    %596 = vmatprep.subr.mxu0 %v82
    %597 = vmatpush1.msra.mxu0 %v81
    %598 = vmatprep.subr.mxu0 %v85
    %599 = vmatpush1.msra.mxu0 %v84
    %600 = vmatprep.subr.mxu0 %v88
    %601 = vmatpush1.msra.mxu0 %v87
    %602 = vmatprep.subr.mxu0 %v91
    %603 = vmatpush1.msra.mxu0 %v90
    %604 = vmatprep.subr.mxu0 %v94
    %605 = vmatpush1.msra.mxu0 %v93
    %606 = vmatprep.subr.mxu0 %v97
    %607 = vmatpush1.msra.mxu0 %v96
    %608 = vmatprep.subr.mxu0 %v100
    %609 = vmatpush1.msra.mxu0 %v99
    %610 = vmatprep.subr.mxu0 %v103
    %611 = vmatpush1.msra.mxu0 %v102
    %612 = vmatprep.subr.mxu0 %v106
    %613 = vmatpush1.msra.mxu0 %v105
    %614 = vmatprep.subr.mxu0 %v109
    %615 = vmatpush1.msra.mxu0 %v108
    %616 = vmatprep.subr.mxu0 %v112
    %617 = vmatpush1.msra.mxu0 %v111
    %618 = vmatprep.subr.mxu0 %v115
    %619 = vmatpush1.msra.mxu0 %v114
    %620 = vmatprep.subr.mxu0 %v118
    %621 = vmatpush1.msra.mxu0 %v117
    %622 = vmatprep.subr.mxu0 %v121
    %623 = vmatpush1.msra.mxu0 %v120
    %624 = vmatprep.subr.mxu0 %v124
    %625 = vmatpush1.msra.mxu0 %v123
    %626 = vmatprep.subr.mxu0 %v127
    %627 = vmatpush1.msra.mxu0 %v126
    %628 = vmatprep.subr.mxu0 %v130
    %629 = vmatpush1.msra.mxu0 %v129
    %630 = vmatprep.subr.mxu0 %v133
    %631 = vmatpush1.msra.mxu0 %v132
    %632 = vmatprep.subr.mxu0 %v136
    %633 = vmatpush1.msra.mxu0 %v135
    %634 = vmatprep.subr.mxu0 %v139
    %635 = vmatpush1.msra.mxu0 %v138
    %636 = vmatprep.subr.mxu0 %v142
    %637 = vmatpush1.msra.mxu0 %v141
    %638 = vmatprep.subr.mxu0 %v145
    %639 = vmatpush1.msra.mxu0 %v144
    %640 = vmatprep.subr.mxu0 %v148
    %641 = vmatpush1.msra.mxu0 %v147
    %642 = vmatprep.subr.mxu0 %v151
    %643 = vmatpush1.msra.mxu0 %v150
    %644 = vmatprep.subr.mxu0 %v154
    %645 = vmatpush1.msra.mxu0 %v153
    %646 = vmatprep.subr.mxu0 %v157
    %647 = vmatpush1.msra.mxu0 %v156
    %648 = vmatprep.subr.mxu0 %v160
    %649 = vmatpush1.msra.mxu0 %v159
    %650 = vmatprep.subr.mxu0 %v163
    %651 = vmatpush1.msra.mxu0 %v162
    %652 = vmatprep.subr.mxu0 %v166
    %653 = vmatpush1.msra.mxu0 %v165
    %654 = vmatprep.mubr.f32.mxu0 %v588
    %655 = vmatmul.mubr.f32.gmra.mrb[0].mxu0 %v587
    %v656 = vpop.f32.mrb[0].mxu0
    %v657 = vadd.f32 %v224, %v656
    %v658 = vpop.f32.mrb[0].mxu0
    %v659 = vadd.f32 %v228, %v658
    %660 = vdwg.mxu0
    %661 = vmatprep.subr.mxu0 %v169
    %662 = vmatpush1.msra.mxu0 %v168
    %663 = vmatprep.subr.mxu0 %v172
    %664 = vmatpush1.msra.mxu0 %v171
    %665 = vmatprep.subr.mxu0 %v175
    %666 = vmatpush1.msra.mxu0 %v174
    %667 = vmatprep.subr.mxu0 %v178
    %668 = vmatpush1.msra.mxu0 %v177
    %669 = vmatprep.subr.mxu0 %v181
    %670 = vmatpush1.msra.mxu0 %v180
    %671 = vmatprep.subr.mxu0 %v184
    %672 = vmatpush1.msra.mxu0 %v183
    %673 = vmatprep.subr.mxu0 %v187
    %674 = vmatpush1.msra.mxu0 %v186
    %675 = vmatprep.subr.mxu0 %v190
    %676 = vmatpush1.msra.mxu0 %v189
    %677 = vmatprep.subr.mxu0 %v193
    %678 = vmatpush1.msra.mxu0 %v192
    %679 = vmatprep.subr.mxu0 %v196
    %680 = vmatpush1.msra.mxu0 %v195
    %681 = vmatprep.subr.mxu0 %v199
    %682 = vmatpush1.msra.mxu0 %v198
    %683 = vmatprep.subr.mxu0 %v202
    %684 = vmatpush1.msra.mxu0 %v201
    %685 = vmatprep.subr.mxu0 %v205
    %686 = vmatpush1.msra.mxu0 %v204
    %687 = vmatprep.subr.mxu0 %v208
    %688 = vmatpush1.msra.mxu0 %v207
    %689 = vmatprep.subr.mxu0 %v211
    %690 = vmatpush1.msra.mxu0 %v210
    %691 = vmatprep.subr.mxu0 %v214
    %692 = vmatpush1.msra.mxu0 %v213
    %693 = vmatprep.subr.mxu0 0.0
    %694 = vmatpush1.msra.mxu0 0.0
    %695 = vmatprep.subr.mxu0 0.0
    %696 = vmatpush1.msra.mxu0 0.0
    %697 = vmatprep.subr.mxu0 0.0
    %698 = vmatpush1.msra.mxu0 0.0
    %699 = vmatprep.subr.mxu0 0.0
    %700 = vmatpush1.msra.mxu0 0.0
    %701 = vmatprep.subr.mxu0 0.0
    %702 = vmatpush1.msra.mxu0 0.0
    %703 = vmatprep.subr.mxu0 0.0
    %704 = vmatpush1.msra.mxu0 0.0
    %705 = vmatprep.subr.mxu0 0.0
    %706 = vmatpush1.msra.mxu0 0.0
    %707 = vmatprep.subr.mxu0 0.0
    %708 = vmatpush1.msra.mxu0 0.0
    %709 = vmatprep.subr.mxu0 0.0
    %710 = vmatpush1.msra.mxu0 0.0
    %711 = vmatprep.subr.mxu0 0.0
    %712 = vmatpush1.msra.mxu0 0.0
    %713 = vmatprep.subr.mxu0 0.0
    %714 = vmatpush1.msra.mxu0 0.0
    %715 = vmatprep.subr.mxu0 0.0
    %716 = vmatpush1.msra.mxu0 0.0
    %717 = vmatprep.subr.mxu0 0.0
    %718 = vmatpush1.msra.mxu0 0.0
    %719 = vmatprep.subr.mxu0 0.0
    %720 = vmatpush1.msra.mxu0 0.0
    %721 = vmatprep.subr.mxu0 0.0
    %722 = vmatpush1.msra.mxu0 0.0
    %723 = vmatprep.subr.mxu0 0.0
    %724 = vmatpush1.msra.mxu0 0.0
    %725 = vmatprep.mubr.f32.mxu0 0.0
    %726 = vmatmul.mubr.f32.gmra.mrb[0].mxu0 %v589
    %v727 = vpop.f32.mrb[0].mxu0
    %v728 = vadd.f32 %v657, %v727
    %v729 = vpop.f32.mrb[0].mxu0
    %v730 = vadd.f32 %v659, %v729
    %731 = vdwg.mxu0
    %732 = vmatprep.subr.mxu0 0.0
    %733 = vmatpush1.msra.mxu0 %v74
    %734 = vmatprep.subr.mxu0 0.0
    %735 = vmatpush1.msra.mxu0 %v77
    %736 = vmatprep.subr.mxu0 0.0
    %737 = vmatpush1.msra.mxu0 %v80
    %738 = vmatprep.subr.mxu0 0.0
    %739 = vmatpush1.msra.mxu0 %v83
    %740 = vmatprep.subr.mxu0 0.0
    %741 = vmatpush1.msra.mxu0 %v86
    %742 = vmatprep.subr.mxu0 0.0
    %743 = vmatpush1.msra.mxu0 %v89
    %744 = vmatprep.subr.mxu0 0.0
    %745 = vmatpush1.msra.mxu0 %v92
    %746 = vmatprep.subr.mxu0 0.0
    %747 = vmatpush1.msra.mxu0 %v95
    %748 = vmatprep.subr.mxu0 0.0
    %749 = vmatpush1.msra.mxu0 %v98
    %750 = vmatprep.subr.mxu0 0.0
    %751 = vmatpush1.msra.mxu0 %v101
    %752 = vmatprep.subr.mxu0 0.0
    %753 = vmatpush1.msra.mxu0 %v104
    %754 = vmatprep.subr.mxu0 0.0
    %755 = vmatpush1.msra.mxu0 %v107
    %756 = vmatprep.subr.mxu0 0.0
    %757 = vmatpush1.msra.mxu0 %v110
    %758 = vmatprep.subr.mxu0 0.0
    %759 = vmatpush1.msra.mxu0 %v113
    %760 = vmatprep.subr.mxu0 0.0
    %761 = vmatpush1.msra.mxu0 %v116
    %762 = vmatprep.subr.mxu0 0.0
    %763 = vmatpush1.msra.mxu0 %v119
    %764 = vmatprep.subr.mxu0 0.0
    %765 = vmatpush1.msra.mxu0 %v122
    %766 = vmatprep.subr.mxu0 0.0
    %767 = vmatpush1.msra.mxu0 %v125
    %768 = vmatprep.subr.mxu0 0.0
    %769 = vmatpush1.msra.mxu0 %v128
    %770 = vmatprep.subr.mxu0 0.0
    %771 = vmatpush1.msra.mxu0 %v131
    %772 = vmatprep.subr.mxu0 0.0
    %773 = vmatpush1.msra.mxu0 %v134
    %774 = vmatprep.subr.mxu0 0.0
    %775 = vmatpush1.msra.mxu0 %v137
    %776 = vmatprep.subr.mxu0 0.0
    %777 = vmatpush1.msra.mxu0 %v140
    %778 = vmatprep.subr.mxu0 0.0
    %779 = vmatpush1.msra.mxu0 %v143
    %780 = vmatprep.subr.mxu0 0.0
    %781 = vmatpush1.msra.mxu0 %v146
    %782 = vmatprep.subr.mxu0 0.0
    %783 = vmatpush1.msra.mxu0 %v149
    %784 = vmatprep.subr.mxu0 0.0
    %785 = vmatpush1.msra.mxu0 %v152
    %786 = vmatprep.subr.mxu0 0.0
    %787 = vmatpush1.msra.mxu0 %v155
    %788 = vmatprep.subr.mxu0 0.0
    %789 = vmatpush1.msra.mxu0 %v158
    %790 = vmatprep.subr.mxu0 0.0
    %791 = vmatpush1.msra.mxu0 %v161
    %792 = vmatprep.subr.mxu0 0.0
    %793 = vmatpush1.msra.mxu0 %v164
    %794 = vmatprep.subr.mxu0 0.0
    %795 = vmatpush1.msra.mxu0 %v167
    %796 = vmatprep.mubr.f32.mxu0 %v588
    %797 = vmatmul.mubr.f32.gmra.mrb[0].mxu0 %v587
    %v798 = vpop.f32.mrb[0].mxu0
    %v799 = vadd.f32 %v232, %v798
    %v800 = vpop.f32.mrb[0].mxu0
    %801 = vdwg.mxu0
    %802 = vmatprep.subr.mxu0 0.0
    %803 = vmatpush1.msra.mxu0 %v170
    %804 = vmatprep.subr.mxu0 0.0
    %805 = vmatpush1.msra.mxu0 %v173
    %806 = vmatprep.subr.mxu0 0.0
    %807 = vmatpush1.msra.mxu0 %v176
    %808 = vmatprep.subr.mxu0 0.0
    %809 = vmatpush1.msra.mxu0 %v179
    %810 = vmatprep.subr.mxu0 0.0
    %811 = vmatpush1.msra.mxu0 %v182
    %812 = vmatprep.subr.mxu0 0.0
    %813 = vmatpush1.msra.mxu0 %v185
    %814 = vmatprep.subr.mxu0 0.0
    %815 = vmatpush1.msra.mxu0 %v188
    %816 = vmatprep.subr.mxu0 0.0
    %817 = vmatpush1.msra.mxu0 %v191
    %818 = vmatprep.subr.mxu0 0.0
    %819 = vmatpush1.msra.mxu0 %v194
    %820 = vmatprep.subr.mxu0 0.0
    %821 = vmatpush1.msra.mxu0 %v197
    %822 = vmatprep.subr.mxu0 0.0
    %823 = vmatpush1.msra.mxu0 %v200
    %824 = vmatprep.subr.mxu0 0.0
    %825 = vmatpush1.msra.mxu0 %v203
    %826 = vmatprep.subr.mxu0 0.0
    %827 = vmatpush1.msra.mxu0 %v206
    %828 = vmatprep.subr.mxu0 0.0
    %829 = vmatpush1.msra.mxu0 %v209
    %830 = vmatprep.subr.mxu0 0.0
    %831 = vmatpush1.msra.mxu0 %v212
    %832 = vmatprep.subr.mxu0 0.0
    %833 = vmatpush1.msra.mxu0 %v215
    %834 = vmatprep.subr.mxu0 0.0
    %835 = vmatpush1.msra.mxu0 0.0
    %836 = vmatprep.subr.mxu0 0.0
    %837 = vmatpush1.msra.mxu0 0.0
    %838 = vmatprep.subr.mxu0 0.0
    %839 = vmatpush1.msra.mxu0 0.0
    %840 = vmatprep.subr.mxu0 0.0
    %841 = vmatpush1.msra.mxu0 0.0
    %842 = vmatprep.subr.mxu0 0.0
    %843 = vmatpush1.msra.mxu0 0.0
    %844 = vmatprep.subr.mxu0 0.0
    %845 = vmatpush1.msra.mxu0 0.0
    %846 = vmatprep.subr.mxu0 0.0
    %847 = vmatpush1.msra.mxu0 0.0
    %848 = vmatprep.subr.mxu0 0.0
    %849 = vmatpush1.msra.mxu0 0.0
    %850 = vmatprep.subr.mxu0 0.0
    %851 = vmatpush1.msra.mxu0 0.0
    %852 = vmatprep.subr.mxu0 0.0
    %853 = vmatpush1.msra.mxu0 0.0
    %854 = vmatprep.subr.mxu0 0.0
    %855 = vmatpush1.msra.mxu0 0.0
    %856 = vmatprep.subr.mxu0 0.0
    %857 = vmatpush1.msra.mxu0 0.0
    %858 = vmatprep.subr.mxu0 0.0
    %859 = vmatpush1.msra.mxu0 0.0
    %860 = vmatprep.subr.mxu0 0.0
    %861 = vmatpush1.msra.mxu0 0.0
    %862 = vmatprep.subr.mxu0 0.0
    %863 = vmatpush1.msra.mxu0 0.0
    %864 = vmatprep.subr.mxu0 0.0
    %865 = vmatpush1.msra.mxu0 0.0
    %866 = vmatprep.mubr.f32.mxu0 0.0
    %867 = vmatmul.mubr.f32.gmra.mrb[0].mxu0 %v589
    %v868 = vpop.f32.mrb[0].mxu0
    %v869 = vadd.f32 %v799, %v868
    %v870 = vpop.f32.mrb[0].mxu0
    %871 = vdwg.mxu0
    %v872 = vsub.f32 0.0, %v728
    %v873 = vsub.f32 0.0, %v730
    %v874 = vsub.f32 0.0, %v869
    %v875 = vmul.f32 %v872, 1.442695
    %v876 = vpow.pop %v875
    %v877 = vmul.f32 %v873, 1.442695
    %v878 = vpow.pop %v877
    %v879 = vmul.f32 %v874, 1.442695
    %v880 = vpow.pop %v879
    %v881 = vadd.f32 %v876, 1.0
    %v882 = vadd.f32 %v878, 1.0
    %v883 = vadd.f32 %v880, 1.0
    %v884 = vrcp.pop %v881
    %v885 = vmul.f32 1.0, %v884
    %v886 = vrcp.pop %v882
    %v887 = vmul.f32 1.0, %v886
    %v888 = vrcp.pop %v883
    %v889 = vmul.f32 1.0, %v888
    %v890 = vmul.f32 %v728, %v885
    %v891 = vmul.f32 %v730, %v887
    %v892 = vmul.f32 %v869, %v889
    %s893 = scalar_lea.vmem [#allocation7], 384
    %v894 = vld [vmem:[%s893] sm:$0xff]
    %v895 = vld [vmem:[%s893 + $0x8] sm:$0xff]
    %v896 = vld [vmem:[%s893 + $0x10] sm:$0xff]
    %v897 = vld [vmem:[%s893 + $0x18] sm:$0xff]
    %v898 = vld [vmem:[%s893 + $0x20] sm:$0xff]
    %v899 = vld [vmem:[%s893 + $0x28] sm:$0xff]
    %v900 = vld [vmem:[%s893 + $0x30] sm:$0xff]
    %v901 = vld [vmem:[%s893 + $0x38] sm:$0xff]
    %v902 = vld [vmem:[%s893 + $0x40] sm:$0xff]
    %v903 = vld [vmem:[%s893 + $0x48] sm:$0xff]
    %v904 = vld [vmem:[%s893 + $0x50] sm:$0xff]
    %v905 = vld [vmem:[%s893 + $0x58] sm:$0xff]
    %v906 = vld [vmem:[%s893 + $0x60] sm:$0xff]
    %v907 = vld [vmem:[%s893 + $0x68] sm:$0xff]
    %v908 = vld [vmem:[%s893 + $0x70] sm:$0xff]
    %v909 = vld [vmem:[%s893 + $0x78] sm:$0xff]
    %v910 = vld [vmem:[%s893 + $0x80] sm:$0xff]
    %v911 = vld [vmem:[%s893 + $0x88] sm:$0xff]
    %v912 = vld [vmem:[%s893 + $0x90] sm:$0xff]
    %v913 = vld [vmem:[%s893 + $0x98] sm:$0xff]
    %v914 = vld [vmem:[%s893 + $0xa0] sm:$0xff]
    %v915 = vld [vmem:[%s893 + $0xa8] sm:$0xff]
    %v916 = vld [vmem:[%s893 + $0xb0] sm:$0xff]
    %v917 = vld [vmem:[%s893 + $0xb8] sm:$0xff]
    %v918 = vld [vmem:[%s893 + $0xc0] sm:$0xff]
    %v919 = vld [vmem:[%s893 + $0xc8] sm:$0xff]
    %v920 = vld [vmem:[%s893 + $0xd0] sm:$0xff]
    %v921 = vld [vmem:[%s893 + $0xd8] sm:$0xff]
    %v922 = vld [vmem:[%s893 + $0xe0] sm:$0xff]
    %v923 = vld [vmem:[%s893 + $0xe8] sm:$0xff]
    %v924 = vld [vmem:[%s893 + $0xf0] sm:$0xff]
    %v925 = vld [vmem:[%s893 + $0xf8] sm:$0xff]
    %v926 = vld [vmem:[%s893 + $0x100] sm:$0xff]
    %v927 = vld [vmem:[%s893 + $0x108] sm:$0xff]
    %v928 = vld [vmem:[%s893 + $0x110] sm:$0xff]
    %v929 = vld [vmem:[%s893 + $0x118] sm:$0xff]
    %v930 = vld [vmem:[%s893 + $0x120] sm:$0xff]
    %v931 = vld [vmem:[%s893 + $0x128] sm:$0xff]
    %v932 = vld [vmem:[%s893 + $0x130] sm:$0xff]
    %v933 = vld [vmem:[%s893 + $0x138] sm:$0xff]
    %v934 = vld [vmem:[%s893 + $0x140] sm:$0xff]
    %v935 = vld [vmem:[%s893 + $0x148] sm:$0xff]
    %v936 = vld [vmem:[%s893 + $0x150] sm:$0xff]
    %v937 = vld [vmem:[%s893 + $0x158] sm:$0xff]
    %v938 = vld [vmem:[%s893 + $0x160] sm:$0xff]
    %v939 = vld [vmem:[%s893 + $0x168] sm:$0xff]
    %v940 = vld [vmem:[%s893 + $0x170] sm:$0xff]
    %v941 = vld [vmem:[%s893 + $0x178] sm:$0xff]
    %942 = vmatprep.subr.mxu0 0.0
    %943 = vmatpush1.msra.mxu0 %v894
    %944 = vmatprep.subr.mxu0 0.0
    %945 = vmatpush1.msra.mxu0 %v895
    %946 = vmatprep.subr.mxu0 0.0
    %947 = vmatpush1.msra.mxu0 %v896
    %948 = vmatprep.subr.mxu0 0.0
    %949 = vmatpush1.msra.mxu0 %v897
    %950 = vmatprep.subr.mxu0 0.0
    %951 = vmatpush1.msra.mxu0 %v898
    %952 = vmatprep.subr.mxu0 0.0
    %953 = vmatpush1.msra.mxu0 %v899
    %954 = vmatprep.subr.mxu0 0.0
    %955 = vmatpush1.msra.mxu0 %v900
    %956 = vmatprep.subr.mxu0 0.0
    %957 = vmatpush1.msra.mxu0 %v901
    %958 = vmatprep.subr.mxu0 0.0
    %959 = vmatpush1.msra.mxu0 %v902
    %960 = vmatprep.subr.mxu0 0.0
    %961 = vmatpush1.msra.mxu0 %v903
    %962 = vmatprep.subr.mxu0 0.0
    %963 = vmatpush1.msra.mxu0 %v904
    %964 = vmatprep.subr.mxu0 0.0
    %965 = vmatpush1.msra.mxu0 %v905
    %966 = vmatprep.subr.mxu0 0.0
    %967 = vmatpush1.msra.mxu0 %v906
    %968 = vmatprep.subr.mxu0 0.0
    %969 = vmatpush1.msra.mxu0 %v907
    %970 = vmatprep.subr.mxu0 0.0
    %971 = vmatpush1.msra.mxu0 %v908
    %972 = vmatprep.subr.mxu0 0.0
    %973 = vmatpush1.msra.mxu0 %v909
    %974 = vmatprep.subr.mxu0 0.0
    %975 = vmatpush1.msra.mxu0 %v910
    %976 = vmatprep.subr.mxu0 0.0
    %977 = vmatpush1.msra.mxu0 %v911
    %978 = vmatprep.subr.mxu0 0.0
    %979 = vmatpush1.msra.mxu0 %v912
    %980 = vmatprep.subr.mxu0 0.0
    %981 = vmatpush1.msra.mxu0 %v913
    %982 = vmatprep.subr.mxu0 0.0
    %983 = vmatpush1.msra.mxu0 %v914
    %984 = vmatprep.subr.mxu0 0.0
    %985 = vmatpush1.msra.mxu0 %v915
    %986 = vmatprep.subr.mxu0 0.0
    %987 = vmatpush1.msra.mxu0 %v916
    %988 = vmatprep.subr.mxu0 0.0
    %989 = vmatpush1.msra.mxu0 %v917
    %990 = vmatprep.subr.mxu0 0.0
    %991 = vmatpush1.msra.mxu0 %v918
    %992 = vmatprep.subr.mxu0 0.0
    %993 = vmatpush1.msra.mxu0 %v919
    %994 = vmatprep.subr.mxu0 0.0
    %995 = vmatpush1.msra.mxu0 %v920
    %996 = vmatprep.subr.mxu0 0.0
    %997 = vmatpush1.msra.mxu0 %v921
    %998 = vmatprep.subr.mxu0 0.0
    %999 = vmatpush1.msra.mxu0 %v922
    %1000 = vmatprep.subr.mxu0 0.0
    %1001 = vmatpush1.msra.mxu0 %v923
    %1002 = vmatprep.subr.mxu0 0.0
    %1003 = vmatpush1.msra.mxu0 %v924
    %1004 = vmatprep.subr.mxu0 0.0
    %1005 = vmatpush1.msra.mxu0 %v925
    %1006 = vmatprep.mubr.f32.mxu0 %v891
    %1007 = vmatmul.mubr.f32.gmra.mrb[0].mxu0 %v890
    %v1008 = vpop.f32.mrb[0].mxu0
    %v1009 = vadd.f32 0.0, %v1008
    %v1010 = vpop.f32.mrb[0].mxu0
    %1011 = vdwg.mxu0
    %1012 = vmatprep.subr.mxu0 0.0
    %1013 = vmatpush1.msra.mxu0 %v926
    %1014 = vmatprep.subr.mxu0 0.0
    %1015 = vmatpush1.msra.mxu0 %v927
    %1016 = vmatprep.subr.mxu0 0.0
    %1017 = vmatpush1.msra.mxu0 %v928
    %1018 = vmatprep.subr.mxu0 0.0
    %1019 = vmatpush1.msra.mxu0 %v929
    %1020 = vmatprep.subr.mxu0 0.0
    %1021 = vmatpush1.msra.mxu0 %v930
    %1022 = vmatprep.subr.mxu0 0.0
    %1023 = vmatpush1.msra.mxu0 %v931
    %1024 = vmatprep.subr.mxu0 0.0
    %1025 = vmatpush1.msra.mxu0 %v932
    %1026 = vmatprep.subr.mxu0 0.0
    %1027 = vmatpush1.msra.mxu0 %v933
    %1028 = vmatprep.subr.mxu0 0.0
    %1029 = vmatpush1.msra.mxu0 %v934
    %1030 = vmatprep.subr.mxu0 0.0
    %1031 = vmatpush1.msra.mxu0 %v935
    %1032 = vmatprep.subr.mxu0 0.0
    %1033 = vmatpush1.msra.mxu0 %v936
    %1034 = vmatprep.subr.mxu0 0.0
    %1035 = vmatpush1.msra.mxu0 %v937
    %1036 = vmatprep.subr.mxu0 0.0
    %1037 = vmatpush1.msra.mxu0 %v938
    %1038 = vmatprep.subr.mxu0 0.0
    %1039 = vmatpush1.msra.mxu0 %v939
    %1040 = vmatprep.subr.mxu0 0.0
    %1041 = vmatpush1.msra.mxu0 %v940
    %1042 = vmatprep.subr.mxu0 0.0
    %1043 = vmatpush1.msra.mxu0 %v941
    %1044 = vmatprep.subr.mxu0 0.0
    %1045 = vmatpush1.msra.mxu0 0.0
    %1046 = vmatprep.subr.mxu0 0.0
    %1047 = vmatpush1.msra.mxu0 0.0
    %1048 = vmatprep.subr.mxu0 0.0
    %1049 = vmatpush1.msra.mxu0 0.0
    %1050 = vmatprep.subr.mxu0 0.0
    %1051 = vmatpush1.msra.mxu0 0.0
    %1052 = vmatprep.subr.mxu0 0.0
    %1053 = vmatpush1.msra.mxu0 0.0
    %1054 = vmatprep.subr.mxu0 0.0
    %1055 = vmatpush1.msra.mxu0 0.0
    %1056 = vmatprep.subr.mxu0 0.0
    %1057 = vmatpush1.msra.mxu0 0.0
    %1058 = vmatprep.subr.mxu0 0.0
    %1059 = vmatpush1.msra.mxu0 0.0
    %1060 = vmatprep.subr.mxu0 0.0
    %1061 = vmatpush1.msra.mxu0 0.0
    %1062 = vmatprep.subr.mxu0 0.0
    %1063 = vmatpush1.msra.mxu0 0.0
    %1064 = vmatprep.subr.mxu0 0.0
    %1065 = vmatpush1.msra.mxu0 0.0
    %1066 = vmatprep.subr.mxu0 0.0
    %1067 = vmatpush1.msra.mxu0 0.0
    %1068 = vmatprep.subr.mxu0 0.0
    %1069 = vmatpush1.msra.mxu0 0.0
    %1070 = vmatprep.subr.mxu0 0.0
    %1071 = vmatpush1.msra.mxu0 0.0
    %1072 = vmatprep.subr.mxu0 0.0
    %1073 = vmatpush1.msra.mxu0 0.0
    %1074 = vmatprep.subr.mxu0 0.0
    %1075 = vmatpush1.msra.mxu0 0.0
    %1076 = vmatprep.mubr.f32.mxu0 0.0
    %1077 = vmatmul.mubr.f32.gmra.mrb[0].mxu0 %v892
    %v1078 = vpop.f32.mrb[0].mxu0
    %v1079 = vadd.f32 %v1009, %v1078
    %v1080 = vpop.f32.mrb[0].mxu0
    %1081 = vdwg.mxu0
    %1082 = vmatprep.subr.mxu0 0.0
    %1083 = vmatpush1.msra.mxu0 %v539
    %1084 = vmatprep.subr.mxu0 0.0
    %1085 = vmatpush1.msra.mxu0 %v540
    %1086 = vmatprep.subr.mxu0 0.0
    %1087 = vmatpush1.msra.mxu0 %v541
    %1088 = vmatprep.subr.mxu0 0.0
    %1089 = vmatpush1.msra.mxu0 %v542
    %1090 = vmatprep.subr.mxu0 0.0
    %1091 = vmatpush1.msra.mxu0 %v543
    %1092 = vmatprep.subr.mxu0 0.0
    %1093 = vmatpush1.msra.mxu0 %v544
    %1094 = vmatprep.subr.mxu0 0.0
    %1095 = vmatpush1.msra.mxu0 %v545
    %1096 = vmatprep.subr.mxu0 0.0
    %1097 = vmatpush1.msra.mxu0 %v546
    %1098 = vmatprep.subr.mxu0 0.0
    %1099 = vmatpush1.msra.mxu0 %v547
    %1100 = vmatprep.subr.mxu0 0.0
    %1101 = vmatpush1.msra.mxu0 %v548
    %1102 = vmatprep.subr.mxu0 0.0
    %1103 = vmatpush1.msra.mxu0 %v549
    %1104 = vmatprep.subr.mxu0 0.0
    %1105 = vmatpush1.msra.mxu0 %v550
    %1106 = vmatprep.subr.mxu0 0.0
    %1107 = vmatpush1.msra.mxu0 %v551
    %1108 = vmatprep.subr.mxu0 0.0
    %1109 = vmatpush1.msra.mxu0 %v552
    %1110 = vmatprep.subr.mxu0 0.0
    %1111 = vmatpush1.msra.mxu0 %v553
    %1112 = vmatprep.subr.mxu0 0.0
    %1113 = vmatpush1.msra.mxu0 %v554
    %1114 = vmatprep.subr.mxu0 0.0
    %1115 = vmatpush1.msra.mxu0 %v555
    %1116 = vmatprep.subr.mxu0 0.0
    %1117 = vmatpush1.msra.mxu0 %v556
    %1118 = vmatprep.subr.mxu0 0.0
    %1119 = vmatpush1.msra.mxu0 %v557
    %1120 = vmatprep.subr.mxu0 0.0
    %1121 = vmatpush1.msra.mxu0 %v558
    %1122 = vmatprep.subr.mxu0 0.0
    %1123 = vmatpush1.msra.mxu0 %v559
    %1124 = vmatprep.subr.mxu0 0.0
    %1125 = vmatpush1.msra.mxu0 %v560
    %1126 = vmatprep.subr.mxu0 0.0
    %1127 = vmatpush1.msra.mxu0 %v561
    %1128 = vmatprep.subr.mxu0 0.0
    %1129 = vmatpush1.msra.mxu0 %v562
    %1130 = vmatprep.subr.mxu0 0.0
    %1131 = vmatpush1.msra.mxu0 %v563
    %1132 = vmatprep.subr.mxu0 0.0
    %1133 = vmatpush1.msra.mxu0 %v564
    %1134 = vmatprep.subr.mxu0 0.0
    %1135 = vmatpush1.msra.mxu0 %v565
    %1136 = vmatprep.subr.mxu0 0.0
    %1137 = vmatpush1.msra.mxu0 %v566
    %1138 = vmatprep.subr.mxu0 0.0
    %1139 = vmatpush1.msra.mxu0 %v567
    %1140 = vmatprep.subr.mxu0 0.0
    %1141 = vmatpush1.msra.mxu0 %v568
    %1142 = vmatprep.subr.mxu0 0.0
    %1143 = vmatpush1.msra.mxu0 %v569
    %1144 = vmatprep.subr.mxu0 0.0
    %1145 = vmatpush1.msra.mxu0 %v570
    %1146 = vmatprep.mubr.f32.mxu0 %v537
    %1147 = vmatmul.mubr.f32.gmra.mrb[0].mxu0 %v536
    %v1148 = vpop.f32.mrb[0].mxu0
    %v1149 = vadd.f32 %v1079, %v1148
    %v1150 = vpop.f32.mrb[0].mxu0
    %1151 = vdwg.mxu0
    %1152 = vmatprep.subr.mxu0 0.0
    %1153 = vmatpush1.msra.mxu0 %v571
    %1154 = vmatprep.subr.mxu0 0.0
    %1155 = vmatpush1.msra.mxu0 %v572
    %1156 = vmatprep.subr.mxu0 0.0
    %1157 = vmatpush1.msra.mxu0 %v573
    %1158 = vmatprep.subr.mxu0 0.0
    %1159 = vmatpush1.msra.mxu0 %v574
    %1160 = vmatprep.subr.mxu0 0.0
    %1161 = vmatpush1.msra.mxu0 %v575
    %1162 = vmatprep.subr.mxu0 0.0
    %1163 = vmatpush1.msra.mxu0 %v576
    %1164 = vmatprep.subr.mxu0 0.0
    %1165 = vmatpush1.msra.mxu0 %v577
    %1166 = vmatprep.subr.mxu0 0.0
    %1167 = vmatpush1.msra.mxu0 %v578
    %1168 = vmatprep.subr.mxu0 0.0
    %1169 = vmatpush1.msra.mxu0 %v579
    %1170 = vmatprep.subr.mxu0 0.0
    %1171 = vmatpush1.msra.mxu0 %v580
    %1172 = vmatprep.subr.mxu0 0.0
    %1173 = vmatpush1.msra.mxu0 %v581
    %1174 = vmatprep.subr.mxu0 0.0
    %1175 = vmatpush1.msra.mxu0 %v582
    %1176 = vmatprep.subr.mxu0 0.0
    %1177 = vmatpush1.msra.mxu0 %v583
    %1178 = vmatprep.subr.mxu0 0.0
    %1179 = vmatpush1.msra.mxu0 %v584
    %1180 = vmatprep.subr.mxu0 0.0
    %1181 = vmatpush1.msra.mxu0 %v585
    %1182 = vmatprep.subr.mxu0 0.0
    %1183 = vmatpush1.msra.mxu0 %v586
    %1184 = vmatprep.subr.mxu0 0.0
    %1185 = vmatpush1.msra.mxu0 0.0
    %1186 = vmatprep.subr.mxu0 0.0
    %1187 = vmatpush1.msra.mxu0 0.0
    %1188 = vmatprep.subr.mxu0 0.0
    %1189 = vmatpush1.msra.mxu0 0.0
    %1190 = vmatprep.subr.mxu0 0.0
    %1191 = vmatpush1.msra.mxu0 0.0
    %1192 = vmatprep.subr.mxu0 0.0
    %1193 = vmatpush1.msra.mxu0 0.0
    %1194 = vmatprep.subr.mxu0 0.0
    %1195 = vmatpush1.msra.mxu0 0.0
    %1196 = vmatprep.subr.mxu0 0.0
    %1197 = vmatpush1.msra.mxu0 0.0
    %1198 = vmatprep.subr.mxu0 0.0
    %1199 = vmatpush1.msra.mxu0 0.0
    %1200 = vmatprep.subr.mxu0 0.0
    %1201 = vmatpush1.msra.mxu0 0.0
    %1202 = vmatprep.subr.mxu0 0.0
    %1203 = vmatpush1.msra.mxu0 0.0
    %1204 = vmatprep.subr.mxu0 0.0
    %1205 = vmatpush1.msra.mxu0 0.0
    %1206 = vmatprep.subr.mxu0 0.0
    %1207 = vmatpush1.msra.mxu0 0.0
    %1208 = vmatprep.subr.mxu0 0.0
    %1209 = vmatpush1.msra.mxu0 0.0
    %1210 = vmatprep.subr.mxu0 0.0
    %1211 = vmatpush1.msra.mxu0 0.0
    %1212 = vmatprep.subr.mxu0 0.0
    %1213 = vmatpush1.msra.mxu0 0.0
    %1214 = vmatprep.subr.mxu0 0.0
    %1215 = vmatpush1.msra.mxu0 0.0
    %1216 = vmatprep.mubr.f32.mxu0 0.0
    %1217 = vmatmul.mubr.f32.gmra.mrb[0].mxu0 %v538
    %v1218 = vpop.f32.mrb[0].mxu0
    %v1219 = vadd.f32 %v1149, %v1218
    %v1220 = vpop.f32.mrb[0].mxu0
    %1221 = vdwg.mxu0
    %v1222 = vld [vmem:[%s0 + $0x4] sm:$0x3]
    %v1223 = vld [vmem:[%s0 + $0x14] sm:$0x3]
    %v1224 = vld [vmem:[%s0 + $0x24] sm:$0x3]
    %1225 = vmatprep.subr.mxu0 %v73
    %1226 = vmatpush1.msra.mxu0 %v72
    %1227 = vmatprep.subr.mxu0 %v76
    %1228 = vmatpush1.msra.mxu0 %v75
    %1229 = vmatprep.subr.mxu0 %v79
    %1230 = vmatpush1.msra.mxu0 %v78
    %1231 = vmatprep.subr.mxu0 %v82
    %1232 = vmatpush1.msra.mxu0 %v81
    %1233 = vmatprep.subr.mxu0 %v85
    %1234 = vmatpush1.msra.mxu0 %v84
    %1235 = vmatprep.subr.mxu0 %v88
    %1236 = vmatpush1.msra.mxu0 %v87
    %1237 = vmatprep.subr.mxu0 %v91
    %1238 = vmatpush1.msra.mxu0 %v90
    %1239 = vmatprep.subr.mxu0 %v94
    %1240 = vmatpush1.msra.mxu0 %v93
    %1241 = vmatprep.subr.mxu0 %v97
    %1242 = vmatpush1.msra.mxu0 %v96
    %1243 = vmatprep.subr.mxu0 %v100
    %1244 = vmatpush1.msra.mxu0 %v99
    %1245 = vmatprep.subr.mxu0 %v103
    %1246 = vmatpush1.msra.mxu0 %v102
    %1247 = vmatprep.subr.mxu0 %v106
    %1248 = vmatpush1.msra.mxu0 %v105
    %1249 = vmatprep.subr.mxu0 %v109
    %1250 = vmatpush1.msra.mxu0 %v108
    %1251 = vmatprep.subr.mxu0 %v112
    %1252 = vmatpush1.msra.mxu0 %v111
    %1253 = vmatprep.subr.mxu0 %v115
    %1254 = vmatpush1.msra.mxu0 %v114
    %1255 = vmatprep.subr.mxu0 %v118
    %1256 = vmatpush1.msra.mxu0 %v117
    %1257 = vmatprep.subr.mxu0 %v121
    %1258 = vmatpush1.msra.mxu0 %v120
    %1259 = vmatprep.subr.mxu0 %v124
    %1260 = vmatpush1.msra.mxu0 %v123
    %1261 = vmatprep.subr.mxu0 %v127
    %1262 = vmatpush1.msra.mxu0 %v126
    %1263 = vmatprep.subr.mxu0 %v130
    %1264 = vmatpush1.msra.mxu0 %v129
    %1265 = vmatprep.subr.mxu0 %v133
    %1266 = vmatpush1.msra.mxu0 %v132
    %1267 = vmatprep.subr.mxu0 %v136
    %1268 = vmatpush1.msra.mxu0 %v135
    %1269 = vmatprep.subr.mxu0 %v139
    %1270 = vmatpush1.msra.mxu0 %v138
    %1271 = vmatprep.subr.mxu0 %v142
    %1272 = vmatpush1.msra.mxu0 %v141
    %1273 = vmatprep.subr.mxu0 %v145
    %1274 = vmatpush1.msra.mxu0 %v144
    %1275 = vmatprep.subr.mxu0 %v148
    %1276 = vmatpush1.msra.mxu0 %v147
    %1277 = vmatprep.subr.mxu0 %v151
    %1278 = vmatpush1.msra.mxu0 %v150
    %1279 = vmatprep.subr.mxu0 %v154
    %1280 = vmatpush1.msra.mxu0 %v153
    %1281 = vmatprep.subr.mxu0 %v157
    %1282 = vmatpush1.msra.mxu0 %v156
    %1283 = vmatprep.subr.mxu0 %v160
    %1284 = vmatpush1.msra.mxu0 %v159
    %1285 = vmatprep.subr.mxu0 %v163
    %1286 = vmatpush1.msra.mxu0 %v162
    %1287 = vmatprep.subr.mxu0 %v166
    %1288 = vmatpush1.msra.mxu0 %v165
    %1289 = vmatprep.mubr.f32.mxu0 %v1223
    %1290 = vmatmul.mubr.f32.gmra.mrb[0].mxu0 %v1222
    %v1291 = vpop.f32.mrb[0].mxu0
    %v1292 = vadd.f32 %v224, %v1291
    %v1293 = vpop.f32.mrb[0].mxu0
    %v1294 = vadd.f32 %v228, %v1293
    %1295 = vdwg.mxu0
    %1296 = vmatprep.subr.mxu0 %v169
    %1297 = vmatpush1.msra.mxu0 %v168
    %1298 = vmatprep.subr.mxu0 %v172
    %1299 = vmatpush1.msra.mxu0 %v171
    %1300 = vmatprep.subr.mxu0 %v175
    %1301 = vmatpush1.msra.mxu0 %v174
    %1302 = vmatprep.subr.mxu0 %v178
    %1303 = vmatpush1.msra.mxu0 %v177
    %1304 = vmatprep.subr.mxu0 %v181
    %1305 = vmatpush1.msra.mxu0 %v180
    %1306 = vmatprep.subr.mxu0 %v184
    %1307 = vmatpush1.msra.mxu0 %v183
    %1308 = vmatprep.subr.mxu0 %v187
    %1309 = vmatpush1.msra.mxu0 %v186
    %1310 = vmatprep.subr.mxu0 %v190
    %1311 = vmatpush1.msra.mxu0 %v189
    %1312 = vmatprep.subr.mxu0 %v193
    %1313 = vmatpush1.msra.mxu0 %v192
    %1314 = vmatprep.subr.mxu0 %v196
    %1315 = vmatpush1.msra.mxu0 %v195
    %1316 = vmatprep.subr.mxu0 %v199
    %1317 = vmatpush1.msra.mxu0 %v198
    %1318 = vmatprep.subr.mxu0 %v202
    %1319 = vmatpush1.msra.mxu0 %v201
    %1320 = vmatprep.subr.mxu0 %v205
    %1321 = vmatpush1.msra.mxu0 %v204
    %1322 = vmatprep.subr.mxu0 %v208
    %1323 = vmatpush1.msra.mxu0 %v207
    %1324 = vmatprep.subr.mxu0 %v211
    %1325 = vmatpush1.msra.mxu0 %v210
    %1326 = vmatprep.subr.mxu0 %v214
    %1327 = vmatpush1.msra.mxu0 %v213
    %1328 = vmatprep.subr.mxu0 0.0
    %1329 = vmatpush1.msra.mxu0 0.0
    %1330 = vmatprep.subr.mxu0 0.0
    %1331 = vmatpush1.msra.mxu0 0.0
    %1332 = vmatprep.subr.mxu0 0.0
    %1333 = vmatpush1.msra.mxu0 0.0
    %1334 = vmatprep.subr.mxu0 0.0
    %1335 = vmatpush1.msra.mxu0 0.0
    %1336 = vmatprep.subr.mxu0 0.0
    %1337 = vmatpush1.msra.mxu0 0.0
    %1338 = vmatprep.subr.mxu0 0.0
    %1339 = vmatpush1.msra.mxu0 0.0
    %1340 = vmatprep.subr.mxu0 0.0
    %1341 = vmatpush1.msra.mxu0 0.0
    %1342 = vmatprep.subr.mxu0 0.0
    %1343 = vmatpush1.msra.mxu0 0.0
    %1344 = vmatprep.subr.mxu0 0.0
    %1345 = vmatpush1.msra.mxu0 0.0
    %1346 = vmatprep.subr.mxu0 0.0
    %1347 = vmatpush1.msra.mxu0 0.0
    %1348 = vmatprep.subr.mxu0 0.0
    %1349 = vmatpush1.msra.mxu0 0.0
    %1350 = vmatprep.subr.mxu0 0.0
    %1351 = vmatpush1.msra.mxu0 0.0
    %1352 = vmatprep.subr.mxu0 0.0
    %1353 = vmatpush1.msra.mxu0 0.0
    %1354 = vmatprep.subr.mxu0 0.0
    %1355 = vmatpush1.msra.mxu0 0.0
    %1356 = vmatprep.subr.mxu0 0.0
    %1357 = vmatpush1.msra.mxu0 0.0
    %1358 = vmatprep.subr.mxu0 0.0
    %1359 = vmatpush1.msra.mxu0 0.0
    %1360 = vmatprep.mubr.f32.mxu0 0.0
    %1361 = vmatmul.mubr.f32.gmra.mrb[0].mxu0 %v1224
    %v1362 = vpop.f32.mrb[0].mxu0
    %v1363 = vadd.f32 %v1292, %v1362
    %v1364 = vpop.f32.mrb[0].mxu0
    %v1365 = vadd.f32 %v1294, %v1364
    %1366 = vdwg.mxu0
    %1367 = vmatprep.subr.mxu0 0.0
    %1368 = vmatpush1.msra.mxu0 %v74
    %1369 = vmatprep.subr.mxu0 0.0
    %1370 = vmatpush1.msra.mxu0 %v77
    %1371 = vmatprep.subr.mxu0 0.0
    %1372 = vmatpush1.msra.mxu0 %v80
    %1373 = vmatprep.subr.mxu0 0.0
    %1374 = vmatpush1.msra.mxu0 %v83
    %1375 = vmatprep.subr.mxu0 0.0
    %1376 = vmatpush1.msra.mxu0 %v86
    %1377 = vmatprep.subr.mxu0 0.0
    %1378 = vmatpush1.msra.mxu0 %v89
    %1379 = vmatprep.subr.mxu0 0.0
    %1380 = vmatpush1.msra.mxu0 %v92
    %1381 = vmatprep.subr.mxu0 0.0
    %1382 = vmatpush1.msra.mxu0 %v95
    %1383 = vmatprep.subr.mxu0 0.0
    %1384 = vmatpush1.msra.mxu0 %v98
    %1385 = vmatprep.subr.mxu0 0.0
    %1386 = vmatpush1.msra.mxu0 %v101
    %1387 = vmatprep.subr.mxu0 0.0
    %1388 = vmatpush1.msra.mxu0 %v104
    %1389 = vmatprep.subr.mxu0 0.0
    %1390 = vmatpush1.msra.mxu0 %v107
    %1391 = vmatprep.subr.mxu0 0.0
    %1392 = vmatpush1.msra.mxu0 %v110
    %1393 = vmatprep.subr.mxu0 0.0
    %1394 = vmatpush1.msra.mxu0 %v113
    %1395 = vmatprep.subr.mxu0 0.0
    %1396 = vmatpush1.msra.mxu0 %v116
    %1397 = vmatprep.subr.mxu0 0.0
    %1398 = vmatpush1.msra.mxu0 %v119
    %1399 = vmatprep.subr.mxu0 0.0
    %1400 = vmatpush1.msra.mxu0 %v122
    %1401 = vmatprep.subr.mxu0 0.0
    %1402 = vmatpush1.msra.mxu0 %v125
    %1403 = vmatprep.subr.mxu0 0.0
    %1404 = vmatpush1.msra.mxu0 %v128
    %1405 = vmatprep.subr.mxu0 0.0
    %1406 = vmatpush1.msra.mxu0 %v131
    %1407 = vmatprep.subr.mxu0 0.0
    %1408 = vmatpush1.msra.mxu0 %v134
    %1409 = vmatprep.subr.mxu0 0.0
    %1410 = vmatpush1.msra.mxu0 %v137
    %1411 = vmatprep.subr.mxu0 0.0
    %1412 = vmatpush1.msra.mxu0 %v140
    %1413 = vmatprep.subr.mxu0 0.0
    %1414 = vmatpush1.msra.mxu0 %v143
    %1415 = vmatprep.subr.mxu0 0.0
    %1416 = vmatpush1.msra.mxu0 %v146
    %1417 = vmatprep.subr.mxu0 0.0
    %1418 = vmatpush1.msra.mxu0 %v149
    %1419 = vmatprep.subr.mxu0 0.0
    %1420 = vmatpush1.msra.mxu0 %v152
    %1421 = vmatprep.subr.mxu0 0.0
    %1422 = vmatpush1.msra.mxu0 %v155
    %1423 = vmatprep.subr.mxu0 0.0
    %1424 = vmatpush1.msra.mxu0 %v158
    %1425 = vmatprep.subr.mxu0 0.0
    %1426 = vmatpush1.msra.mxu0 %v161
    %1427 = vmatprep.subr.mxu0 0.0
    %1428 = vmatpush1.msra.mxu0 %v164
    %1429 = vmatprep.subr.mxu0 0.0
    %1430 = vmatpush1.msra.mxu0 %v167
    %1431 = vmatprep.mubr.f32.mxu0 %v1223
    %1432 = vmatmul.mubr.f32.gmra.mrb[0].mxu0 %v1222
    %v1433 = vpop.f32.mrb[0].mxu0
    %v1434 = vadd.f32 %v232, %v1433
    %v1435 = vpop.f32.mrb[0].mxu0
    %1436 = vdwg.mxu0
    %1437 = vmatprep.subr.mxu0 0.0
    %1438 = vmatpush1.msra.mxu0 %v170
    %1439 = vmatprep.subr.mxu0 0.0
    %1440 = vmatpush1.msra.mxu0 %v173
    %1441 = vmatprep.subr.mxu0 0.0
    %1442 = vmatpush1.msra.mxu0 %v176
    %1443 = vmatprep.subr.mxu0 0.0
    %1444 = vmatpush1.msra.mxu0 %v179
    %1445 = vmatprep.subr.mxu0 0.0
    %1446 = vmatpush1.msra.mxu0 %v182
    %1447 = vmatprep.subr.mxu0 0.0
    %1448 = vmatpush1.msra.mxu0 %v185
    %1449 = vmatprep.subr.mxu0 0.0
    %1450 = vmatpush1.msra.mxu0 %v188
    %1451 = vmatprep.subr.mxu0 0.0
    %1452 = vmatpush1.msra.mxu0 %v191
    %1453 = vmatprep.subr.mxu0 0.0
    %1454 = vmatpush1.msra.mxu0 %v194
    %1455 = vmatprep.subr.mxu0 0.0
    %1456 = vmatpush1.msra.mxu0 %v197
    %1457 = vmatprep.subr.mxu0 0.0
    %1458 = vmatpush1.msra.mxu0 %v200
    %1459 = vmatprep.subr.mxu0 0.0
    %1460 = vmatpush1.msra.mxu0 %v203
    %1461 = vmatprep.subr.mxu0 0.0
    %1462 = vmatpush1.msra.mxu0 %v206
    %1463 = vmatprep.subr.mxu0 0.0
    %1464 = vmatpush1.msra.mxu0 %v209
    %1465 = vmatprep.subr.mxu0 0.0
    %1466 = vmatpush1.msra.mxu0 %v212
    %1467 = vmatprep.subr.mxu0 0.0
    %1468 = vmatpush1.msra.mxu0 %v215
    %1469 = vmatprep.subr.mxu0 0.0
    %1470 = vmatpush1.msra.mxu0 0.0
    %1471 = vmatprep.subr.mxu0 0.0
    %1472 = vmatpush1.msra.mxu0 0.0
    %1473 = vmatprep.subr.mxu0 0.0
    %1474 = vmatpush1.msra.mxu0 0.0
    %1475 = vmatprep.subr.mxu0 0.0
    %1476 = vmatpush1.msra.mxu0 0.0
    %1477 = vmatprep.subr.mxu0 0.0
    %1478 = vmatpush1.msra.mxu0 0.0
    %1479 = vmatprep.subr.mxu0 0.0
    %1480 = vmatpush1.msra.mxu0 0.0
    %1481 = vmatprep.subr.mxu0 0.0
    %1482 = vmatpush1.msra.mxu0 0.0
    %1483 = vmatprep.subr.mxu0 0.0
    %1484 = vmatpush1.msra.mxu0 0.0
    %1485 = vmatprep.subr.mxu0 0.0
    %1486 = vmatpush1.msra.mxu0 0.0
    %1487 = vmatprep.subr.mxu0 0.0
    %1488 = vmatpush1.msra.mxu0 0.0
    %1489 = vmatprep.subr.mxu0 0.0
    %1490 = vmatpush1.msra.mxu0 0.0
    %1491 = vmatprep.subr.mxu0 0.0
    %1492 = vmatpush1.msra.mxu0 0.0
    %1493 = vmatprep.subr.mxu0 0.0
    %1494 = vmatpush1.msra.mxu0 0.0
    %1495 = vmatprep.subr.mxu0 0.0
    %1496 = vmatpush1.msra.mxu0 0.0
    %1497 = vmatprep.subr.mxu0 0.0
    %1498 = vmatpush1.msra.mxu0 0.0
    %1499 = vmatprep.subr.mxu0 0.0
    %1500 = vmatpush1.msra.mxu0 0.0
    %1501 = vmatprep.mubr.f32.mxu0 0.0
    %1502 = vmatmul.mubr.f32.gmra.mrb[0].mxu0 %v1224
    %v1503 = vpop.f32.mrb[0].mxu0
    %v1504 = vadd.f32 %v1434, %v1503
    %v1505 = vpop.f32.mrb[0].mxu0
    %1506 = vdwg.mxu0
    %v1507 = vsub.f32 0.0, %v1363
    %v1508 = vsub.f32 0.0, %v1365
    %v1509 = vsub.f32 0.0, %v1504
    %v1510 = vmul.f32 %v1507, 1.442695
    %v1511 = vpow.pop %v1510
    %v1512 = vmul.f32 %v1508, 1.442695
    %v1513 = vpow.pop %v1512
    %v1514 = vmul.f32 %v1509, 1.442695
    %v1515 = vpow.pop %v1514
    %v1516 = vadd.f32 %v1511, 1.0
    %v1517 = vadd.f32 %v1513, 1.0
    %v1518 = vadd.f32 %v1515, 1.0
    %v1519 = vrcp.pop %v1516
    %v1520 = vmul.f32 1.0, %v1519
    %v1521 = vrcp.pop %v1517
    %v1522 = vmul.f32 1.0, %v1521
    %v1523 = vrcp.pop %v1518
    %v1524 = vmul.f32 1.0, %v1523
    %v1525 = vmul.f32 %v1363, %v1520
    %v1526 = vmul.f32 %v1365, %v1522
    %v1527 = vmul.f32 %v1504, %v1524
    %s1528 = scalar_lea.vmem [#allocation7], 768
    %v1529 = vld [vmem:[%s1528] sm:$0xff]
    %v1530 = vld [vmem:[%s1528 + $0x8] sm:$0xff]
    %v1531 = vld [vmem:[%s1528 + $0x10] sm:$0xff]
    %v1532 = vld [vmem:[%s1528 + $0x18] sm:$0xff]
    %v1533 = vld [vmem:[%s1528 + $0x20] sm:$0xff]
    %v1534 = vld [vmem:[%s1528 + $0x28] sm:$0xff]
    %v1535 = vld [vmem:[%s1528 + $0x30] sm:$0xff]
    %v1536 = vld [vmem:[%s1528 + $0x38] sm:$0xff]
    %v1537 = vld [vmem:[%s1528 + $0x40] sm:$0xff]
    %v1538 = vld [vmem:[%s1528 + $0x48] sm:$0xff]
    %v1539 = vld [vmem:[%s1528 + $0x50] sm:$0xff]
    %v1540 = vld [vmem:[%s1528 + $0x58] sm:$0xff]
    %v1541 = vld [vmem:[%s1528 + $0x60] sm:$0xff]
    %v1542 = vld [vmem:[%s1528 + $0x68] sm:$0xff]
    %v1543 = vld [vmem:[%s1528 + $0x70] sm:$0xff]
    %v1544 = vld [vmem:[%s1528 + $0x78] sm:$0xff]
    %v1545 = vld [vmem:[%s1528 + $0x80] sm:$0xff]
    %v1546 = vld [vmem:[%s1528 + $0x88] sm:$0xff]
    %v1547 = vld [vmem:[%s1528 + $0x90] sm:$0xff]
    %v1548 = vld [vmem:[%s1528 + $0x98] sm:$0xff]
    %v1549 = vld [vmem:[%s1528 + $0xa0] sm:$0xff]
    %v1550 = vld [vmem:[%s1528 + $0xa8] sm:$0xff]
    %v1551 = vld [vmem:[%s1528 + $0xb0] sm:$0xff]
    %v1552 = vld [vmem:[%s1528 + $0xb8] sm:$0xff]
    %v1553 = vld [vmem:[%s1528 + $0xc0] sm:$0xff]
    %v1554 = vld [vmem:[%s1528 + $0xc8] sm:$0xff]
    %v1555 = vld [vmem:[%s1528 + $0xd0] sm:$0xff]
    %v1556 = vld [vmem:[%s1528 + $0xd8] sm:$0xff]
    %v1557 = vld [vmem:[%s1528 + $0xe0] sm:$0xff]
    %v1558 = vld [vmem:[%s1528 + $0xe8] sm:$0xff]
    %v1559 = vld [vmem:[%s1528 + $0xf0] sm:$0xff]
    %v1560 = vld [vmem:[%s1528 + $0xf8] sm:$0xff]
    %v1561 = vld [vmem:[%s1528 + $0x100] sm:$0xff]
    %v1562 = vld [vmem:[%s1528 + $0x108] sm:$0xff]
    %v1563 = vld [vmem:[%s1528 + $0x110] sm:$0xff]
    %v1564 = vld [vmem:[%s1528 + $0x118] sm:$0xff]
    %v1565 = vld [vmem:[%s1528 + $0x120] sm:$0xff]
    %v1566 = vld [vmem:[%s1528 + $0x128] sm:$0xff]
    %v1567 = vld [vmem:[%s1528 + $0x130] sm:$0xff]
    %v1568 = vld [vmem:[%s1528 + $0x138] sm:$0xff]
    %v1569 = vld [vmem:[%s1528 + $0x140] sm:$0xff]
    %v1570 = vld [vmem:[%s1528 + $0x148] sm:$0xff]
    %v1571 = vld [vmem:[%s1528 + $0x150] sm:$0xff]
    %v1572 = vld [vmem:[%s1528 + $0x158] sm:$0xff]
    %v1573 = vld [vmem:[%s1528 + $0x160] sm:$0xff]
    %v1574 = vld [vmem:[%s1528 + $0x168] sm:$0xff]
    %v1575 = vld [vmem:[%s1528 + $0x170] sm:$0xff]
    %v1576 = vld [vmem:[%s1528 + $0x178] sm:$0xff]
    %1577 = vmatprep.subr.mxu0 0.0
    %1578 = vmatpush1.msra.mxu0 %v1529
    %1579 = vmatprep.subr.mxu0 0.0
    %1580 = vmatpush1.msra.mxu0 %v1530
    %1581 = vmatprep.subr.mxu0 0.0
    %1582 = vmatpush1.msra.mxu0 %v1531
    %1583 = vmatprep.subr.mxu0 0.0
    %1584 = vmatpush1.msra.mxu0 %v1532
    %1585 = vmatprep.subr.mxu0 0.0
    %1586 = vmatpush1.msra.mxu0 %v1533
    %1587 = vmatprep.subr.mxu0 0.0
    %1588 = vmatpush1.msra.mxu0 %v1534
    %1589 = vmatprep.subr.mxu0 0.0
    %1590 = vmatpush1.msra.mxu0 %v1535
    %1591 = vmatprep.subr.mxu0 0.0
    %1592 = vmatpush1.msra.mxu0 %v1536
    %1593 = vmatprep.subr.mxu0 0.0
    %1594 = vmatpush1.msra.mxu0 %v1537
    %1595 = vmatprep.subr.mxu0 0.0
    %1596 = vmatpush1.msra.mxu0 %v1538
    %1597 = vmatprep.subr.mxu0 0.0
    %1598 = vmatpush1.msra.mxu0 %v1539
    %1599 = vmatprep.subr.mxu0 0.0
    %1600 = vmatpush1.msra.mxu0 %v1540
    %1601 = vmatprep.subr.mxu0 0.0
    %1602 = vmatpush1.msra.mxu0 %v1541
    %1603 = vmatprep.subr.mxu0 0.0
    %1604 = vmatpush1.msra.mxu0 %v1542
    %1605 = vmatprep.subr.mxu0 0.0
    %1606 = vmatpush1.msra.mxu0 %v1543
    %1607 = vmatprep.subr.mxu0 0.0
    %1608 = vmatpush1.msra.mxu0 %v1544
    %1609 = vmatprep.subr.mxu0 0.0
    %1610 = vmatpush1.msra.mxu0 %v1545
    %1611 = vmatprep.subr.mxu0 0.0
    %1612 = vmatpush1.msra.mxu0 %v1546
    %1613 = vmatprep.subr.mxu0 0.0
    %1614 = vmatpush1.msra.mxu0 %v1547
    %1615 = vmatprep.subr.mxu0 0.0
    %1616 = vmatpush1.msra.mxu0 %v1548
    %1617 = vmatprep.subr.mxu0 0.0
    %1618 = vmatpush1.msra.mxu0 %v1549
    %1619 = vmatprep.subr.mxu0 0.0
    %1620 = vmatpush1.msra.mxu0 %v1550
    %1621 = vmatprep.subr.mxu0 0.0
    %1622 = vmatpush1.msra.mxu0 %v1551
    %1623 = vmatprep.subr.mxu0 0.0
    %1624 = vmatpush1.msra.mxu0 %v1552
    %1625 = vmatprep.subr.mxu0 0.0
    %1626 = vmatpush1.msra.mxu0 %v1553
    %1627 = vmatprep.subr.mxu0 0.0
    %1628 = vmatpush1.msra.mxu0 %v1554
    %1629 = vmatprep.subr.mxu0 0.0
    %1630 = vmatpush1.msra.mxu0 %v1555
    %1631 = vmatprep.subr.mxu0 0.0
    %1632 = vmatpush1.msra.mxu0 %v1556
    %1633 = vmatprep.subr.mxu0 0.0
    %1634 = vmatpush1.msra.mxu0 %v1557
    %1635 = vmatprep.subr.mxu0 0.0
    %1636 = vmatpush1.msra.mxu0 %v1558
    %1637 = vmatprep.subr.mxu0 0.0
    %1638 = vmatpush1.msra.mxu0 %v1559
    %1639 = vmatprep.subr.mxu0 0.0
    %1640 = vmatpush1.msra.mxu0 %v1560
    %1641 = vmatprep.mubr.f32.mxu0 %v1526
    %1642 = vmatmul.mubr.f32.gmra.mrb[0].mxu0 %v1525
    %v1643 = vpop.f32.mrb[0].mxu0
    %v1644 = vadd.f32 0.0, %v1643
    %v1645 = vpop.f32.mrb[0].mxu0
    %1646 = vdwg.mxu0
    %1647 = vmatprep.subr.mxu0 0.0
    %1648 = vmatpush1.msra.mxu0 %v1561
    %1649 = vmatprep.subr.mxu0 0.0
    %1650 = vmatpush1.msra.mxu0 %v1562
    %1651 = vmatprep.subr.mxu0 0.0
    %1652 = vmatpush1.msra.mxu0 %v1563
    %1653 = vmatprep.subr.mxu0 0.0
    %1654 = vmatpush1.msra.mxu0 %v1564
    %1655 = vmatprep.subr.mxu0 0.0
    %1656 = vmatpush1.msra.mxu0 %v1565
    %1657 = vmatprep.subr.mxu0 0.0
    %1658 = vmatpush1.msra.mxu0 %v1566
    %1659 = vmatprep.subr.mxu0 0.0
    %1660 = vmatpush1.msra.mxu0 %v1567
    %1661 = vmatprep.subr.mxu0 0.0
    %1662 = vmatpush1.msra.mxu0 %v1568
    %1663 = vmatprep.subr.mxu0 0.0
    %1664 = vmatpush1.msra.mxu0 %v1569
    %1665 = vmatprep.subr.mxu0 0.0
    %1666 = vmatpush1.msra.mxu0 %v1570
    %1667 = vmatprep.subr.mxu0 0.0
    %1668 = vmatpush1.msra.mxu0 %v1571
    %1669 = vmatprep.subr.mxu0 0.0
    %1670 = vmatpush1.msra.mxu0 %v1572
    %1671 = vmatprep.subr.mxu0 0.0
    %1672 = vmatpush1.msra.mxu0 %v1573
    %1673 = vmatprep.subr.mxu0 0.0
    %1674 = vmatpush1.msra.mxu0 %v1574
    %1675 = vmatprep.subr.mxu0 0.0
    %1676 = vmatpush1.msra.mxu0 %v1575
    %1677 = vmatprep.subr.mxu0 0.0
    %1678 = vmatpush1.msra.mxu0 %v1576
    %1679 = vmatprep.subr.mxu0 0.0
    %1680 = vmatpush1.msra.mxu0 0.0
    %1681 = vmatprep.subr.mxu0 0.0
    %1682 = vmatpush1.msra.mxu0 0.0
    %1683 = vmatprep.subr.mxu0 0.0
    %1684 = vmatpush1.msra.mxu0 0.0
    %1685 = vmatprep.subr.mxu0 0.0
    %1686 = vmatpush1.msra.mxu0 0.0
    %1687 = vmatprep.subr.mxu0 0.0
    %1688 = vmatpush1.msra.mxu0 0.0
    %1689 = vmatprep.subr.mxu0 0.0
    %1690 = vmatpush1.msra.mxu0 0.0
    %1691 = vmatprep.subr.mxu0 0.0
    %1692 = vmatpush1.msra.mxu0 0.0
    %1693 = vmatprep.subr.mxu0 0.0
    %1694 = vmatpush1.msra.mxu0 0.0
    %1695 = vmatprep.subr.mxu0 0.0
    %1696 = vmatpush1.msra.mxu0 0.0
    %1697 = vmatprep.subr.mxu0 0.0
    %1698 = vmatpush1.msra.mxu0 0.0
    %1699 = vmatprep.subr.mxu0 0.0
    %1700 = vmatpush1.msra.mxu0 0.0
    %1701 = vmatprep.subr.mxu0 0.0
    %1702 = vmatpush1.msra.mxu0 0.0
    %1703 = vmatprep.subr.mxu0 0.0
    %1704 = vmatpush1.msra.mxu0 0.0
    %1705 = vmatprep.subr.mxu0 0.0
    %1706 = vmatpush1.msra.mxu0 0.0
    %1707 = vmatprep.subr.mxu0 0.0
    %1708 = vmatpush1.msra.mxu0 0.0
    %1709 = vmatprep.subr.mxu0 0.0
    %1710 = vmatpush1.msra.mxu0 0.0
    %1711 = vmatprep.mubr.f32.mxu0 0.0
    %1712 = vmatmul.mubr.f32.gmra.mrb[0].mxu0 %v1527
    %v1713 = vpop.f32.mrb[0].mxu0
    %v1714 = vadd.f32 %v1644, %v1713
    %v1715 = vpop.f32.mrb[0].mxu0
    %1716 = vdwg.mxu0
    %v1717 = vadd.f32 %v1219, %v1714
    %v1718 = vld [vmem:[%s0 + $0x6] sm:$0x3]
    %v1719 = vld [vmem:[%s0 + $0x16] sm:$0x3]
    %v1720 = vld [vmem:[%s0 + $0x26] sm:$0x3]
    %1721 = vmatprep.subr.mxu0 %v73
    %1722 = vmatpush1.msra.mxu0 %v72
    %1723 = vmatprep.subr.mxu0 %v76
    %1724 = vmatpush1.msra.mxu0 %v75
    %1725 = vmatprep.subr.mxu0 %v79
    %1726 = vmatpush1.msra.mxu0 %v78
    %1727 = vmatprep.subr.mxu0 %v82
    %1728 = vmatpush1.msra.mxu0 %v81
    %1729 = vmatprep.subr.mxu0 %v85
    %1730 = vmatpush1.msra.mxu0 %v84
    %1731 = vmatprep.subr.mxu0 %v88
    %1732 = vmatpush1.msra.mxu0 %v87
    %1733 = vmatprep.subr.mxu0 %v91
    %1734 = vmatpush1.msra.mxu0 %v90
    %1735 = vmatprep.subr.mxu0 %v94
    %1736 = vmatpush1.msra.mxu0 %v93
    %1737 = vmatprep.subr.mxu0 %v97
    %1738 = vmatpush1.msra.mxu0 %v96
    %1739 = vmatprep.subr.mxu0 %v100
    %1740 = vmatpush1.msra.mxu0 %v99
    %1741 = vmatprep.subr.mxu0 %v103
    %1742 = vmatpush1.msra.mxu0 %v102
    %1743 = vmatprep.subr.mxu0 %v106
    %1744 = vmatpush1.msra.mxu0 %v105
    %1745 = vmatprep.subr.mxu0 %v109
    %1746 = vmatpush1.msra.mxu0 %v108
    %1747 = vmatprep.subr.mxu0 %v112
    %1748 = vmatpush1.msra.mxu0 %v111
    %1749 = vmatprep.subr.mxu0 %v115
    %1750 = vmatpush1.msra.mxu0 %v114
    %1751 = vmatprep.subr.mxu0 %v118
    %1752 = vmatpush1.msra.mxu0 %v117
    %1753 = vmatprep.subr.mxu0 %v121
    %1754 = vmatpush1.msra.mxu0 %v120
    %1755 = vmatprep.subr.mxu0 %v124
    %1756 = vmatpush1.msra.mxu0 %v123
    %1757 = vmatprep.subr.mxu0 %v127
    %1758 = vmatpush1.msra.mxu0 %v126
    %1759 = vmatprep.subr.mxu0 %v130
    %1760 = vmatpush1.msra.mxu0 %v129
    %1761 = vmatprep.subr.mxu0 %v133
    %1762 = vmatpush1.msra.mxu0 %v132
    %1763 = vmatprep.subr.mxu0 %v136
    %1764 = vmatpush1.msra.mxu0 %v135
    %1765 = vmatprep.subr.mxu0 %v139
    %1766 = vmatpush1.msra.mxu0 %v138
    %1767 = vmatprep.subr.mxu0 %v142
    %1768 = vmatpush1.msra.mxu0 %v141
    %1769 = vmatprep.subr.mxu0 %v145
    %1770 = vmatpush1.msra.mxu0 %v144
    %1771 = vmatprep.subr.mxu0 %v148
    %1772 = vmatpush1.msra.mxu0 %v147
    %1773 = vmatprep.subr.mxu0 %v151
    %1774 = vmatpush1.msra.mxu0 %v150
    %1775 = vmatprep.subr.mxu0 %v154
    %1776 = vmatpush1.msra.mxu0 %v153
    %1777 = vmatprep.subr.mxu0 %v157
    %1778 = vmatpush1.msra.mxu0 %v156
    %1779 = vmatprep.subr.mxu0 %v160
    %1780 = vmatpush1.msra.mxu0 %v159
    %1781 = vmatprep.subr.mxu0 %v163
    %1782 = vmatpush1.msra.mxu0 %v162
    %1783 = vmatprep.subr.mxu0 %v166
    %1784 = vmatpush1.msra.mxu0 %v165
    %1785 = vmatprep.mubr.f32.mxu0 %v1719
    %1786 = vmatmul.mubr.f32.gmra.mrb[0].mxu0 %v1718
    %v1787 = vpop.f32.mrb[0].mxu0
    %v1788 = vadd.f32 %v224, %v1787
    %v1789 = vpop.f32.mrb[0].mxu0
    %v1790 = vadd.f32 %v228, %v1789
    %1791 = vdwg.mxu0
    %1792 = vmatprep.subr.mxu0 %v169
    %1793 = vmatpush1.msra.mxu0 %v168
    %1794 = vmatprep.subr.mxu0 %v172
    %1795 = vmatpush1.msra.mxu0 %v171
    %1796 = vmatprep.subr.mxu0 %v175
    %1797 = vmatpush1.msra.mxu0 %v174
    %1798 = vmatprep.subr.mxu0 %v178
    %1799 = vmatpush1.msra.mxu0 %v177
    %1800 = vmatprep.subr.mxu0 %v181
    %1801 = vmatpush1.msra.mxu0 %v180
    %1802 = vmatprep.subr.mxu0 %v184
    %1803 = vmatpush1.msra.mxu0 %v183
    %1804 = vmatprep.subr.mxu0 %v187
    %1805 = vmatpush1.msra.mxu0 %v186
    %1806 = vmatprep.subr.mxu0 %v190
    %1807 = vmatpush1.msra.mxu0 %v189
    %1808 = vmatprep.subr.mxu0 %v193
    %1809 = vmatpush1.msra.mxu0 %v192
    %1810 = vmatprep.subr.mxu0 %v196
    %1811 = vmatpush1.msra.mxu0 %v195
    %1812 = vmatprep.subr.mxu0 %v199
    %1813 = vmatpush1.msra.mxu0 %v198
    %1814 = vmatprep.subr.mxu0 %v202
    %1815 = vmatpush1.msra.mxu0 %v201
    %1816 = vmatprep.subr.mxu0 %v205
    %1817 = vmatpush1.msra.mxu0 %v204
    %1818 = vmatprep.subr.mxu0 %v208
    %1819 = vmatpush1.msra.mxu0 %v207
    %1820 = vmatprep.subr.mxu0 %v211
    %1821 = vmatpush1.msra.mxu0 %v210
    %1822 = vmatprep.subr.mxu0 %v214
    %1823 = vmatpush1.msra.mxu0 %v213
    %1824 = vmatprep.subr.mxu0 0.0
    %1825 = vmatpush1.msra.mxu0 0.0
    %1826 = vmatprep.subr.mxu0 0.0
    %1827 = vmatpush1.msra.mxu0 0.0
    %1828 = vmatprep.subr.mxu0 0.0
    %1829 = vmatpush1.msra.mxu0 0.0
    %1830 = vmatprep.subr.mxu0 0.0
    %1831 = vmatpush1.msra.mxu0 0.0
    %1832 = vmatprep.subr.mxu0 0.0
    %1833 = vmatpush1.msra.mxu0 0.0
    %1834 = vmatprep.subr.mxu0 0.0
    %1835 = vmatpush1.msra.mxu0 0.0
    %1836 = vmatprep.subr.mxu0 0.0
    %1837 = vmatpush1.msra.mxu0 0.0
    %1838 = vmatprep.subr.mxu0 0.0
    %1839 = vmatpush1.msra.mxu0 0.0
    %1840 = vmatprep.subr.mxu0 0.0
    %1841 = vmatpush1.msra.mxu0 0.0
    %1842 = vmatprep.subr.mxu0 0.0
    %1843 = vmatpush1.msra.mxu0 0.0
    %1844 = vmatprep.subr.mxu0 0.0
    %1845 = vmatpush1.msra.mxu0 0.0
    %1846 = vmatprep.subr.mxu0 0.0
    %1847 = vmatpush1.msra.mxu0 0.0
    %1848 = vmatprep.subr.mxu0 0.0
    %1849 = vmatpush1.msra.mxu0 0.0
    %1850 = vmatprep.subr.mxu0 0.0
    %1851 = vmatpush1.msra.mxu0 0.0
    %1852 = vmatprep.subr.mxu0 0.0
    %1853 = vmatpush1.msra.mxu0 0.0
    %1854 = vmatprep.subr.mxu0 0.0
    %1855 = vmatpush1.msra.mxu0 0.0
    %1856 = vmatprep.mubr.f32.mxu0 0.0
    %1857 = vmatmul.mubr.f32.gmra.mrb[0].mxu0 %v1720
    %v1858 = vpop.f32.mrb[0].mxu0
    %v1859 = vadd.f32 %v1788, %v1858
    %v1860 = vpop.f32.mrb[0].mxu0
    %v1861 = vadd.f32 %v1790, %v1860
    %1862 = vdwg.mxu0
    %1863 = vmatprep.subr.mxu0 0.0
    %1864 = vmatpush1.msra.mxu0 %v74
    %1865 = vmatprep.subr.mxu0 0.0
    %1866 = vmatpush1.msra.mxu0 %v77
    %1867 = vmatprep.subr.mxu0 0.0
    %1868 = vmatpush1.msra.mxu0 %v80
    %1869 = vmatprep.subr.mxu0 0.0
    %1870 = vmatpush1.msra.mxu0 %v83
    %1871 = vmatprep.subr.mxu0 0.0
    %1872 = vmatpush1.msra.mxu0 %v86
    %1873 = vmatprep.subr.mxu0 0.0
    %1874 = vmatpush1.msra.mxu0 %v89
    %1875 = vmatprep.subr.mxu0 0.0
    %1876 = vmatpush1.msra.mxu0 %v92
    %1877 = vmatprep.subr.mxu0 0.0
    %1878 = vmatpush1.msra.mxu0 %v95
    %1879 = vmatprep.subr.mxu0 0.0
    %1880 = vmatpush1.msra.mxu0 %v98
    %1881 = vmatprep.subr.mxu0 0.0
    %1882 = vmatpush1.msra.mxu0 %v101
    %1883 = vmatprep.subr.mxu0 0.0
    %1884 = vmatpush1.msra.mxu0 %v104
    %1885 = vmatprep.subr.mxu0 0.0
    %1886 = vmatpush1.msra.mxu0 %v107
    %1887 = vmatprep.subr.mxu0 0.0
    %1888 = vmatpush1.msra.mxu0 %v110
    %1889 = vmatprep.subr.mxu0 0.0
    %1890 = vmatpush1.msra.mxu0 %v113
    %1891 = vmatprep.subr.mxu0 0.0
    %1892 = vmatpush1.msra.mxu0 %v116
    %1893 = vmatprep.subr.mxu0 0.0
    %1894 = vmatpush1.msra.mxu0 %v119
    %1895 = vmatprep.subr.mxu0 0.0
    %1896 = vmatpush1.msra.mxu0 %v122
    %1897 = vmatprep.subr.mxu0 0.0
    %1898 = vmatpush1.msra.mxu0 %v125
    %1899 = vmatprep.subr.mxu0 0.0
    %1900 = vmatpush1.msra.mxu0 %v128
    %1901 = vmatprep.subr.mxu0 0.0
    %1902 = vmatpush1.msra.mxu0 %v131
    %1903 = vmatprep.subr.mxu0 0.0
    %1904 = vmatpush1.msra.mxu0 %v134
    %1905 = vmatprep.subr.mxu0 0.0
    %1906 = vmatpush1.msra.mxu0 %v137
    %1907 = vmatprep.subr.mxu0 0.0
    %1908 = vmatpush1.msra.mxu0 %v140
    %1909 = vmatprep.subr.mxu0 0.0
    %1910 = vmatpush1.msra.mxu0 %v143
    %1911 = vmatprep.subr.mxu0 0.0
    %1912 = vmatpush1.msra.mxu0 %v146
    %1913 = vmatprep.subr.mxu0 0.0
    %1914 = vmatpush1.msra.mxu0 %v149
    %1915 = vmatprep.subr.mxu0 0.0
    %1916 = vmatpush1.msra.mxu0 %v152
    %1917 = vmatprep.subr.mxu0 0.0
    %1918 = vmatpush1.msra.mxu0 %v155
    %1919 = vmatprep.subr.mxu0 0.0
    %1920 = vmatpush1.msra.mxu0 %v158
    %1921 = vmatprep.subr.mxu0 0.0
    %1922 = vmatpush1.msra.mxu0 %v161
    %1923 = vmatprep.subr.mxu0 0.0
    %1924 = vmatpush1.msra.mxu0 %v164
    %1925 = vmatprep.subr.mxu0 0.0
    %1926 = vmatpush1.msra.mxu0 %v167
    %1927 = vmatprep.mubr.f32.mxu0 %v1719
    %1928 = vmatmul.mubr.f32.gmra.mrb[0].mxu0 %v1718
    %v1929 = vpop.f32.mrb[0].mxu0
    %v1930 = vadd.f32 %v232, %v1929
    %v1931 = vpop.f32.mrb[0].mxu0
    %1932 = vdwg.mxu0
    %1933 = vmatprep.subr.mxu0 0.0
    %1934 = vmatpush1.msra.mxu0 %v170
    %1935 = vmatprep.subr.mxu0 0.0
    %1936 = vmatpush1.msra.mxu0 %v173
    %1937 = vmatprep.subr.mxu0 0.0
    %1938 = vmatpush1.msra.mxu0 %v176
    %1939 = vmatprep.subr.mxu0 0.0
    %1940 = vmatpush1.msra.mxu0 %v179
    %1941 = vmatprep.subr.mxu0 0.0
    %1942 = vmatpush1.msra.mxu0 %v182
    %1943 = vmatprep.subr.mxu0 0.0
    %1944 = vmatpush1.msra.mxu0 %v185
    %1945 = vmatprep.subr.mxu0 0.0
    %1946 = vmatpush1.msra.mxu0 %v188
    %1947 = vmatprep.subr.mxu0 0.0
    %1948 = vmatpush1.msra.mxu0 %v191
    %1949 = vmatprep.subr.mxu0 0.0
    %1950 = vmatpush1.msra.mxu0 %v194
    %1951 = vmatprep.subr.mxu0 0.0
    %1952 = vmatpush1.msra.mxu0 %v197
    %1953 = vmatprep.subr.mxu0 0.0
    %1954 = vmatpush1.msra.mxu0 %v200
    %1955 = vmatprep.subr.mxu0 0.0
    %1956 = vmatpush1.msra.mxu0 %v203
    %1957 = vmatprep.subr.mxu0 0.0
    %1958 = vmatpush1.msra.mxu0 %v206
    %1959 = vmatprep.subr.mxu0 0.0
    %1960 = vmatpush1.msra.mxu0 %v209
    %1961 = vmatprep.subr.mxu0 0.0
    %1962 = vmatpush1.msra.mxu0 %v212
    %1963 = vmatprep.subr.mxu0 0.0
    %1964 = vmatpush1.msra.mxu0 %v215
    %1965 = vmatprep.subr.mxu0 0.0
    %1966 = vmatpush1.msra.mxu0 0.0
    %1967 = vmatprep.subr.mxu0 0.0
    %1968 = vmatpush1.msra.mxu0 0.0
    %1969 = vmatprep.subr.mxu0 0.0
    %1970 = vmatpush1.msra.mxu0 0.0
    %1971 = vmatprep.subr.mxu0 0.0
    %1972 = vmatpush1.msra.mxu0 0.0
    %1973 = vmatprep.subr.mxu0 0.0
    %1974 = vmatpush1.msra.mxu0 0.0
    %1975 = vmatprep.subr.mxu0 0.0
    %1976 = vmatpush1.msra.mxu0 0.0
    %1977 = vmatprep.subr.mxu0 0.0
    %1978 = vmatpush1.msra.mxu0 0.0
    %1979 = vmatprep.subr.mxu0 0.0
    %1980 = vmatpush1.msra.mxu0 0.0
    %1981 = vmatprep.subr.mxu0 0.0
    %1982 = vmatpush1.msra.mxu0 0.0
    %1983 = vmatprep.subr.mxu0 0.0
    %1984 = vmatpush1.msra.mxu0 0.0
    %1985 = vmatprep.subr.mxu0 0.0
    %1986 = vmatpush1.msra.mxu0 0.0
    %1987 = vmatprep.subr.mxu0 0.0
    %1988 = vmatpush1.msra.mxu0 0.0
    %1989 = vmatprep.subr.mxu0 0.0
    %1990 = vmatpush1.msra.mxu0 0.0
    %1991 = vmatprep.subr.mxu0 0.0
    %1992 = vmatpush1.msra.mxu0 0.0
    %1993 = vmatprep.subr.mxu0 0.0
    %1994 = vmatpush1.msra.mxu0 0.0
    %1995 = vmatprep.subr.mxu0 0.0
    %1996 = vmatpush1.msra.mxu0 0.0
    %1997 = vmatprep.mubr.f32.mxu0 0.0
    %1998 = vmatmul.mubr.f32.gmra.mrb[0].mxu0 %v1720
    %v1999 = vpop.f32.mrb[0].mxu0
    %v2000 = vadd.f32 %v1930, %v1999
    %v2001 = vpop.f32.mrb[0].mxu0
    %2002 = vdwg.mxu0
    %v2003 = vsub.f32 0.0, %v1859
    %v2004 = vsub.f32 0.0, %v1861
    %v2005 = vsub.f32 0.0, %v2000
    %v2006 = vmul.f32 %v2003, 1.442695
    %v2007 = vpow.pop %v2006
    %v2008 = vmul.f32 %v2004, 1.442695
    %v2009 = vpow.pop %v2008
    %v2010 = vmul.f32 %v2005, 1.442695
    %v2011 = vpow.pop %v2010
    %v2012 = vadd.f32 %v2007, 1.0
    %v2013 = vadd.f32 %v2009, 1.0
    %v2014 = vadd.f32 %v2011, 1.0
    %v2015 = vrcp.pop %v2012
    %v2016 = vmul.f32 1.0, %v2015
    %v2017 = vrcp.pop %v2013
    %v2018 = vmul.f32 1.0, %v2017
    %v2019 = vrcp.pop %v2014
    %v2020 = vmul.f32 1.0, %v2019
    %v2021 = vmul.f32 %v1859, %v2016
    %v2022 = vmul.f32 %v1861, %v2018
    %v2023 = vmul.f32 %v2000, %v2020
    %s2024 = scalar_lea.vmem [#allocation7], 1152
    %v2025 = vld [vmem:[%s2024] sm:$0xff]
    %v2026 = vld [vmem:[%s2024 + $0x8] sm:$0xff]
    %v2027 = vld [vmem:[%s2024 + $0x10] sm:$0xff]
    %v2028 = vld [vmem:[%s2024 + $0x18] sm:$0xff]
    %v2029 = vld [vmem:[%s2024 + $0x20] sm:$0xff]
    %v2030 = vld [vmem:[%s2024 + $0x28] sm:$0xff]
    %v2031 = vld [vmem:[%s2024 + $0x30] sm:$0xff]
    %v2032 = vld [vmem:[%s2024 + $0x38] sm:$0xff]
    %v2033 = vld [vmem:[%s2024 + $0x40] sm:$0xff]
    %v2034 = vld [vmem:[%s2024 + $0x48] sm:$0xff]
    %v2035 = vld [vmem:[%s2024 + $0x50] sm:$0xff]
    %v2036 = vld [vmem:[%s2024 + $0x58] sm:$0xff]
    %v2037 = vld [vmem:[%s2024 + $0x60] sm:$0xff]
    %v2038 = vld [vmem:[%s2024 + $0x68] sm:$0xff]
    %v2039 = vld [vmem:[%s2024 + $0x70] sm:$0xff]
    %v2040 = vld [vmem:[%s2024 + $0x78] sm:$0xff]
    %v2041 = vld [vmem:[%s2024 + $0x80] sm:$0xff]
    %v2042 = vld [vmem:[%s2024 + $0x88] sm:$0xff]
    %v2043 = vld [vmem:[%s2024 + $0x90] sm:$0xff]
    %v2044 = vld [vmem:[%s2024 + $0x98] sm:$0xff]
    %v2045 = vld [vmem:[%s2024 + $0xa0] sm:$0xff]
    %v2046 = vld [vmem:[%s2024 + $0xa8] sm:$0xff]
    %v2047 = vld [vmem:[%s2024 + $0xb0] sm:$0xff]
    %v2048 = vld [vmem:[%s2024 + $0xb8] sm:$0xff]
    %v2049 = vld [vmem:[%s2024 + $0xc0] sm:$0xff]
    %v2050 = vld [vmem:[%s2024 + $0xc8] sm:$0xff]
    %v2051 = vld [vmem:[%s2024 + $0xd0] sm:$0xff]
    %v2052 = vld [vmem:[%s2024 + $0xd8] sm:$0xff]
    %v2053 = vld [vmem:[%s2024 + $0xe0] sm:$0xff]
    %v2054 = vld [vmem:[%s2024 + $0xe8] sm:$0xff]
    %v2055 = vld [vmem:[%s2024 + $0xf0] sm:$0xff]
    %v2056 = vld [vmem:[%s2024 + $0xf8] sm:$0xff]
    %v2057 = vld [vmem:[%s2024 + $0x100] sm:$0xff]
    %v2058 = vld [vmem:[%s2024 + $0x108] sm:$0xff]
    %v2059 = vld [vmem:[%s2024 + $0x110] sm:$0xff]
    %v2060 = vld [vmem:[%s2024 + $0x118] sm:$0xff]
    %v2061 = vld [vmem:[%s2024 + $0x120] sm:$0xff]
    %v2062 = vld [vmem:[%s2024 + $0x128] sm:$0xff]
    %v2063 = vld [vmem:[%s2024 + $0x130] sm:$0xff]
    %v2064 = vld [vmem:[%s2024 + $0x138] sm:$0xff]
    %v2065 = vld [vmem:[%s2024 + $0x140] sm:$0xff]
    %v2066 = vld [vmem:[%s2024 + $0x148] sm:$0xff]
    %v2067 = vld [vmem:[%s2024 + $0x150] sm:$0xff]
    %v2068 = vld [vmem:[%s2024 + $0x158] sm:$0xff]
    %v2069 = vld [vmem:[%s2024 + $0x160] sm:$0xff]
    %v2070 = vld [vmem:[%s2024 + $0x168] sm:$0xff]
    %v2071 = vld [vmem:[%s2024 + $0x170] sm:$0xff]
    %v2072 = vld [vmem:[%s2024 + $0x178] sm:$0xff]
    %2073 = vmatprep.subr.mxu0 0.0
    %2074 = vmatpush1.msra.mxu0 %v2025
    %2075 = vmatprep.subr.mxu0 0.0
    %2076 = vmatpush1.msra.mxu0 %v2026
    %2077 = vmatprep.subr.mxu0 0.0
    %2078 = vmatpush1.msra.mxu0 %v2027
    %2079 = vmatprep.subr.mxu0 0.0
    %2080 = vmatpush1.msra.mxu0 %v2028
    %2081 = vmatprep.subr.mxu0 0.0
    %2082 = vmatpush1.msra.mxu0 %v2029
    %2083 = vmatprep.subr.mxu0 0.0
    %2084 = vmatpush1.msra.mxu0 %v2030
    %2085 = vmatprep.subr.mxu0 0.0
    %2086 = vmatpush1.msra.mxu0 %v2031
    %2087 = vmatprep.subr.mxu0 0.0
    %2088 = vmatpush1.msra.mxu0 %v2032
    %2089 = vmatprep.subr.mxu0 0.0
    %2090 = vmatpush1.msra.mxu0 %v2033
    %2091 = vmatprep.subr.mxu0 0.0
    %2092 = vmatpush1.msra.mxu0 %v2034
    %2093 = vmatprep.subr.mxu0 0.0
    %2094 = vmatpush1.msra.mxu0 %v2035
    %2095 = vmatprep.subr.mxu0 0.0
    %2096 = vmatpush1.msra.mxu0 %v2036
    %2097 = vmatprep.subr.mxu0 0.0
    %2098 = vmatpush1.msra.mxu0 %v2037
    %2099 = vmatprep.subr.mxu0 0.0
    %2100 = vmatpush1.msra.mxu0 %v2038
    %2101 = vmatprep.subr.mxu0 0.0
    %2102 = vmatpush1.msra.mxu0 %v2039
    %2103 = vmatprep.subr.mxu0 0.0
    %2104 = vmatpush1.msra.mxu0 %v2040
    %2105 = vmatprep.subr.mxu0 0.0
    %2106 = vmatpush1.msra.mxu0 %v2041
    %2107 = vmatprep.subr.mxu0 0.0
    %2108 = vmatpush1.msra.mxu0 %v2042
    %2109 = vmatprep.subr.mxu0 0.0
    %2110 = vmatpush1.msra.mxu0 %v2043
    %2111 = vmatprep.subr.mxu0 0.0
    %2112 = vmatpush1.msra.mxu0 %v2044
    %2113 = vmatprep.subr.mxu0 0.0
    %2114 = vmatpush1.msra.mxu0 %v2045
    %2115 = vmatprep.subr.mxu0 0.0
    %2116 = vmatpush1.msra.mxu0 %v2046
    %2117 = vmatprep.subr.mxu0 0.0
    %2118 = vmatpush1.msra.mxu0 %v2047
    %2119 = vmatprep.subr.mxu0 0.0
    %2120 = vmatpush1.msra.mxu0 %v2048
    %2121 = vmatprep.subr.mxu0 0.0
    %2122 = vmatpush1.msra.mxu0 %v2049
    %2123 = vmatprep.subr.mxu0 0.0
    %2124 = vmatpush1.msra.mxu0 %v2050
    %2125 = vmatprep.subr.mxu0 0.0
    %2126 = vmatpush1.msra.mxu0 %v2051
    %2127 = vmatprep.subr.mxu0 0.0
    %2128 = vmatpush1.msra.mxu0 %v2052
    %2129 = vmatprep.subr.mxu0 0.0
    %2130 = vmatpush1.msra.mxu0 %v2053
    %2131 = vmatprep.subr.mxu0 0.0
    %2132 = vmatpush1.msra.mxu0 %v2054
    %2133 = vmatprep.subr.mxu0 0.0
    %2134 = vmatpush1.msra.mxu0 %v2055
    %2135 = vmatprep.subr.mxu0 0.0
    %2136 = vmatpush1.msra.mxu0 %v2056
    %2137 = vmatprep.mubr.f32.mxu0 %v2022
    %2138 = vmatmul.mubr.f32.gmra.mrb[0].mxu0 %v2021
    %v2139 = vpop.f32.mrb[0].mxu0
    %v2140 = vadd.f32 0.0, %v2139
    %v2141 = vpop.f32.mrb[0].mxu0
    %2142 = vdwg.mxu0
    %2143 = vmatprep.subr.mxu0 0.0
    %2144 = vmatpush1.msra.mxu0 %v2057
    %2145 = vmatprep.subr.mxu0 0.0
    %2146 = vmatpush1.msra.mxu0 %v2058
    %2147 = vmatprep.subr.mxu0 0.0
    %2148 = vmatpush1.msra.mxu0 %v2059
    %2149 = vmatprep.subr.mxu0 0.0
    %2150 = vmatpush1.msra.mxu0 %v2060
    %2151 = vmatprep.subr.mxu0 0.0
    %2152 = vmatpush1.msra.mxu0 %v2061
    %2153 = vmatprep.subr.mxu0 0.0
    %2154 = vmatpush1.msra.mxu0 %v2062
    %2155 = vmatprep.subr.mxu0 0.0
    %2156 = vmatpush1.msra.mxu0 %v2063
    %2157 = vmatprep.subr.mxu0 0.0
    %2158 = vmatpush1.msra.mxu0 %v2064
    %2159 = vmatprep.subr.mxu0 0.0
    %2160 = vmatpush1.msra.mxu0 %v2065
    %2161 = vmatprep.subr.mxu0 0.0
    %2162 = vmatpush1.msra.mxu0 %v2066
    %2163 = vmatprep.subr.mxu0 0.0
    %2164 = vmatpush1.msra.mxu0 %v2067
    %2165 = vmatprep.subr.mxu0 0.0
    %2166 = vmatpush1.msra.mxu0 %v2068
    %2167 = vmatprep.subr.mxu0 0.0
    %2168 = vmatpush1.msra.mxu0 %v2069
    %2169 = vmatprep.subr.mxu0 0.0
    %2170 = vmatpush1.msra.mxu0 %v2070
    %2171 = vmatprep.subr.mxu0 0.0
    %2172 = vmatpush1.msra.mxu0 %v2071
    %2173 = vmatprep.subr.mxu0 0.0
    %2174 = vmatpush1.msra.mxu0 %v2072
    %2175 = vmatprep.subr.mxu0 0.0
    %2176 = vmatpush1.msra.mxu0 0.0
    %2177 = vmatprep.subr.mxu0 0.0
    %2178 = vmatpush1.msra.mxu0 0.0
    %2179 = vmatprep.subr.mxu0 0.0
    %2180 = vmatpush1.msra.mxu0 0.0
    %2181 = vmatprep.subr.mxu0 0.0
    %2182 = vmatpush1.msra.mxu0 0.0
    %2183 = vmatprep.subr.mxu0 0.0
    %2184 = vmatpush1.msra.mxu0 0.0
    %2185 = vmatprep.subr.mxu0 0.0
    %2186 = vmatpush1.msra.mxu0 0.0
    %2187 = vmatprep.subr.mxu0 0.0
    %2188 = vmatpush1.msra.mxu0 0.0
    %2189 = vmatprep.subr.mxu0 0.0
    %2190 = vmatpush1.msra.mxu0 0.0
    %2191 = vmatprep.subr.mxu0 0.0
    %2192 = vmatpush1.msra.mxu0 0.0
    %2193 = vmatprep.subr.mxu0 0.0
    %2194 = vmatpush1.msra.mxu0 0.0
    %2195 = vmatprep.subr.mxu0 0.0
    %2196 = vmatpush1.msra.mxu0 0.0
    %2197 = vmatprep.subr.mxu0 0.0
    %2198 = vmatpush1.msra.mxu0 0.0
    %2199 = vmatprep.subr.mxu0 0.0
    %2200 = vmatpush1.msra.mxu0 0.0
    %2201 = vmatprep.subr.mxu0 0.0
    %2202 = vmatpush1.msra.mxu0 0.0
    %2203 = vmatprep.subr.mxu0 0.0
    %2204 = vmatpush1.msra.mxu0 0.0
    %2205 = vmatprep.subr.mxu0 0.0
    %2206 = vmatpush1.msra.mxu0 0.0
    %2207 = vmatprep.mubr.f32.mxu0 0.0
    %2208 = vmatmul.mubr.f32.gmra.mrb[0].mxu0 %v2023
    %v2209 = vpop.f32.mrb[0].mxu0
    %v2210 = vadd.f32 %v2140, %v2209
    %v2211 = vpop.f32.mrb[0].mxu0
    %2212 = vdwg.mxu0
    %v2213 = vadd.f32 %v1717, %v2210
    %v2214 = vld [vmem:[%s0 + $0x8] sm:$0x3]
    %v2215 = vld [vmem:[%s0 + $0x18] sm:$0x3]
    %v2216 = vld [vmem:[%s0 + $0x28] sm:$0x3]
    %2217 = vmatprep.subr.mxu0 %v73
    %2218 = vmatpush1.msra.mxu0 %v72
    %2219 = vmatprep.subr.mxu0 %v76
    %2220 = vmatpush1.msra.mxu0 %v75
    %2221 = vmatprep.subr.mxu0 %v79
    %2222 = vmatpush1.msra.mxu0 %v78
    %2223 = vmatprep.subr.mxu0 %v82
    %2224 = vmatpush1.msra.mxu0 %v81
    %2225 = vmatprep.subr.mxu0 %v85
    %2226 = vmatpush1.msra.mxu0 %v84
    %2227 = vmatprep.subr.mxu0 %v88
    %2228 = vmatpush1.msra.mxu0 %v87
    %2229 = vmatprep.subr.mxu0 %v91
    %2230 = vmatpush1.msra.mxu0 %v90
    %2231 = vmatprep.subr.mxu0 %v94
    %2232 = vmatpush1.msra.mxu0 %v93
    %2233 = vmatprep.subr.mxu0 %v97
    %2234 = vmatpush1.msra.mxu0 %v96
    %2235 = vmatprep.subr.mxu0 %v100
    %2236 = vmatpush1.msra.mxu0 %v99
    %2237 = vmatprep.subr.mxu0 %v103
    %2238 = vmatpush1.msra.mxu0 %v102
    %2239 = vmatprep.subr.mxu0 %v106
    %2240 = vmatpush1.msra.mxu0 %v105
    %2241 = vmatprep.subr.mxu0 %v109
    %2242 = vmatpush1.msra.mxu0 %v108
    %2243 = vmatprep.subr.mxu0 %v112
    %2244 = vmatpush1.msra.mxu0 %v111
    %2245 = vmatprep.subr.mxu0 %v115
    %2246 = vmatpush1.msra.mxu0 %v114
    %2247 = vmatprep.subr.mxu0 %v118
    %2248 = vmatpush1.msra.mxu0 %v117
    %2249 = vmatprep.subr.mxu0 %v121
    %2250 = vmatpush1.msra.mxu0 %v120
    %2251 = vmatprep.subr.mxu0 %v124
    %2252 = vmatpush1.msra.mxu0 %v123
    %2253 = vmatprep.subr.mxu0 %v127
    %2254 = vmatpush1.msra.mxu0 %v126
    %2255 = vmatprep.subr.mxu0 %v130
    %2256 = vmatpush1.msra.mxu0 %v129
    %2257 = vmatprep.subr.mxu0 %v133
    %2258 = vmatpush1.msra.mxu0 %v132
    %2259 = vmatprep.subr.mxu0 %v136
    %2260 = vmatpush1.msra.mxu0 %v135
    %2261 = vmatprep.subr.mxu0 %v139
    %2262 = vmatpush1.msra.mxu0 %v138
    %2263 = vmatprep.subr.mxu0 %v142
    %2264 = vmatpush1.msra.mxu0 %v141
    %2265 = vmatprep.subr.mxu0 %v145
    %2266 = vmatpush1.msra.mxu0 %v144
    %2267 = vmatprep.subr.mxu0 %v148
    %2268 = vmatpush1.msra.mxu0 %v147
    %2269 = vmatprep.subr.mxu0 %v151
    %2270 = vmatpush1.msra.mxu0 %v150
    %2271 = vmatprep.subr.mxu0 %v154
    %2272 = vmatpush1.msra.mxu0 %v153
    %2273 = vmatprep.subr.mxu0 %v157
    %2274 = vmatpush1.msra.mxu0 %v156
    %2275 = vmatprep.subr.mxu0 %v160
    %2276 = vmatpush1.msra.mxu0 %v159
    %2277 = vmatprep.subr.mxu0 %v163
    %2278 = vmatpush1.msra.mxu0 %v162
    %2279 = vmatprep.subr.mxu0 %v166
    %2280 = vmatpush1.msra.mxu0 %v165
    %2281 = vmatprep.mubr.f32.mxu0 %v2215
    %2282 = vmatmul.mubr.f32.gmra.mrb[0].mxu0 %v2214
    %v2283 = vpop.f32.mrb[0].mxu0
    %v2284 = vadd.f32 %v224, %v2283
    %v2285 = vpop.f32.mrb[0].mxu0
    %v2286 = vadd.f32 %v228, %v2285
    %2287 = vdwg.mxu0
    %2288 = vmatprep.subr.mxu0 %v169
    %2289 = vmatpush1.msra.mxu0 %v168
    %2290 = vmatprep.subr.mxu0 %v172
    %2291 = vmatpush1.msra.mxu0 %v171
    %2292 = vmatprep.subr.mxu0 %v175
    %2293 = vmatpush1.msra.mxu0 %v174
    %2294 = vmatprep.subr.mxu0 %v178
    %2295 = vmatpush1.msra.mxu0 %v177
    %2296 = vmatprep.subr.mxu0 %v181
    %2297 = vmatpush1.msra.mxu0 %v180
    %2298 = vmatprep.subr.mxu0 %v184
    %2299 = vmatpush1.msra.mxu0 %v183
    %2300 = vmatprep.subr.mxu0 %v187
    %2301 = vmatpush1.msra.mxu0 %v186
    %2302 = vmatprep.subr.mxu0 %v190
    %2303 = vmatpush1.msra.mxu0 %v189
    %2304 = vmatprep.subr.mxu0 %v193
    %2305 = vmatpush1.msra.mxu0 %v192
    %2306 = vmatprep.subr.mxu0 %v196
    %2307 = vmatpush1.msra.mxu0 %v195
    %2308 = vmatprep.subr.mxu0 %v199
    %2309 = vmatpush1.msra.mxu0 %v198
    %2310 = vmatprep.subr.mxu0 %v202
    %2311 = vmatpush1.msra.mxu0 %v201
    %2312 = vmatprep.subr.mxu0 %v205
    %2313 = vmatpush1.msra.mxu0 %v204
    %2314 = vmatprep.subr.mxu0 %v208
    %2315 = vmatpush1.msra.mxu0 %v207
    %2316 = vmatprep.subr.mxu0 %v211
    %2317 = vmatpush1.msra.mxu0 %v210
    %2318 = vmatprep.subr.mxu0 %v214
    %2319 = vmatpush1.msra.mxu0 %v213
    %2320 = vmatprep.subr.mxu0 0.0
    %2321 = vmatpush1.msra.mxu0 0.0
    %2322 = vmatprep.subr.mxu0 0.0
    %2323 = vmatpush1.msra.mxu0 0.0
    %2324 = vmatprep.subr.mxu0 0.0
    %2325 = vmatpush1.msra.mxu0 0.0
    %2326 = vmatprep.subr.mxu0 0.0
    %2327 = vmatpush1.msra.mxu0 0.0
    %2328 = vmatprep.subr.mxu0 0.0
    %2329 = vmatpush1.msra.mxu0 0.0
    %2330 = vmatprep.subr.mxu0 0.0
    %2331 = vmatpush1.msra.mxu0 0.0
    %2332 = vmatprep.subr.mxu0 0.0
    %2333 = vmatpush1.msra.mxu0 0.0
    %2334 = vmatprep.subr.mxu0 0.0
    %2335 = vmatpush1.msra.mxu0 0.0
    %2336 = vmatprep.subr.mxu0 0.0
    %2337 = vmatpush1.msra.mxu0 0.0
    %2338 = vmatprep.subr.mxu0 0.0
    %2339 = vmatpush1.msra.mxu0 0.0
    %2340 = vmatprep.subr.mxu0 0.0
    %2341 = vmatpush1.msra.mxu0 0.0
    %2342 = vmatprep.subr.mxu0 0.0
    %2343 = vmatpush1.msra.mxu0 0.0
    %2344 = vmatprep.subr.mxu0 0.0
    %2345 = vmatpush1.msra.mxu0 0.0
    %2346 = vmatprep.subr.mxu0 0.0
    %2347 = vmatpush1.msra.mxu0 0.0
    %2348 = vmatprep.subr.mxu0 0.0
    %2349 = vmatpush1.msra.mxu0 0.0
    %2350 = vmatprep.subr.mxu0 0.0
    %2351 = vmatpush1.msra.mxu0 0.0
    %2352 = vmatprep.mubr.f32.mxu0 0.0
    %2353 = vmatmul.mubr.f32.gmra.mrb[0].mxu0 %v2216
    %v2354 = vpop.f32.mrb[0].mxu0
    %v2355 = vadd.f32 %v2284, %v2354
    %v2356 = vpop.f32.mrb[0].mxu0
    %v2357 = vadd.f32 %v2286, %v2356
    %2358 = vdwg.mxu0
    %2359 = vmatprep.subr.mxu0 0.0
    %2360 = vmatpush1.msra.mxu0 %v74
    %2361 = vmatprep.subr.mxu0 0.0
    %2362 = vmatpush1.msra.mxu0 %v77
    %2363 = vmatprep.subr.mxu0 0.0
    %2364 = vmatpush1.msra.mxu0 %v80
    %2365 = vmatprep.subr.mxu0 0.0
    %2366 = vmatpush1.msra.mxu0 %v83
    %2367 = vmatprep.subr.mxu0 0.0
    %2368 = vmatpush1.msra.mxu0 %v86
    %2369 = vmatprep.subr.mxu0 0.0
    %2370 = vmatpush1.msra.mxu0 %v89
    %2371 = vmatprep.subr.mxu0 0.0
    %2372 = vmatpush1.msra.mxu0 %v92
    %2373 = vmatprep.subr.mxu0 0.0
    %2374 = vmatpush1.msra.mxu0 %v95
    %2375 = vmatprep.subr.mxu0 0.0
    %2376 = vmatpush1.msra.mxu0 %v98
    %2377 = vmatprep.subr.mxu0 0.0
    %2378 = vmatpush1.msra.mxu0 %v101
    %2379 = vmatprep.subr.mxu0 0.0
    %2380 = vmatpush1.msra.mxu0 %v104
    %2381 = vmatprep.subr.mxu0 0.0
    %2382 = vmatpush1.msra.mxu0 %v107
    %2383 = vmatprep.subr.mxu0 0.0
    %2384 = vmatpush1.msra.mxu0 %v110
    %2385 = vmatprep.subr.mxu0 0.0
    %2386 = vmatpush1.msra.mxu0 %v113
    %2387 = vmatprep.subr.mxu0 0.0
    %2388 = vmatpush1.msra.mxu0 %v116
    %2389 = vmatprep.subr.mxu0 0.0
    %2390 = vmatpush1.msra.mxu0 %v119
    %2391 = vmatprep.subr.mxu0 0.0
    %2392 = vmatpush1.msra.mxu0 %v122
    %2393 = vmatprep.subr.mxu0 0.0
    %2394 = vmatpush1.msra.mxu0 %v125
    %2395 = vmatprep.subr.mxu0 0.0
    %2396 = vmatpush1.msra.mxu0 %v128
    %2397 = vmatprep.subr.mxu0 0.0
    %2398 = vmatpush1.msra.mxu0 %v131
    %2399 = vmatprep.subr.mxu0 0.0
    %2400 = vmatpush1.msra.mxu0 %v134
    %2401 = vmatprep.subr.mxu0 0.0
    %2402 = vmatpush1.msra.mxu0 %v137
    %2403 = vmatprep.subr.mxu0 0.0
    %2404 = vmatpush1.msra.mxu0 %v140
    %2405 = vmatprep.subr.mxu0 0.0
    %2406 = vmatpush1.msra.mxu0 %v143
    %2407 = vmatprep.subr.mxu0 0.0
    %2408 = vmatpush1.msra.mxu0 %v146
    %2409 = vmatprep.subr.mxu0 0.0
    %2410 = vmatpush1.msra.mxu0 %v149
    %2411 = vmatprep.subr.mxu0 0.0
    %2412 = vmatpush1.msra.mxu0 %v152
    %2413 = vmatprep.subr.mxu0 0.0
    %2414 = vmatpush1.msra.mxu0 %v155
    %2415 = vmatprep.subr.mxu0 0.0
    %2416 = vmatpush1.msra.mxu0 %v158
    %2417 = vmatprep.subr.mxu0 0.0
    %2418 = vmatpush1.msra.mxu0 %v161
    %2419 = vmatprep.subr.mxu0 0.0
    %2420 = vmatpush1.msra.mxu0 %v164
    %2421 = vmatprep.subr.mxu0 0.0
    %2422 = vmatpush1.msra.mxu0 %v167
    %2423 = vmatprep.mubr.f32.mxu0 %v2215
    %2424 = vmatmul.mubr.f32.gmra.mrb[0].mxu0 %v2214
    %v2425 = vpop.f32.mrb[0].mxu0
    %v2426 = vadd.f32 %v232, %v2425
    %v2427 = vpop.f32.mrb[0].mxu0
    %2428 = vdwg.mxu0
    %2429 = vmatprep.subr.mxu0 0.0
    %2430 = vmatpush1.msra.mxu0 %v170
    %2431 = vmatprep.subr.mxu0 0.0
    %2432 = vmatpush1.msra.mxu0 %v173
    %2433 = vmatprep.subr.mxu0 0.0
    %2434 = vmatpush1.msra.mxu0 %v176
    %2435 = vmatprep.subr.mxu0 0.0
    %2436 = vmatpush1.msra.mxu0 %v179
    %2437 = vmatprep.subr.mxu0 0.0
    %2438 = vmatpush1.msra.mxu0 %v182
    %2439 = vmatprep.subr.mxu0 0.0
    %2440 = vmatpush1.msra.mxu0 %v185
    %2441 = vmatprep.subr.mxu0 0.0
    %2442 = vmatpush1.msra.mxu0 %v188
    %2443 = vmatprep.subr.mxu0 0.0
    %2444 = vmatpush1.msra.mxu0 %v191
    %2445 = vmatprep.subr.mxu0 0.0
    %2446 = vmatpush1.msra.mxu0 %v194
    %2447 = vmatprep.subr.mxu0 0.0
    %2448 = vmatpush1.msra.mxu0 %v197
    %2449 = vmatprep.subr.mxu0 0.0
    %2450 = vmatpush1.msra.mxu0 %v200
    %2451 = vmatprep.subr.mxu0 0.0
    %2452 = vmatpush1.msra.mxu0 %v203
    %2453 = vmatprep.subr.mxu0 0.0
    %2454 = vmatpush1.msra.mxu0 %v206
    %2455 = vmatprep.subr.mxu0 0.0
    %2456 = vmatpush1.msra.mxu0 %v209
    %2457 = vmatprep.subr.mxu0 0.0
    %2458 = vmatpush1.msra.mxu0 %v212
    %2459 = vmatprep.subr.mxu0 0.0
    %2460 = vmatpush1.msra.mxu0 %v215
    %2461 = vmatprep.subr.mxu0 0.0
    %2462 = vmatpush1.msra.mxu0 0.0
    %2463 = vmatprep.subr.mxu0 0.0
    %2464 = vmatpush1.msra.mxu0 0.0
    %2465 = vmatprep.subr.mxu0 0.0
    %2466 = vmatpush1.msra.mxu0 0.0
    %2467 = vmatprep.subr.mxu0 0.0
    %2468 = vmatpush1.msra.mxu0 0.0
    %2469 = vmatprep.subr.mxu0 0.0
    %2470 = vmatpush1.msra.mxu0 0.0
    %2471 = vmatprep.subr.mxu0 0.0
    %2472 = vmatpush1.msra.mxu0 0.0
    %2473 = vmatprep.subr.mxu0 0.0
    %2474 = vmatpush1.msra.mxu0 0.0
    %2475 = vmatprep.subr.mxu0 0.0
    %2476 = vmatpush1.msra.mxu0 0.0
    %2477 = vmatprep.subr.mxu0 0.0
    %2478 = vmatpush1.msra.mxu0 0.0
    %2479 = vmatprep.subr.mxu0 0.0
    %2480 = vmatpush1.msra.mxu0 0.0
    %2481 = vmatprep.subr.mxu0 0.0
    %2482 = vmatpush1.msra.mxu0 0.0
    %2483 = vmatprep.subr.mxu0 0.0
    %2484 = vmatpush1.msra.mxu0 0.0
    %2485 = vmatprep.subr.mxu0 0.0
    %2486 = vmatpush1.msra.mxu0 0.0
    %2487 = vmatprep.subr.mxu0 0.0
    %2488 = vmatpush1.msra.mxu0 0.0
    %2489 = vmatprep.subr.mxu0 0.0
    %2490 = vmatpush1.msra.mxu0 0.0
    %2491 = vmatprep.subr.mxu0 0.0
    %2492 = vmatpush1.msra.mxu0 0.0
    %2493 = vmatprep.mubr.f32.mxu0 0.0
    %2494 = vmatmul.mubr.f32.gmra.mrb[0].mxu0 %v2216
    %v2495 = vpop.f32.mrb[0].mxu0
    %v2496 = vadd.f32 %v2426, %v2495
    %v2497 = vpop.f32.mrb[0].mxu0
    %2498 = vdwg.mxu0
    %v2499 = vsub.f32 0.0, %v2355
    %v2500 = vsub.f32 0.0, %v2357
    %v2501 = vsub.f32 0.0, %v2496
    %v2502 = vmul.f32 %v2499, 1.442695
    %v2503 = vpow.pop %v2502
    %v2504 = vmul.f32 %v2500, 1.442695
    %v2505 = vpow.pop %v2504
    %v2506 = vmul.f32 %v2501, 1.442695
    %v2507 = vpow.pop %v2506
    %v2508 = vadd.f32 %v2503, 1.0
    %v2509 = vadd.f32 %v2505, 1.0
    %v2510 = vadd.f32 %v2507, 1.0
    %v2511 = vrcp.pop %v2508
    %v2512 = vmul.f32 1.0, %v2511
    %v2513 = vrcp.pop %v2509
    %v2514 = vmul.f32 1.0, %v2513
    %v2515 = vrcp.pop %v2510
    %v2516 = vmul.f32 1.0, %v2515
    %v2517 = vmul.f32 %v2355, %v2512
    %v2518 = vmul.f32 %v2357, %v2514
    %v2519 = vmul.f32 %v2496, %v2516
    %s2520 = scalar_lea.vmem [#allocation7], 1536
    %v2521 = vld [vmem:[%s2520] sm:$0xff]
    %v2522 = vld [vmem:[%s2520 + $0x8] sm:$0xff]
    %v2523 = vld [vmem:[%s2520 + $0x10] sm:$0xff]
    %v2524 = vld [vmem:[%s2520 + $0x18] sm:$0xff]
    %v2525 = vld [vmem:[%s2520 + $0x20] sm:$0xff]
    %v2526 = vld [vmem:[%s2520 + $0x28] sm:$0xff]
    %v2527 = vld [vmem:[%s2520 + $0x30] sm:$0xff]
    %v2528 = vld [vmem:[%s2520 + $0x38] sm:$0xff]
    %v2529 = vld [vmem:[%s2520 + $0x40] sm:$0xff]
    %v2530 = vld [vmem:[%s2520 + $0x48] sm:$0xff]
    %v2531 = vld [vmem:[%s2520 + $0x50] sm:$0xff]
    %v2532 = vld [vmem:[%s2520 + $0x58] sm:$0xff]
    %v2533 = vld [vmem:[%s2520 + $0x60] sm:$0xff]
    %v2534 = vld [vmem:[%s2520 + $0x68] sm:$0xff]
    %v2535 = vld [vmem:[%s2520 + $0x70] sm:$0xff]
    %v2536 = vld [vmem:[%s2520 + $0x78] sm:$0xff]
    %v2537 = vld [vmem:[%s2520 + $0x80] sm:$0xff]
    %v2538 = vld [vmem:[%s2520 + $0x88] sm:$0xff]
    %v2539 = vld [vmem:[%s2520 + $0x90] sm:$0xff]
    %v2540 = vld [vmem:[%s2520 + $0x98] sm:$0xff]
    %v2541 = vld [vmem:[%s2520 + $0xa0] sm:$0xff]
    %v2542 = vld [vmem:[%s2520 + $0xa8] sm:$0xff]
    %v2543 = vld [vmem:[%s2520 + $0xb0] sm:$0xff]
    %v2544 = vld [vmem:[%s2520 + $0xb8] sm:$0xff]
    %v2545 = vld [vmem:[%s2520 + $0xc0] sm:$0xff]
    %v2546 = vld [vmem:[%s2520 + $0xc8] sm:$0xff]
    %v2547 = vld [vmem:[%s2520 + $0xd0] sm:$0xff]
    %v2548 = vld [vmem:[%s2520 + $0xd8] sm:$0xff]
    %v2549 = vld [vmem:[%s2520 + $0xe0] sm:$0xff]
    %v2550 = vld [vmem:[%s2520 + $0xe8] sm:$0xff]
    %v2551 = vld [vmem:[%s2520 + $0xf0] sm:$0xff]
    %v2552 = vld [vmem:[%s2520 + $0xf8] sm:$0xff]
    %v2553 = vld [vmem:[%s2520 + $0x100] sm:$0xff]
    %v2554 = vld [vmem:[%s2520 + $0x108] sm:$0xff]
    %v2555 = vld [vmem:[%s2520 + $0x110] sm:$0xff]
    %v2556 = vld [vmem:[%s2520 + $0x118] sm:$0xff]
    %v2557 = vld [vmem:[%s2520 + $0x120] sm:$0xff]
    %v2558 = vld [vmem:[%s2520 + $0x128] sm:$0xff]
    %v2559 = vld [vmem:[%s2520 + $0x130] sm:$0xff]
    %v2560 = vld [vmem:[%s2520 + $0x138] sm:$0xff]
    %v2561 = vld [vmem:[%s2520 + $0x140] sm:$0xff]
    %v2562 = vld [vmem:[%s2520 + $0x148] sm:$0xff]
    %v2563 = vld [vmem:[%s2520 + $0x150] sm:$0xff]
    %v2564 = vld [vmem:[%s2520 + $0x158] sm:$0xff]
    %v2565 = vld [vmem:[%s2520 + $0x160] sm:$0xff]
    %v2566 = vld [vmem:[%s2520 + $0x168] sm:$0xff]
    %v2567 = vld [vmem:[%s2520 + $0x170] sm:$0xff]
    %v2568 = vld [vmem:[%s2520 + $0x178] sm:$0xff]
    %2569 = vmatprep.subr.mxu0 0.0
    %2570 = vmatpush1.msra.mxu0 %v2521
    %2571 = vmatprep.subr.mxu0 0.0
    %2572 = vmatpush1.msra.mxu0 %v2522
    %2573 = vmatprep.subr.mxu0 0.0
    %2574 = vmatpush1.msra.mxu0 %v2523
    %2575 = vmatprep.subr.mxu0 0.0
    %2576 = vmatpush1.msra.mxu0 %v2524
    %2577 = vmatprep.subr.mxu0 0.0
    %2578 = vmatpush1.msra.mxu0 %v2525
    %2579 = vmatprep.subr.mxu0 0.0
    %2580 = vmatpush1.msra.mxu0 %v2526
    %2581 = vmatprep.subr.mxu0 0.0
    %2582 = vmatpush1.msra.mxu0 %v2527
    %2583 = vmatprep.subr.mxu0 0.0
    %2584 = vmatpush1.msra.mxu0 %v2528
    %2585 = vmatprep.subr.mxu0 0.0
    %2586 = vmatpush1.msra.mxu0 %v2529
    %2587 = vmatprep.subr.mxu0 0.0
    %2588 = vmatpush1.msra.mxu0 %v2530
    %2589 = vmatprep.subr.mxu0 0.0
    %2590 = vmatpush1.msra.mxu0 %v2531
    %2591 = vmatprep.subr.mxu0 0.0
    %2592 = vmatpush1.msra.mxu0 %v2532
    %2593 = vmatprep.subr.mxu0 0.0
    %2594 = vmatpush1.msra.mxu0 %v2533
    %2595 = vmatprep.subr.mxu0 0.0
    %2596 = vmatpush1.msra.mxu0 %v2534
    %2597 = vmatprep.subr.mxu0 0.0
    %2598 = vmatpush1.msra.mxu0 %v2535
    %2599 = vmatprep.subr.mxu0 0.0
    %2600 = vmatpush1.msra.mxu0 %v2536
    %2601 = vmatprep.subr.mxu0 0.0
    %2602 = vmatpush1.msra.mxu0 %v2537
    %2603 = vmatprep.subr.mxu0 0.0
    %2604 = vmatpush1.msra.mxu0 %v2538
    %2605 = vmatprep.subr.mxu0 0.0
    %2606 = vmatpush1.msra.mxu0 %v2539
    %2607 = vmatprep.subr.mxu0 0.0
    %2608 = vmatpush1.msra.mxu0 %v2540
    %2609 = vmatprep.subr.mxu0 0.0
    %2610 = vmatpush1.msra.mxu0 %v2541
    %2611 = vmatprep.subr.mxu0 0.0
    %2612 = vmatpush1.msra.mxu0 %v2542
    %2613 = vmatprep.subr.mxu0 0.0
    %2614 = vmatpush1.msra.mxu0 %v2543
    %2615 = vmatprep.subr.mxu0 0.0
    %2616 = vmatpush1.msra.mxu0 %v2544
    %2617 = vmatprep.subr.mxu0 0.0
    %2618 = vmatpush1.msra.mxu0 %v2545
    %2619 = vmatprep.subr.mxu0 0.0
    %2620 = vmatpush1.msra.mxu0 %v2546
    %2621 = vmatprep.subr.mxu0 0.0
    %2622 = vmatpush1.msra.mxu0 %v2547
    %2623 = vmatprep.subr.mxu0 0.0
    %2624 = vmatpush1.msra.mxu0 %v2548
    %2625 = vmatprep.subr.mxu0 0.0
    %2626 = vmatpush1.msra.mxu0 %v2549
    %2627 = vmatprep.subr.mxu0 0.0
    %2628 = vmatpush1.msra.mxu0 %v2550
    %2629 = vmatprep.subr.mxu0 0.0
    %2630 = vmatpush1.msra.mxu0 %v2551
    %2631 = vmatprep.subr.mxu0 0.0
    %2632 = vmatpush1.msra.mxu0 %v2552
    %2633 = vmatprep.mubr.f32.mxu0 %v2518
    %2634 = vmatmul.mubr.f32.gmra.mrb[0].mxu0 %v2517
    %v2635 = vpop.f32.mrb[0].mxu0
    %v2636 = vadd.f32 0.0, %v2635
    %v2637 = vpop.f32.mrb[0].mxu0
    %2638 = vdwg.mxu0
    %2639 = vmatprep.subr.mxu0 0.0
    %2640 = vmatpush1.msra.mxu0 %v2553
    %2641 = vmatprep.subr.mxu0 0.0
    %2642 = vmatpush1.msra.mxu0 %v2554
    %2643 = vmatprep.subr.mxu0 0.0
    %2644 = vmatpush1.msra.mxu0 %v2555
    %2645 = vmatprep.subr.mxu0 0.0
    %2646 = vmatpush1.msra.mxu0 %v2556
    %2647 = vmatprep.subr.mxu0 0.0
    %2648 = vmatpush1.msra.mxu0 %v2557
    %2649 = vmatprep.subr.mxu0 0.0
    %2650 = vmatpush1.msra.mxu0 %v2558
    %2651 = vmatprep.subr.mxu0 0.0
    %2652 = vmatpush1.msra.mxu0 %v2559
    %2653 = vmatprep.subr.mxu0 0.0
    %2654 = vmatpush1.msra.mxu0 %v2560
    %2655 = vmatprep.subr.mxu0 0.0
    %2656 = vmatpush1.msra.mxu0 %v2561
    %2657 = vmatprep.subr.mxu0 0.0
    %2658 = vmatpush1.msra.mxu0 %v2562
    %2659 = vmatprep.subr.mxu0 0.0
    %2660 = vmatpush1.msra.mxu0 %v2563
    %2661 = vmatprep.subr.mxu0 0.0
    %2662 = vmatpush1.msra.mxu0 %v2564
    %2663 = vmatprep.subr.mxu0 0.0
    %2664 = vmatpush1.msra.mxu0 %v2565
    %2665 = vmatprep.subr.mxu0 0.0
    %2666 = vmatpush1.msra.mxu0 %v2566
    %2667 = vmatprep.subr.mxu0 0.0
    %2668 = vmatpush1.msra.mxu0 %v2567
    %2669 = vmatprep.subr.mxu0 0.0
    %2670 = vmatpush1.msra.mxu0 %v2568
    %2671 = vmatprep.subr.mxu0 0.0
    %2672 = vmatpush1.msra.mxu0 0.0
    %2673 = vmatprep.subr.mxu0 0.0
    %2674 = vmatpush1.msra.mxu0 0.0
    %2675 = vmatprep.subr.mxu0 0.0
    %2676 = vmatpush1.msra.mxu0 0.0
    %2677 = vmatprep.subr.mxu0 0.0
    %2678 = vmatpush1.msra.mxu0 0.0
    %2679 = vmatprep.subr.mxu0 0.0
    %2680 = vmatpush1.msra.mxu0 0.0
    %2681 = vmatprep.subr.mxu0 0.0
    %2682 = vmatpush1.msra.mxu0 0.0
    %2683 = vmatprep.subr.mxu0 0.0
    %2684 = vmatpush1.msra.mxu0 0.0
    %2685 = vmatprep.subr.mxu0 0.0
    %2686 = vmatpush1.msra.mxu0 0.0
    %2687 = vmatprep.subr.mxu0 0.0
    %2688 = vmatpush1.msra.mxu0 0.0
    %2689 = vmatprep.subr.mxu0 0.0
    %2690 = vmatpush1.msra.mxu0 0.0
    %2691 = vmatprep.subr.mxu0 0.0
    %2692 = vmatpush1.msra.mxu0 0.0
    %2693 = vmatprep.subr.mxu0 0.0
    %2694 = vmatpush1.msra.mxu0 0.0
    %2695 = vmatprep.subr.mxu0 0.0
    %2696 = vmatpush1.msra.mxu0 0.0
    %2697 = vmatprep.subr.mxu0 0.0
    %2698 = vmatpush1.msra.mxu0 0.0
    %2699 = vmatprep.subr.mxu0 0.0
    %2700 = vmatpush1.msra.mxu0 0.0
    %2701 = vmatprep.subr.mxu0 0.0
    %2702 = vmatpush1.msra.mxu0 0.0
    %2703 = vmatprep.mubr.f32.mxu0 0.0
    %2704 = vmatmul.mubr.f32.gmra.mrb[0].mxu0 %v2519
    %v2705 = vpop.f32.mrb[0].mxu0
    %v2706 = vadd.f32 %v2636, %v2705
    %v2707 = vpop.f32.mrb[0].mxu0
    %2708 = vdwg.mxu0
    %v2709 = vadd.f32 %v2213, %v2706
    %v2710 = vld [vmem:[%s0 + $0xa] sm:$0x3]
    %v2711 = vld [vmem:[%s0 + $0x1a] sm:$0x3]
    %v2712 = vld [vmem:[%s0 + $0x2a] sm:$0x3]
    %2713 = vmatprep.subr.mxu0 %v73
    %2714 = vmatpush1.msra.mxu0 %v72
    %2715 = vmatprep.subr.mxu0 %v76
    %2716 = vmatpush1.msra.mxu0 %v75
    %2717 = vmatprep.subr.mxu0 %v79
    %2718 = vmatpush1.msra.mxu0 %v78
    %2719 = vmatprep.subr.mxu0 %v82
    %2720 = vmatpush1.msra.mxu0 %v81
    %2721 = vmatprep.subr.mxu0 %v85
    %2722 = vmatpush1.msra.mxu0 %v84
    %2723 = vmatprep.subr.mxu0 %v88
    %2724 = vmatpush1.msra.mxu0 %v87
    %2725 = vmatprep.subr.mxu0 %v91
    %2726 = vmatpush1.msra.mxu0 %v90
    %2727 = vmatprep.subr.mxu0 %v94
    %2728 = vmatpush1.msra.mxu0 %v93
    %2729 = vmatprep.subr.mxu0 %v97
    %2730 = vmatpush1.msra.mxu0 %v96
    %2731 = vmatprep.subr.mxu0 %v100
    %2732 = vmatpush1.msra.mxu0 %v99
    %2733 = vmatprep.subr.mxu0 %v103
    %2734 = vmatpush1.msra.mxu0 %v102
    %2735 = vmatprep.subr.mxu0 %v106
    %2736 = vmatpush1.msra.mxu0 %v105
    %2737 = vmatprep.subr.mxu0 %v109
    %2738 = vmatpush1.msra.mxu0 %v108
    %2739 = vmatprep.subr.mxu0 %v112
    %2740 = vmatpush1.msra.mxu0 %v111
    %2741 = vmatprep.subr.mxu0 %v115
    %2742 = vmatpush1.msra.mxu0 %v114
    %2743 = vmatprep.subr.mxu0 %v118
    %2744 = vmatpush1.msra.mxu0 %v117
    %2745 = vmatprep.subr.mxu0 %v121
    %2746 = vmatpush1.msra.mxu0 %v120
    %2747 = vmatprep.subr.mxu0 %v124
    %2748 = vmatpush1.msra.mxu0 %v123
    %2749 = vmatprep.subr.mxu0 %v127
    %2750 = vmatpush1.msra.mxu0 %v126
    %2751 = vmatprep.subr.mxu0 %v130
    %2752 = vmatpush1.msra.mxu0 %v129
    %2753 = vmatprep.subr.mxu0 %v133
    %2754 = vmatpush1.msra.mxu0 %v132
    %2755 = vmatprep.subr.mxu0 %v136
    %2756 = vmatpush1.msra.mxu0 %v135
    %2757 = vmatprep.subr.mxu0 %v139
    %2758 = vmatpush1.msra.mxu0 %v138
    %2759 = vmatprep.subr.mxu0 %v142
    %2760 = vmatpush1.msra.mxu0 %v141
    %2761 = vmatprep.subr.mxu0 %v145
    %2762 = vmatpush1.msra.mxu0 %v144
    %2763 = vmatprep.subr.mxu0 %v148
    %2764 = vmatpush1.msra.mxu0 %v147
    %2765 = vmatprep.subr.mxu0 %v151
    %2766 = vmatpush1.msra.mxu0 %v150
    %2767 = vmatprep.subr.mxu0 %v154
    %2768 = vmatpush1.msra.mxu0 %v153
    %2769 = vmatprep.subr.mxu0 %v157
    %2770 = vmatpush1.msra.mxu0 %v156
    %2771 = vmatprep.subr.mxu0 %v160
    %2772 = vmatpush1.msra.mxu0 %v159
    %2773 = vmatprep.subr.mxu0 %v163
    %2774 = vmatpush1.msra.mxu0 %v162
    %2775 = vmatprep.subr.mxu0 %v166
    %2776 = vmatpush1.msra.mxu0 %v165
    %2777 = vmatprep.mubr.f32.mxu0 %v2711
    %2778 = vmatmul.mubr.f32.gmra.mrb[0].mxu0 %v2710
    %v2779 = vpop.f32.mrb[0].mxu0
    %v2780 = vadd.f32 %v224, %v2779
    %v2781 = vpop.f32.mrb[0].mxu0
    %v2782 = vadd.f32 %v228, %v2781
    %2783 = vdwg.mxu0
    %2784 = vmatprep.subr.mxu0 %v169
    %2785 = vmatpush1.msra.mxu0 %v168
    %2786 = vmatprep.subr.mxu0 %v172
    %2787 = vmatpush1.msra.mxu0 %v171
    %2788 = vmatprep.subr.mxu0 %v175
    %2789 = vmatpush1.msra.mxu0 %v174
    %2790 = vmatprep.subr.mxu0 %v178
    %2791 = vmatpush1.msra.mxu0 %v177
    %2792 = vmatprep.subr.mxu0 %v181
    %2793 = vmatpush1.msra.mxu0 %v180
    %2794 = vmatprep.subr.mxu0 %v184
    %2795 = vmatpush1.msra.mxu0 %v183
    %2796 = vmatprep.subr.mxu0 %v187
    %2797 = vmatpush1.msra.mxu0 %v186
    %2798 = vmatprep.subr.mxu0 %v190
    %2799 = vmatpush1.msra.mxu0 %v189
    %2800 = vmatprep.subr.mxu0 %v193
    %2801 = vmatpush1.msra.mxu0 %v192
    %2802 = vmatprep.subr.mxu0 %v196
    %2803 = vmatpush1.msra.mxu0 %v195
    %2804 = vmatprep.subr.mxu0 %v199
    %2805 = vmatpush1.msra.mxu0 %v198
    %2806 = vmatprep.subr.mxu0 %v202
    %2807 = vmatpush1.msra.mxu0 %v201
    %2808 = vmatprep.subr.mxu0 %v205
    %2809 = vmatpush1.msra.mxu0 %v204
    %2810 = vmatprep.subr.mxu0 %v208
    %2811 = vmatpush1.msra.mxu0 %v207
    %2812 = vmatprep.subr.mxu0 %v211
    %2813 = vmatpush1.msra.mxu0 %v210
    %2814 = vmatprep.subr.mxu0 %v214
    %2815 = vmatpush1.msra.mxu0 %v213
    %2816 = vmatprep.subr.mxu0 0.0
    %2817 = vmatpush1.msra.mxu0 0.0
    %2818 = vmatprep.subr.mxu0 0.0
    %2819 = vmatpush1.msra.mxu0 0.0
    %2820 = vmatprep.subr.mxu0 0.0
    %2821 = vmatpush1.msra.mxu0 0.0
    %2822 = vmatprep.subr.mxu0 0.0
    %2823 = vmatpush1.msra.mxu0 0.0
    %2824 = vmatprep.subr.mxu0 0.0
    %2825 = vmatpush1.msra.mxu0 0.0
    %2826 = vmatprep.subr.mxu0 0.0
    %2827 = vmatpush1.msra.mxu0 0.0
    %2828 = vmatprep.subr.mxu0 0.0
    %2829 = vmatpush1.msra.mxu0 0.0
    %2830 = vmatprep.subr.mxu0 0.0
    %2831 = vmatpush1.msra.mxu0 0.0
    %2832 = vmatprep.subr.mxu0 0.0
    %2833 = vmatpush1.msra.mxu0 0.0
    %2834 = vmatprep.subr.mxu0 0.0
    %2835 = vmatpush1.msra.mxu0 0.0
    %2836 = vmatprep.subr.mxu0 0.0
    %2837 = vmatpush1.msra.mxu0 0.0
    %2838 = vmatprep.subr.mxu0 0.0
    %2839 = vmatpush1.msra.mxu0 0.0
    %2840 = vmatprep.subr.mxu0 0.0
    %2841 = vmatpush1.msra.mxu0 0.0
    %2842 = vmatprep.subr.mxu0 0.0
    %2843 = vmatpush1.msra.mxu0 0.0
    %2844 = vmatprep.subr.mxu0 0.0
    %2845 = vmatpush1.msra.mxu0 0.0
    %2846 = vmatprep.subr.mxu0 0.0
    %2847 = vmatpush1.msra.mxu0 0.0
    %2848 = vmatprep.mubr.f32.mxu0 0.0
    %2849 = vmatmul.mubr.f32.gmra.mrb[0].mxu0 %v2712
    %v2850 = vpop.f32.mrb[0].mxu0
    %v2851 = vadd.f32 %v2780, %v2850
    %v2852 = vpop.f32.mrb[0].mxu0
    %v2853 = vadd.f32 %v2782, %v2852
    %2854 = vdwg.mxu0
    %2855 = vmatprep.subr.mxu0 0.0
    %2856 = vmatpush1.msra.mxu0 %v74
    %2857 = vmatprep.subr.mxu0 0.0
    %2858 = vmatpush1.msra.mxu0 %v77
    %2859 = vmatprep.subr.mxu0 0.0
    %2860 = vmatpush1.msra.mxu0 %v80
    %2861 = vmatprep.subr.mxu0 0.0
    %2862 = vmatpush1.msra.mxu0 %v83
    %2863 = vmatprep.subr.mxu0 0.0
    %2864 = vmatpush1.msra.mxu0 %v86
    %2865 = vmatprep.subr.mxu0 0.0
    %2866 = vmatpush1.msra.mxu0 %v89
    %2867 = vmatprep.subr.mxu0 0.0
    %2868 = vmatpush1.msra.mxu0 %v92
    %2869 = vmatprep.subr.mxu0 0.0
    %2870 = vmatpush1.msra.mxu0 %v95
    %2871 = vmatprep.subr.mxu0 0.0
    %2872 = vmatpush1.msra.mxu0 %v98
    %2873 = vmatprep.subr.mxu0 0.0
    %2874 = vmatpush1.msra.mxu0 %v101
    %2875 = vmatprep.subr.mxu0 0.0
    %2876 = vmatpush1.msra.mxu0 %v104
    %2877 = vmatprep.subr.mxu0 0.0
    %2878 = vmatpush1.msra.mxu0 %v107
    %2879 = vmatprep.subr.mxu0 0.0
    %2880 = vmatpush1.msra.mxu0 %v110
    %2881 = vmatprep.subr.mxu0 0.0
    %2882 = vmatpush1.msra.mxu0 %v113
    %2883 = vmatprep.subr.mxu0 0.0
    %2884 = vmatpush1.msra.mxu0 %v116
    %2885 = vmatprep.subr.mxu0 0.0
    %2886 = vmatpush1.msra.mxu0 %v119
    %2887 = vmatprep.subr.mxu0 0.0
    %2888 = vmatpush1.msra.mxu0 %v122
    %2889 = vmatprep.subr.mxu0 0.0
    %2890 = vmatpush1.msra.mxu0 %v125
    %2891 = vmatprep.subr.mxu0 0.0
    %2892 = vmatpush1.msra.mxu0 %v128
    %2893 = vmatprep.subr.mxu0 0.0
    %2894 = vmatpush1.msra.mxu0 %v131
    %2895 = vmatprep.subr.mxu0 0.0
    %2896 = vmatpush1.msra.mxu0 %v134
    %2897 = vmatprep.subr.mxu0 0.0
    %2898 = vmatpush1.msra.mxu0 %v137
    %2899 = vmatprep.subr.mxu0 0.0
    %2900 = vmatpush1.msra.mxu0 %v140
    %2901 = vmatprep.subr.mxu0 0.0
    %2902 = vmatpush1.msra.mxu0 %v143
    %2903 = vmatprep.subr.mxu0 0.0
    %2904 = vmatpush1.msra.mxu0 %v146
    %2905 = vmatprep.subr.mxu0 0.0
    %2906 = vmatpush1.msra.mxu0 %v149
    %2907 = vmatprep.subr.mxu0 0.0
    %2908 = vmatpush1.msra.mxu0 %v152
    %2909 = vmatprep.subr.mxu0 0.0
    %2910 = vmatpush1.msra.mxu0 %v155
    %2911 = vmatprep.subr.mxu0 0.0
    %2912 = vmatpush1.msra.mxu0 %v158
    %2913 = vmatprep.subr.mxu0 0.0
    %2914 = vmatpush1.msra.mxu0 %v161
    %2915 = vmatprep.subr.mxu0 0.0
    %2916 = vmatpush1.msra.mxu0 %v164
    %2917 = vmatprep.subr.mxu0 0.0
    %2918 = vmatpush1.msra.mxu0 %v167
    %2919 = vmatprep.mubr.f32.mxu0 %v2711
    %2920 = vmatmul.mubr.f32.gmra.mrb[0].mxu0 %v2710
    %v2921 = vpop.f32.mrb[0].mxu0
    %v2922 = vadd.f32 %v232, %v2921
    %v2923 = vpop.f32.mrb[0].mxu0
    %2924 = vdwg.mxu0
    %2925 = vmatprep.subr.mxu0 0.0
    %2926 = vmatpush1.msra.mxu0 %v170
    %2927 = vmatprep.subr.mxu0 0.0
    %2928 = vmatpush1.msra.mxu0 %v173
    %2929 = vmatprep.subr.mxu0 0.0
    %2930 = vmatpush1.msra.mxu0 %v176
    %2931 = vmatprep.subr.mxu0 0.0
    %2932 = vmatpush1.msra.mxu0 %v179
    %2933 = vmatprep.subr.mxu0 0.0
    %2934 = vmatpush1.msra.mxu0 %v182
    %2935 = vmatprep.subr.mxu0 0.0
    %2936 = vmatpush1.msra.mxu0 %v185
    %2937 = vmatprep.subr.mxu0 0.0
    %2938 = vmatpush1.msra.mxu0 %v188
    %2939 = vmatprep.subr.mxu0 0.0
    %2940 = vmatpush1.msra.mxu0 %v191
    %2941 = vmatprep.subr.mxu0 0.0
    %2942 = vmatpush1.msra.mxu0 %v194
    %2943 = vmatprep.subr.mxu0 0.0
    %2944 = vmatpush1.msra.mxu0 %v197
    %2945 = vmatprep.subr.mxu0 0.0
    %2946 = vmatpush1.msra.mxu0 %v200
    %2947 = vmatprep.subr.mxu0 0.0
    %2948 = vmatpush1.msra.mxu0 %v203
    %2949 = vmatprep.subr.mxu0 0.0
    %2950 = vmatpush1.msra.mxu0 %v206
    %2951 = vmatprep.subr.mxu0 0.0
    %2952 = vmatpush1.msra.mxu0 %v209
    %2953 = vmatprep.subr.mxu0 0.0
    %2954 = vmatpush1.msra.mxu0 %v212
    %2955 = vmatprep.subr.mxu0 0.0
    %2956 = vmatpush1.msra.mxu0 %v215
    %2957 = vmatprep.subr.mxu0 0.0
    %2958 = vmatpush1.msra.mxu0 0.0
    %2959 = vmatprep.subr.mxu0 0.0
    %2960 = vmatpush1.msra.mxu0 0.0
    %2961 = vmatprep.subr.mxu0 0.0
    %2962 = vmatpush1.msra.mxu0 0.0
    %2963 = vmatprep.subr.mxu0 0.0
    %2964 = vmatpush1.msra.mxu0 0.0
    %2965 = vmatprep.subr.mxu0 0.0
    %2966 = vmatpush1.msra.mxu0 0.0
    %2967 = vmatprep.subr.mxu0 0.0
    %2968 = vmatpush1.msra.mxu0 0.0
    %2969 = vmatprep.subr.mxu0 0.0
    %2970 = vmatpush1.msra.mxu0 0.0
    %2971 = vmatprep.subr.mxu0 0.0
    %2972 = vmatpush1.msra.mxu0 0.0
    %2973 = vmatprep.subr.mxu0 0.0
    %2974 = vmatpush1.msra.mxu0 0.0
    %2975 = vmatprep.subr.mxu0 0.0
    %2976 = vmatpush1.msra.mxu0 0.0
    %2977 = vmatprep.subr.mxu0 0.0
    %2978 = vmatpush1.msra.mxu0 0.0
    %2979 = vmatprep.subr.mxu0 0.0
    %2980 = vmatpush1.msra.mxu0 0.0
    %2981 = vmatprep.subr.mxu0 0.0
    %2982 = vmatpush1.msra.mxu0 0.0
    %2983 = vmatprep.subr.mxu0 0.0
    %2984 = vmatpush1.msra.mxu0 0.0
    %2985 = vmatprep.subr.mxu0 0.0
    %2986 = vmatpush1.msra.mxu0 0.0
    %2987 = vmatprep.subr.mxu0 0.0
    %2988 = vmatpush1.msra.mxu0 0.0
    %2989 = vmatprep.mubr.f32.mxu0 0.0
    %2990 = vmatmul.mubr.f32.gmra.mrb[0].mxu0 %v2712
    %v2991 = vpop.f32.mrb[0].mxu0
    %v2992 = vadd.f32 %v2922, %v2991
    %v2993 = vpop.f32.mrb[0].mxu0
    %2994 = vdwg.mxu0
    %v2995 = vsub.f32 0.0, %v2851
    %v2996 = vsub.f32 0.0, %v2853
    %v2997 = vsub.f32 0.0, %v2992
    %v2998 = vmul.f32 %v2995, 1.442695
    %v2999 = vpow.pop %v2998
    %v3000 = vmul.f32 %v2996, 1.442695
    %v3001 = vpow.pop %v3000
    %v3002 = vmul.f32 %v2997, 1.442695
    %v3003 = vpow.pop %v3002
    %v3004 = vadd.f32 %v2999, 1.0
    %v3005 = vadd.f32 %v3001, 1.0
    %v3006 = vadd.f32 %v3003, 1.0
    %v3007 = vrcp.pop %v3004
    %v3008 = vmul.f32 1.0, %v3007
    %v3009 = vrcp.pop %v3005
    %v3010 = vmul.f32 1.0, %v3009
    %v3011 = vrcp.pop %v3006
    %v3012 = vmul.f32 1.0, %v3011
    %v3013 = vmul.f32 %v2851, %v3008
    %v3014 = vmul.f32 %v2853, %v3010
    %v3015 = vmul.f32 %v2992, %v3012
    %s3016 = scalar_lea.vmem [#allocation7], 1920
    %v3017 = vld [vmem:[%s3016] sm:$0xff]
    %v3018 = vld [vmem:[%s3016 + $0x8] sm:$0xff]
    %v3019 = vld [vmem:[%s3016 + $0x10] sm:$0xff]
    %v3020 = vld [vmem:[%s3016 + $0x18] sm:$0xff]
    %v3021 = vld [vmem:[%s3016 + $0x20] sm:$0xff]
    %v3022 = vld [vmem:[%s3016 + $0x28] sm:$0xff]
    %v3023 = vld [vmem:[%s3016 + $0x30] sm:$0xff]
    %v3024 = vld [vmem:[%s3016 + $0x38] sm:$0xff]
    %v3025 = vld [vmem:[%s3016 + $0x40] sm:$0xff]
    %v3026 = vld [vmem:[%s3016 + $0x48] sm:$0xff]
    %v3027 = vld [vmem:[%s3016 + $0x50] sm:$0xff]
    %v3028 = vld [vmem:[%s3016 + $0x58] sm:$0xff]
    %v3029 = vld [vmem:[%s3016 + $0x60] sm:$0xff]
    %v3030 = vld [vmem:[%s3016 + $0x68] sm:$0xff]
    %v3031 = vld [vmem:[%s3016 + $0x70] sm:$0xff]
    %v3032 = vld [vmem:[%s3016 + $0x78] sm:$0xff]
    %v3033 = vld [vmem:[%s3016 + $0x80] sm:$0xff]
    %v3034 = vld [vmem:[%s3016 + $0x88] sm:$0xff]
    %v3035 = vld [vmem:[%s3016 + $0x90] sm:$0xff]
    %v3036 = vld [vmem:[%s3016 + $0x98] sm:$0xff]
    %v3037 = vld [vmem:[%s3016 + $0xa0] sm:$0xff]
    %v3038 = vld [vmem:[%s3016 + $0xa8] sm:$0xff]
    %v3039 = vld [vmem:[%s3016 + $0xb0] sm:$0xff]
    %v3040 = vld [vmem:[%s3016 + $0xb8] sm:$0xff]
    %v3041 = vld [vmem:[%s3016 + $0xc0] sm:$0xff]
    %v3042 = vld [vmem:[%s3016 + $0xc8] sm:$0xff]
    %v3043 = vld [vmem:[%s3016 + $0xd0] sm:$0xff]
    %v3044 = vld [vmem:[%s3016 + $0xd8] sm:$0xff]
    %v3045 = vld [vmem:[%s3016 + $0xe0] sm:$0xff]
    %v3046 = vld [vmem:[%s3016 + $0xe8] sm:$0xff]
    %v3047 = vld [vmem:[%s3016 + $0xf0] sm:$0xff]
    %v3048 = vld [vmem:[%s3016 + $0xf8] sm:$0xff]
    %v3049 = vld [vmem:[%s3016 + $0x100] sm:$0xff]
    %v3050 = vld [vmem:[%s3016 + $0x108] sm:$0xff]
    %v3051 = vld [vmem:[%s3016 + $0x110] sm:$0xff]
    %v3052 = vld [vmem:[%s3016 + $0x118] sm:$0xff]
    %v3053 = vld [vmem:[%s3016 + $0x120] sm:$0xff]
    %v3054 = vld [vmem:[%s3016 + $0x128] sm:$0xff]
    %v3055 = vld [vmem:[%s3016 + $0x130] sm:$0xff]
    %v3056 = vld [vmem:[%s3016 + $0x138] sm:$0xff]
    %v3057 = vld [vmem:[%s3016 + $0x140] sm:$0xff]
    %v3058 = vld [vmem:[%s3016 + $0x148] sm:$0xff]
    %v3059 = vld [vmem:[%s3016 + $0x150] sm:$0xff]
    %v3060 = vld [vmem:[%s3016 + $0x158] sm:$0xff]
    %v3061 = vld [vmem:[%s3016 + $0x160] sm:$0xff]
    %v3062 = vld [vmem:[%s3016 + $0x168] sm:$0xff]
    %v3063 = vld [vmem:[%s3016 + $0x170] sm:$0xff]
    %v3064 = vld [vmem:[%s3016 + $0x178] sm:$0xff]
    %3065 = vmatprep.subr.mxu0 0.0
    %3066 = vmatpush1.msra.mxu0 %v3017
    %3067 = vmatprep.subr.mxu0 0.0
    %3068 = vmatpush1.msra.mxu0 %v3018
    %3069 = vmatprep.subr.mxu0 0.0
    %3070 = vmatpush1.msra.mxu0 %v3019
    %3071 = vmatprep.subr.mxu0 0.0
    %3072 = vmatpush1.msra.mxu0 %v3020
    %3073 = vmatprep.subr.mxu0 0.0
    %3074 = vmatpush1.msra.mxu0 %v3021
    %3075 = vmatprep.subr.mxu0 0.0
    %3076 = vmatpush1.msra.mxu0 %v3022
    %3077 = vmatprep.subr.mxu0 0.0
    %3078 = vmatpush1.msra.mxu0 %v3023
    %3079 = vmatprep.subr.mxu0 0.0
    %3080 = vmatpush1.msra.mxu0 %v3024
    %3081 = vmatprep.subr.mxu0 0.0
    %3082 = vmatpush1.msra.mxu0 %v3025
    %3083 = vmatprep.subr.mxu0 0.0
    %3084 = vmatpush1.msra.mxu0 %v3026
    %3085 = vmatprep.subr.mxu0 0.0
    %3086 = vmatpush1.msra.mxu0 %v3027
    %3087 = vmatprep.subr.mxu0 0.0
    %3088 = vmatpush1.msra.mxu0 %v3028
    %3089 = vmatprep.subr.mxu0 0.0
    %3090 = vmatpush1.msra.mxu0 %v3029
    %3091 = vmatprep.subr.mxu0 0.0
    %3092 = vmatpush1.msra.mxu0 %v3030
    %3093 = vmatprep.subr.mxu0 0.0
    %3094 = vmatpush1.msra.mxu0 %v3031
    %3095 = vmatprep.subr.mxu0 0.0
    %3096 = vmatpush1.msra.mxu0 %v3032
    %3097 = vmatprep.subr.mxu0 0.0
    %3098 = vmatpush1.msra.mxu0 %v3033
    %3099 = vmatprep.subr.mxu0 0.0
    %3100 = vmatpush1.msra.mxu0 %v3034
    %3101 = vmatprep.subr.mxu0 0.0
    %3102 = vmatpush1.msra.mxu0 %v3035
    %3103 = vmatprep.subr.mxu0 0.0
    %3104 = vmatpush1.msra.mxu0 %v3036
    %3105 = vmatprep.subr.mxu0 0.0
    %3106 = vmatpush1.msra.mxu0 %v3037
    %3107 = vmatprep.subr.mxu0 0.0
    %3108 = vmatpush1.msra.mxu0 %v3038
    %3109 = vmatprep.subr.mxu0 0.0
    %3110 = vmatpush1.msra.mxu0 %v3039
    %3111 = vmatprep.subr.mxu0 0.0
    %3112 = vmatpush1.msra.mxu0 %v3040
    %3113 = vmatprep.subr.mxu0 0.0
    %3114 = vmatpush1.msra.mxu0 %v3041
    %3115 = vmatprep.subr.mxu0 0.0
    %3116 = vmatpush1.msra.mxu0 %v3042
    %3117 = vmatprep.subr.mxu0 0.0
    %3118 = vmatpush1.msra.mxu0 %v3043
    %3119 = vmatprep.subr.mxu0 0.0
    %3120 = vmatpush1.msra.mxu0 %v3044
    %3121 = vmatprep.subr.mxu0 0.0
    %3122 = vmatpush1.msra.mxu0 %v3045
    %3123 = vmatprep.subr.mxu0 0.0
    %3124 = vmatpush1.msra.mxu0 %v3046
    %3125 = vmatprep.subr.mxu0 0.0
    %3126 = vmatpush1.msra.mxu0 %v3047
    %3127 = vmatprep.subr.mxu0 0.0
    %3128 = vmatpush1.msra.mxu0 %v3048
    %3129 = vmatprep.mubr.f32.mxu0 %v3014
    %3130 = vmatmul.mubr.f32.gmra.mrb[0].mxu0 %v3013
    %v3131 = vpop.f32.mrb[0].mxu0
    %v3132 = vadd.f32 0.0, %v3131
    %v3133 = vpop.f32.mrb[0].mxu0
    %3134 = vdwg.mxu0
    %3135 = vmatprep.subr.mxu0 0.0
    %3136 = vmatpush1.msra.mxu0 %v3049
    %3137 = vmatprep.subr.mxu0 0.0
    %3138 = vmatpush1.msra.mxu0 %v3050
    %3139 = vmatprep.subr.mxu0 0.0
    %3140 = vmatpush1.msra.mxu0 %v3051
    %3141 = vmatprep.subr.mxu0 0.0
    %3142 = vmatpush1.msra.mxu0 %v3052
    %3143 = vmatprep.subr.mxu0 0.0
    %3144 = vmatpush1.msra.mxu0 %v3053
    %3145 = vmatprep.subr.mxu0 0.0
    %3146 = vmatpush1.msra.mxu0 %v3054
    %3147 = vmatprep.subr.mxu0 0.0
    %3148 = vmatpush1.msra.mxu0 %v3055
    %3149 = vmatprep.subr.mxu0 0.0
    %3150 = vmatpush1.msra.mxu0 %v3056
    %3151 = vmatprep.subr.mxu0 0.0
    %3152 = vmatpush1.msra.mxu0 %v3057
    %3153 = vmatprep.subr.mxu0 0.0
    %3154 = vmatpush1.msra.mxu0 %v3058
    %3155 = vmatprep.subr.mxu0 0.0
    %3156 = vmatpush1.msra.mxu0 %v3059
    %3157 = vmatprep.subr.mxu0 0.0
    %3158 = vmatpush1.msra.mxu0 %v3060
    %3159 = vmatprep.subr.mxu0 0.0
    %3160 = vmatpush1.msra.mxu0 %v3061
    %3161 = vmatprep.subr.mxu0 0.0
    %3162 = vmatpush1.msra.mxu0 %v3062
    %3163 = vmatprep.subr.mxu0 0.0
    %3164 = vmatpush1.msra.mxu0 %v3063
    %3165 = vmatprep.subr.mxu0 0.0
    %3166 = vmatpush1.msra.mxu0 %v3064
    %3167 = vmatprep.subr.mxu0 0.0
    %3168 = vmatpush1.msra.mxu0 0.0
    %3169 = vmatprep.subr.mxu0 0.0
    %3170 = vmatpush1.msra.mxu0 0.0
    %3171 = vmatprep.subr.mxu0 0.0
    %3172 = vmatpush1.msra.mxu0 0.0
    %3173 = vmatprep.subr.mxu0 0.0
    %3174 = vmatpush1.msra.mxu0 0.0
    %3175 = vmatprep.subr.mxu0 0.0
    %3176 = vmatpush1.msra.mxu0 0.0
    %3177 = vmatprep.subr.mxu0 0.0
    %3178 = vmatpush1.msra.mxu0 0.0
    %3179 = vmatprep.subr.mxu0 0.0
    %3180 = vmatpush1.msra.mxu0 0.0
    %3181 = vmatprep.subr.mxu0 0.0
    %3182 = vmatpush1.msra.mxu0 0.0
    %3183 = vmatprep.subr.mxu0 0.0
    %3184 = vmatpush1.msra.mxu0 0.0
    %3185 = vmatprep.subr.mxu0 0.0
    %3186 = vmatpush1.msra.mxu0 0.0
    %3187 = vmatprep.subr.mxu0 0.0
    %3188 = vmatpush1.msra.mxu0 0.0
    %3189 = vmatprep.subr.mxu0 0.0
    %3190 = vmatpush1.msra.mxu0 0.0
    %3191 = vmatprep.subr.mxu0 0.0
    %3192 = vmatpush1.msra.mxu0 0.0
    %3193 = vmatprep.subr.mxu0 0.0
    %3194 = vmatpush1.msra.mxu0 0.0
    %3195 = vmatprep.subr.mxu0 0.0
    %3196 = vmatpush1.msra.mxu0 0.0
    %3197 = vmatprep.subr.mxu0 0.0
    %3198 = vmatpush1.msra.mxu0 0.0
    %3199 = vmatprep.mubr.f32.mxu0 0.0
    %3200 = vmatmul.mubr.f32.gmra.mrb[0].mxu0 %v3015
    %v3201 = vpop.f32.mrb[0].mxu0
    %v3202 = vadd.f32 %v3132, %v3201
    %v3203 = vpop.f32.mrb[0].mxu0
    %3204 = vdwg.mxu0
    %v3205 = vadd.f32 %v2709, %v3202
    %v3206 = vld [vmem:[%s0 + $0xc] sm:$0x3]
    %v3207 = vld [vmem:[%s0 + $0x1c] sm:$0x3]
    %v3208 = vld [vmem:[%s0 + $0x2c] sm:$0x3]
    %3209 = vmatprep.subr.mxu0 %v73
    %3210 = vmatpush1.msra.mxu0 %v72
    %3211 = vmatprep.subr.mxu0 %v76
    %3212 = vmatpush1.msra.mxu0 %v75
    %3213 = vmatprep.subr.mxu0 %v79
    %3214 = vmatpush1.msra.mxu0 %v78
    %3215 = vmatprep.subr.mxu0 %v82
    %3216 = vmatpush1.msra.mxu0 %v81
    %3217 = vmatprep.subr.mxu0 %v85
    %3218 = vmatpush1.msra.mxu0 %v84
    %3219 = vmatprep.subr.mxu0 %v88
    %3220 = vmatpush1.msra.mxu0 %v87
    %3221 = vmatprep.subr.mxu0 %v91
    %3222 = vmatpush1.msra.mxu0 %v90
    %3223 = vmatprep.subr.mxu0 %v94
    %3224 = vmatpush1.msra.mxu0 %v93
    %3225 = vmatprep.subr.mxu0 %v97
    %3226 = vmatpush1.msra.mxu0 %v96
    %3227 = vmatprep.subr.mxu0 %v100
    %3228 = vmatpush1.msra.mxu0 %v99
    %3229 = vmatprep.subr.mxu0 %v103
    %3230 = vmatpush1.msra.mxu0 %v102
    %3231 = vmatprep.subr.mxu0 %v106
    %3232 = vmatpush1.msra.mxu0 %v105
    %3233 = vmatprep.subr.mxu0 %v109
    %3234 = vmatpush1.msra.mxu0 %v108
    %3235 = vmatprep.subr.mxu0 %v112
    %3236 = vmatpush1.msra.mxu0 %v111
    %3237 = vmatprep.subr.mxu0 %v115
    %3238 = vmatpush1.msra.mxu0 %v114
    %3239 = vmatprep.subr.mxu0 %v118
    %3240 = vmatpush1.msra.mxu0 %v117
    %3241 = vmatprep.subr.mxu0 %v121
    %3242 = vmatpush1.msra.mxu0 %v120
    %3243 = vmatprep.subr.mxu0 %v124
    %3244 = vmatpush1.msra.mxu0 %v123
    %3245 = vmatprep.subr.mxu0 %v127
    %3246 = vmatpush1.msra.mxu0 %v126
    %3247 = vmatprep.subr.mxu0 %v130
    %3248 = vmatpush1.msra.mxu0 %v129
    %3249 = vmatprep.subr.mxu0 %v133
    %3250 = vmatpush1.msra.mxu0 %v132
    %3251 = vmatprep.subr.mxu0 %v136
    %3252 = vmatpush1.msra.mxu0 %v135
    %3253 = vmatprep.subr.mxu0 %v139
    %3254 = vmatpush1.msra.mxu0 %v138
    %3255 = vmatprep.subr.mxu0 %v142
    %3256 = vmatpush1.msra.mxu0 %v141
    %3257 = vmatprep.subr.mxu0 %v145
    %3258 = vmatpush1.msra.mxu0 %v144
    %3259 = vmatprep.subr.mxu0 %v148
    %3260 = vmatpush1.msra.mxu0 %v147
    %3261 = vmatprep.subr.mxu0 %v151
    %3262 = vmatpush1.msra.mxu0 %v150
    %3263 = vmatprep.subr.mxu0 %v154
    %3264 = vmatpush1.msra.mxu0 %v153
    %3265 = vmatprep.subr.mxu0 %v157
    %3266 = vmatpush1.msra.mxu0 %v156
    %3267 = vmatprep.subr.mxu0 %v160
    %3268 = vmatpush1.msra.mxu0 %v159
    %3269 = vmatprep.subr.mxu0 %v163
    %3270 = vmatpush1.msra.mxu0 %v162
    %3271 = vmatprep.subr.mxu0 %v166
    %3272 = vmatpush1.msra.mxu0 %v165
    %3273 = vmatprep.mubr.f32.mxu0 %v3207
    %3274 = vmatmul.mubr.f32.gmra.mrb[0].mxu0 %v3206
    %v3275 = vpop.f32.mrb[0].mxu0
    %v3276 = vadd.f32 %v224, %v3275
    %v3277 = vpop.f32.mrb[0].mxu0
    %v3278 = vadd.f32 %v228, %v3277
    %3279 = vdwg.mxu0
    %3280 = vmatprep.subr.mxu0 %v169
    %3281 = vmatpush1.msra.mxu0 %v168
    %3282 = vmatprep.subr.mxu0 %v172
    %3283 = vmatpush1.msra.mxu0 %v171
    %3284 = vmatprep.subr.mxu0 %v175
    %3285 = vmatpush1.msra.mxu0 %v174
    %3286 = vmatprep.subr.mxu0 %v178
    %3287 = vmatpush1.msra.mxu0 %v177
    %3288 = vmatprep.subr.mxu0 %v181
    %3289 = vmatpush1.msra.mxu0 %v180
    %3290 = vmatprep.subr.mxu0 %v184
    %3291 = vmatpush1.msra.mxu0 %v183
    %3292 = vmatprep.subr.mxu0 %v187
    %3293 = vmatpush1.msra.mxu0 %v186
    %3294 = vmatprep.subr.mxu0 %v190
    %3295 = vmatpush1.msra.mxu0 %v189
    %3296 = vmatprep.subr.mxu0 %v193
    %3297 = vmatpush1.msra.mxu0 %v192
    %3298 = vmatprep.subr.mxu0 %v196
    %3299 = vmatpush1.msra.mxu0 %v195
    %3300 = vmatprep.subr.mxu0 %v199
    %3301 = vmatpush1.msra.mxu0 %v198
    %3302 = vmatprep.subr.mxu0 %v202
    %3303 = vmatpush1.msra.mxu0 %v201
    %3304 = vmatprep.subr.mxu0 %v205
    %3305 = vmatpush1.msra.mxu0 %v204
    %3306 = vmatprep.subr.mxu0 %v208
    %3307 = vmatpush1.msra.mxu0 %v207
    %3308 = vmatprep.subr.mxu0 %v211
    %3309 = vmatpush1.msra.mxu0 %v210
    %3310 = vmatprep.subr.mxu0 %v214
    %3311 = vmatpush1.msra.mxu0 %v213
    %3312 = vmatprep.subr.mxu0 0.0
    %3313 = vmatpush1.msra.mxu0 0.0
    %3314 = vmatprep.subr.mxu0 0.0
    %3315 = vmatpush1.msra.mxu0 0.0
    %3316 = vmatprep.subr.mxu0 0.0
    %3317 = vmatpush1.msra.mxu0 0.0
    %3318 = vmatprep.subr.mxu0 0.0
    %3319 = vmatpush1.msra.mxu0 0.0
    %3320 = vmatprep.subr.mxu0 0.0
    %3321 = vmatpush1.msra.mxu0 0.0
    %3322 = vmatprep.subr.mxu0 0.0
    %3323 = vmatpush1.msra.mxu0 0.0
    %3324 = vmatprep.subr.mxu0 0.0
    %3325 = vmatpush1.msra.mxu0 0.0
    %3326 = vmatprep.subr.mxu0 0.0
    %3327 = vmatpush1.msra.mxu0 0.0
    %3328 = vmatprep.subr.mxu0 0.0
    %3329 = vmatpush1.msra.mxu0 0.0
    %3330 = vmatprep.subr.mxu0 0.0
    %3331 = vmatpush1.msra.mxu0 0.0
    %3332 = vmatprep.subr.mxu0 0.0
    %3333 = vmatpush1.msra.mxu0 0.0
    %3334 = vmatprep.subr.mxu0 0.0
    %3335 = vmatpush1.msra.mxu0 0.0
    %3336 = vmatprep.subr.mxu0 0.0
    %3337 = vmatpush1.msra.mxu0 0.0
    %3338 = vmatprep.subr.mxu0 0.0
    %3339 = vmatpush1.msra.mxu0 0.0
    %3340 = vmatprep.subr.mxu0 0.0
    %3341 = vmatpush1.msra.mxu0 0.0
    %3342 = vmatprep.subr.mxu0 0.0
    %3343 = vmatpush1.msra.mxu0 0.0
    %3344 = vmatprep.mubr.f32.mxu0 0.0
    %3345 = vmatmul.mubr.f32.gmra.mrb[0].mxu0 %v3208
    %v3346 = vpop.f32.mrb[0].mxu0
    %v3347 = vadd.f32 %v3276, %v3346
    %v3348 = vpop.f32.mrb[0].mxu0
    %v3349 = vadd.f32 %v3278, %v3348
    %3350 = vdwg.mxu0
    %3351 = vmatprep.subr.mxu0 0.0
    %3352 = vmatpush1.msra.mxu0 %v74
    %3353 = vmatprep.subr.mxu0 0.0
    %3354 = vmatpush1.msra.mxu0 %v77
    %3355 = vmatprep.subr.mxu0 0.0
    %3356 = vmatpush1.msra.mxu0 %v80
    %3357 = vmatprep.subr.mxu0 0.0
    %3358 = vmatpush1.msra.mxu0 %v83
    %3359 = vmatprep.subr.mxu0 0.0
    %3360 = vmatpush1.msra.mxu0 %v86
    %3361 = vmatprep.subr.mxu0 0.0
    %3362 = vmatpush1.msra.mxu0 %v89
    %3363 = vmatprep.subr.mxu0 0.0
    %3364 = vmatpush1.msra.mxu0 %v92
    %3365 = vmatprep.subr.mxu0 0.0
    %3366 = vmatpush1.msra.mxu0 %v95
    %3367 = vmatprep.subr.mxu0 0.0
    %3368 = vmatpush1.msra.mxu0 %v98
    %3369 = vmatprep.subr.mxu0 0.0
    %3370 = vmatpush1.msra.mxu0 %v101
    %3371 = vmatprep.subr.mxu0 0.0
    %3372 = vmatpush1.msra.mxu0 %v104
    %3373 = vmatprep.subr.mxu0 0.0
    %3374 = vmatpush1.msra.mxu0 %v107
    %3375 = vmatprep.subr.mxu0 0.0
    %3376 = vmatpush1.msra.mxu0 %v110
    %3377 = vmatprep.subr.mxu0 0.0
    %3378 = vmatpush1.msra.mxu0 %v113
    %3379 = vmatprep.subr.mxu0 0.0
    %3380 = vmatpush1.msra.mxu0 %v116
    %3381 = vmatprep.subr.mxu0 0.0
    %3382 = vmatpush1.msra.mxu0 %v119
    %3383 = vmatprep.subr.mxu0 0.0
    %3384 = vmatpush1.msra.mxu0 %v122
    %3385 = vmatprep.subr.mxu0 0.0
    %3386 = vmatpush1.msra.mxu0 %v125
    %3387 = vmatprep.subr.mxu0 0.0
    %3388 = vmatpush1.msra.mxu0 %v128
    %3389 = vmatprep.subr.mxu0 0.0
    %3390 = vmatpush1.msra.mxu0 %v131
    %3391 = vmatprep.subr.mxu0 0.0
    %3392 = vmatpush1.msra.mxu0 %v134
    %3393 = vmatprep.subr.mxu0 0.0
    %3394 = vmatpush1.msra.mxu0 %v137
    %3395 = vmatprep.subr.mxu0 0.0
    %3396 = vmatpush1.msra.mxu0 %v140
    %3397 = vmatprep.subr.mxu0 0.0
    %3398 = vmatpush1.msra.mxu0 %v143
    %3399 = vmatprep.subr.mxu0 0.0
    %3400 = vmatpush1.msra.mxu0 %v146
    %3401 = vmatprep.subr.mxu0 0.0
    %3402 = vmatpush1.msra.mxu0 %v149
    %3403 = vmatprep.subr.mxu0 0.0
    %3404 = vmatpush1.msra.mxu0 %v152
    %3405 = vmatprep.subr.mxu0 0.0
    %3406 = vmatpush1.msra.mxu0 %v155
    %3407 = vmatprep.subr.mxu0 0.0
    %3408 = vmatpush1.msra.mxu0 %v158
    %3409 = vmatprep.subr.mxu0 0.0
    %3410 = vmatpush1.msra.mxu0 %v161
    %3411 = vmatprep.subr.mxu0 0.0
    %3412 = vmatpush1.msra.mxu0 %v164
    %3413 = vmatprep.subr.mxu0 0.0
    %3414 = vmatpush1.msra.mxu0 %v167
    %3415 = vmatprep.mubr.f32.mxu0 %v3207
    %3416 = vmatmul.mubr.f32.gmra.mrb[0].mxu0 %v3206
    %v3417 = vpop.f32.mrb[0].mxu0
    %v3418 = vadd.f32 %v232, %v3417
    %v3419 = vpop.f32.mrb[0].mxu0
    %3420 = vdwg.mxu0
    %3421 = vmatprep.subr.mxu0 0.0
    %3422 = vmatpush1.msra.mxu0 %v170
    %3423 = vmatprep.subr.mxu0 0.0
    %3424 = vmatpush1.msra.mxu0 %v173
    %3425 = vmatprep.subr.mxu0 0.0
    %3426 = vmatpush1.msra.mxu0 %v176
    %3427 = vmatprep.subr.mxu0 0.0
    %3428 = vmatpush1.msra.mxu0 %v179
    %3429 = vmatprep.subr.mxu0 0.0
    %3430 = vmatpush1.msra.mxu0 %v182
    %3431 = vmatprep.subr.mxu0 0.0
    %3432 = vmatpush1.msra.mxu0 %v185
    %3433 = vmatprep.subr.mxu0 0.0
    %3434 = vmatpush1.msra.mxu0 %v188
    %3435 = vmatprep.subr.mxu0 0.0
    %3436 = vmatpush1.msra.mxu0 %v191
    %3437 = vmatprep.subr.mxu0 0.0
    %3438 = vmatpush1.msra.mxu0 %v194
    %3439 = vmatprep.subr.mxu0 0.0
    %3440 = vmatpush1.msra.mxu0 %v197
    %3441 = vmatprep.subr.mxu0 0.0
    %3442 = vmatpush1.msra.mxu0 %v200
    %3443 = vmatprep.subr.mxu0 0.0
    %3444 = vmatpush1.msra.mxu0 %v203
    %3445 = vmatprep.subr.mxu0 0.0
    %3446 = vmatpush1.msra.mxu0 %v206
    %3447 = vmatprep.subr.mxu0 0.0
    %3448 = vmatpush1.msra.mxu0 %v209
    %3449 = vmatprep.subr.mxu0 0.0
    %3450 = vmatpush1.msra.mxu0 %v212
    %3451 = vmatprep.subr.mxu0 0.0
    %3452 = vmatpush1.msra.mxu0 %v215
    %3453 = vmatprep.subr.mxu0 0.0
    %3454 = vmatpush1.msra.mxu0 0.0
    %3455 = vmatprep.subr.mxu0 0.0
    %3456 = vmatpush1.msra.mxu0 0.0
    %3457 = vmatprep.subr.mxu0 0.0
    %3458 = vmatpush1.msra.mxu0 0.0
    %3459 = vmatprep.subr.mxu0 0.0
    %3460 = vmatpush1.msra.mxu0 0.0
    %3461 = vmatprep.subr.mxu0 0.0
    %3462 = vmatpush1.msra.mxu0 0.0
    %3463 = vmatprep.subr.mxu0 0.0
    %3464 = vmatpush1.msra.mxu0 0.0
    %3465 = vmatprep.subr.mxu0 0.0
    %3466 = vmatpush1.msra.mxu0 0.0
    %3467 = vmatprep.subr.mxu0 0.0
    %3468 = vmatpush1.msra.mxu0 0.0
    %3469 = vmatprep.subr.mxu0 0.0
    %3470 = vmatpush1.msra.mxu0 0.0
    %3471 = vmatprep.subr.mxu0 0.0
    %3472 = vmatpush1.msra.mxu0 0.0
    %3473 = vmatprep.subr.mxu0 0.0
    %3474 = vmatpush1.msra.mxu0 0.0
    %3475 = vmatprep.subr.mxu0 0.0
    %3476 = vmatpush1.msra.mxu0 0.0
    %3477 = vmatprep.subr.mxu0 0.0
    %3478 = vmatpush1.msra.mxu0 0.0
    %3479 = vmatprep.subr.mxu0 0.0
    %3480 = vmatpush1.msra.mxu0 0.0
    %3481 = vmatprep.subr.mxu0 0.0
    %3482 = vmatpush1.msra.mxu0 0.0
    %3483 = vmatprep.subr.mxu0 0.0
    %3484 = vmatpush1.msra.mxu0 0.0
    %3485 = vmatprep.mubr.f32.mxu0 0.0
    %3486 = vmatmul.mubr.f32.gmra.mrb[0].mxu0 %v3208
    %v3487 = vpop.f32.mrb[0].mxu0
    %v3488 = vadd.f32 %v3418, %v3487
    %v3489 = vpop.f32.mrb[0].mxu0
    %3490 = vdwg.mxu0
    %v3491 = vsub.f32 0.0, %v3347
    %v3492 = vsub.f32 0.0, %v3349
    %v3493 = vsub.f32 0.0, %v3488
    %v3494 = vmul.f32 %v3491, 1.442695
    %v3495 = vpow.pop %v3494
    %v3496 = vmul.f32 %v3492, 1.442695
    %v3497 = vpow.pop %v3496
    %v3498 = vmul.f32 %v3493, 1.442695
    %v3499 = vpow.pop %v3498
    %v3500 = vadd.f32 %v3495, 1.0
    %v3501 = vadd.f32 %v3497, 1.0
    %v3502 = vadd.f32 %v3499, 1.0
    %v3503 = vrcp.pop %v3500
    %v3504 = vmul.f32 1.0, %v3503
    %v3505 = vrcp.pop %v3501
    %v3506 = vmul.f32 1.0, %v3505
    %v3507 = vrcp.pop %v3502
    %v3508 = vmul.f32 1.0, %v3507
    %v3509 = vmul.f32 %v3347, %v3504
    %v3510 = vmul.f32 %v3349, %v3506
    %v3511 = vmul.f32 %v3488, %v3508
    %s3512 = scalar_lea.vmem [#allocation7], 2304
    %v3513 = vld [vmem:[%s3512] sm:$0xff]
    %v3514 = vld [vmem:[%s3512 + $0x8] sm:$0xff]
    %v3515 = vld [vmem:[%s3512 + $0x10] sm:$0xff]
    %v3516 = vld [vmem:[%s3512 + $0x18] sm:$0xff]
    %v3517 = vld [vmem:[%s3512 + $0x20] sm:$0xff]
    %v3518 = vld [vmem:[%s3512 + $0x28] sm:$0xff]
    %v3519 = vld [vmem:[%s3512 + $0x30] sm:$0xff]
    %v3520 = vld [vmem:[%s3512 + $0x38] sm:$0xff]
    %v3521 = vld [vmem:[%s3512 + $0x40] sm:$0xff]
    %v3522 = vld [vmem:[%s3512 + $0x48] sm:$0xff]
    %v3523 = vld [vmem:[%s3512 + $0x50] sm:$0xff]
    %v3524 = vld [vmem:[%s3512 + $0x58] sm:$0xff]
    %v3525 = vld [vmem:[%s3512 + $0x60] sm:$0xff]
    %v3526 = vld [vmem:[%s3512 + $0x68] sm:$0xff]
    %v3527 = vld [vmem:[%s3512 + $0x70] sm:$0xff]
    %v3528 = vld [vmem:[%s3512 + $0x78] sm:$0xff]
    %v3529 = vld [vmem:[%s3512 + $0x80] sm:$0xff]
    %v3530 = vld [vmem:[%s3512 + $0x88] sm:$0xff]
    %v3531 = vld [vmem:[%s3512 + $0x90] sm:$0xff]
    %v3532 = vld [vmem:[%s3512 + $0x98] sm:$0xff]
    %v3533 = vld [vmem:[%s3512 + $0xa0] sm:$0xff]
    %v3534 = vld [vmem:[%s3512 + $0xa8] sm:$0xff]
    %v3535 = vld [vmem:[%s3512 + $0xb0] sm:$0xff]
    %v3536 = vld [vmem:[%s3512 + $0xb8] sm:$0xff]
    %v3537 = vld [vmem:[%s3512 + $0xc0] sm:$0xff]
    %v3538 = vld [vmem:[%s3512 + $0xc8] sm:$0xff]
    %v3539 = vld [vmem:[%s3512 + $0xd0] sm:$0xff]
    %v3540 = vld [vmem:[%s3512 + $0xd8] sm:$0xff]
    %v3541 = vld [vmem:[%s3512 + $0xe0] sm:$0xff]
    %v3542 = vld [vmem:[%s3512 + $0xe8] sm:$0xff]
    %v3543 = vld [vmem:[%s3512 + $0xf0] sm:$0xff]
    %v3544 = vld [vmem:[%s3512 + $0xf8] sm:$0xff]
    %v3545 = vld [vmem:[%s3512 + $0x100] sm:$0xff]
    %v3546 = vld [vmem:[%s3512 + $0x108] sm:$0xff]
    %v3547 = vld [vmem:[%s3512 + $0x110] sm:$0xff]
    %v3548 = vld [vmem:[%s3512 + $0x118] sm:$0xff]
    %v3549 = vld [vmem:[%s3512 + $0x120] sm:$0xff]
    %v3550 = vld [vmem:[%s3512 + $0x128] sm:$0xff]
    %v3551 = vld [vmem:[%s3512 + $0x130] sm:$0xff]
    %v3552 = vld [vmem:[%s3512 + $0x138] sm:$0xff]
    %v3553 = vld [vmem:[%s3512 + $0x140] sm:$0xff]
    %v3554 = vld [vmem:[%s3512 + $0x148] sm:$0xff]
    %v3555 = vld [vmem:[%s3512 + $0x150] sm:$0xff]
    %v3556 = vld [vmem:[%s3512 + $0x158] sm:$0xff]
    %v3557 = vld [vmem:[%s3512 + $0x160] sm:$0xff]
    %v3558 = vld [vmem:[%s3512 + $0x168] sm:$0xff]
    %v3559 = vld [vmem:[%s3512 + $0x170] sm:$0xff]
    %v3560 = vld [vmem:[%s3512 + $0x178] sm:$0xff]
    %3561 = vmatprep.subr.mxu0 0.0
    %3562 = vmatpush1.msra.mxu0 %v3513
    %3563 = vmatprep.subr.mxu0 0.0
    %3564 = vmatpush1.msra.mxu0 %v3514
    %3565 = vmatprep.subr.mxu0 0.0
    %3566 = vmatpush1.msra.mxu0 %v3515
    %3567 = vmatprep.subr.mxu0 0.0
    %3568 = vmatpush1.msra.mxu0 %v3516
    %3569 = vmatprep.subr.mxu0 0.0
    %3570 = vmatpush1.msra.mxu0 %v3517
    %3571 = vmatprep.subr.mxu0 0.0
    %3572 = vmatpush1.msra.mxu0 %v3518
    %3573 = vmatprep.subr.mxu0 0.0
    %3574 = vmatpush1.msra.mxu0 %v3519
    %3575 = vmatprep.subr.mxu0 0.0
    %3576 = vmatpush1.msra.mxu0 %v3520
    %3577 = vmatprep.subr.mxu0 0.0
    %3578 = vmatpush1.msra.mxu0 %v3521
    %3579 = vmatprep.subr.mxu0 0.0
    %3580 = vmatpush1.msra.mxu0 %v3522
    %3581 = vmatprep.subr.mxu0 0.0
    %3582 = vmatpush1.msra.mxu0 %v3523
    %3583 = vmatprep.subr.mxu0 0.0
    %3584 = vmatpush1.msra.mxu0 %v3524
    %3585 = vmatprep.subr.mxu0 0.0
    %3586 = vmatpush1.msra.mxu0 %v3525
    %3587 = vmatprep.subr.mxu0 0.0
    %3588 = vmatpush1.msra.mxu0 %v3526
    %3589 = vmatprep.subr.mxu0 0.0
    %3590 = vmatpush1.msra.mxu0 %v3527
    %3591 = vmatprep.subr.mxu0 0.0
    %3592 = vmatpush1.msra.mxu0 %v3528
    %3593 = vmatprep.subr.mxu0 0.0
    %3594 = vmatpush1.msra.mxu0 %v3529
    %3595 = vmatprep.subr.mxu0 0.0
    %3596 = vmatpush1.msra.mxu0 %v3530
    %3597 = vmatprep.subr.mxu0 0.0
    %3598 = vmatpush1.msra.mxu0 %v3531
    %3599 = vmatprep.subr.mxu0 0.0
    %3600 = vmatpush1.msra.mxu0 %v3532
    %3601 = vmatprep.subr.mxu0 0.0
    %3602 = vmatpush1.msra.mxu0 %v3533
    %3603 = vmatprep.subr.mxu0 0.0
    %3604 = vmatpush1.msra.mxu0 %v3534
    %3605 = vmatprep.subr.mxu0 0.0
    %3606 = vmatpush1.msra.mxu0 %v3535
    %3607 = vmatprep.subr.mxu0 0.0
    %3608 = vmatpush1.msra.mxu0 %v3536
    %3609 = vmatprep.subr.mxu0 0.0
    %3610 = vmatpush1.msra.mxu0 %v3537
    %3611 = vmatprep.subr.mxu0 0.0
    %3612 = vmatpush1.msra.mxu0 %v3538
    %3613 = vmatprep.subr.mxu0 0.0
    %3614 = vmatpush1.msra.mxu0 %v3539
    %3615 = vmatprep.subr.mxu0 0.0
    %3616 = vmatpush1.msra.mxu0 %v3540
    %3617 = vmatprep.subr.mxu0 0.0
    %3618 = vmatpush1.msra.mxu0 %v3541
    %3619 = vmatprep.subr.mxu0 0.0
    %3620 = vmatpush1.msra.mxu0 %v3542
    %3621 = vmatprep.subr.mxu0 0.0
    %3622 = vmatpush1.msra.mxu0 %v3543
    %3623 = vmatprep.subr.mxu0 0.0
    %3624 = vmatpush1.msra.mxu0 %v3544
    %3625 = vmatprep.mubr.f32.mxu0 %v3510
    %3626 = vmatmul.mubr.f32.gmra.mrb[0].mxu0 %v3509
    %v3627 = vpop.f32.mrb[0].mxu0
    %v3628 = vadd.f32 0.0, %v3627
    %v3629 = vpop.f32.mrb[0].mxu0
    %3630 = vdwg.mxu0
    %3631 = vmatprep.subr.mxu0 0.0
    %3632 = vmatpush1.msra.mxu0 %v3545
    %3633 = vmatprep.subr.mxu0 0.0
    %3634 = vmatpush1.msra.mxu0 %v3546
    %3635 = vmatprep.subr.mxu0 0.0
    %3636 = vmatpush1.msra.mxu0 %v3547
    %3637 = vmatprep.subr.mxu0 0.0
    %3638 = vmatpush1.msra.mxu0 %v3548
    %3639 = vmatprep.subr.mxu0 0.0
    %3640 = vmatpush1.msra.mxu0 %v3549
    %3641 = vmatprep.subr.mxu0 0.0
    %3642 = vmatpush1.msra.mxu0 %v3550
    %3643 = vmatprep.subr.mxu0 0.0
    %3644 = vmatpush1.msra.mxu0 %v3551
    %3645 = vmatprep.subr.mxu0 0.0
    %3646 = vmatpush1.msra.mxu0 %v3552
    %3647 = vmatprep.subr.mxu0 0.0
    %3648 = vmatpush1.msra.mxu0 %v3553
    %3649 = vmatprep.subr.mxu0 0.0
    %3650 = vmatpush1.msra.mxu0 %v3554
    %3651 = vmatprep.subr.mxu0 0.0
    %3652 = vmatpush1.msra.mxu0 %v3555
    %3653 = vmatprep.subr.mxu0 0.0
    %3654 = vmatpush1.msra.mxu0 %v3556
    %3655 = vmatprep.subr.mxu0 0.0
    %3656 = vmatpush1.msra.mxu0 %v3557
    %3657 = vmatprep.subr.mxu0 0.0
    %3658 = vmatpush1.msra.mxu0 %v3558
    %3659 = vmatprep.subr.mxu0 0.0
    %3660 = vmatpush1.msra.mxu0 %v3559
    %3661 = vmatprep.subr.mxu0 0.0
    %3662 = vmatpush1.msra.mxu0 %v3560
    %3663 = vmatprep.subr.mxu0 0.0
    %3664 = vmatpush1.msra.mxu0 0.0
    %3665 = vmatprep.subr.mxu0 0.0
    %3666 = vmatpush1.msra.mxu0 0.0
    %3667 = vmatprep.subr.mxu0 0.0
    %3668 = vmatpush1.msra.mxu0 0.0
    %3669 = vmatprep.subr.mxu0 0.0
    %3670 = vmatpush1.msra.mxu0 0.0
    %3671 = vmatprep.subr.mxu0 0.0
    %3672 = vmatpush1.msra.mxu0 0.0
    %3673 = vmatprep.subr.mxu0 0.0
    %3674 = vmatpush1.msra.mxu0 0.0
    %3675 = vmatprep.subr.mxu0 0.0
    %3676 = vmatpush1.msra.mxu0 0.0
    %3677 = vmatprep.subr.mxu0 0.0
    %3678 = vmatpush1.msra.mxu0 0.0
    %3679 = vmatprep.subr.mxu0 0.0
    %3680 = vmatpush1.msra.mxu0 0.0
    %3681 = vmatprep.subr.mxu0 0.0
    %3682 = vmatpush1.msra.mxu0 0.0
    %3683 = vmatprep.subr.mxu0 0.0
    %3684 = vmatpush1.msra.mxu0 0.0
    %3685 = vmatprep.subr.mxu0 0.0
    %3686 = vmatpush1.msra.mxu0 0.0
    %3687 = vmatprep.subr.mxu0 0.0
    %3688 = vmatpush1.msra.mxu0 0.0
    %3689 = vmatprep.subr.mxu0 0.0
    %3690 = vmatpush1.msra.mxu0 0.0
    %3691 = vmatprep.subr.mxu0 0.0
    %3692 = vmatpush1.msra.mxu0 0.0
    %3693 = vmatprep.subr.mxu0 0.0
    %3694 = vmatpush1.msra.mxu0 0.0
    %3695 = vmatprep.mubr.f32.mxu0 0.0
    %3696 = vmatmul.mubr.f32.gmra.mrb[0].mxu0 %v3511
    %v3697 = vpop.f32.mrb[0].mxu0
    %v3698 = vadd.f32 %v3628, %v3697
    %v3699 = vpop.f32.mrb[0].mxu0
    %3700 = vdwg.mxu0
    %v3701 = vadd.f32 %v3205, %v3698
    %v3702 = vld [vmem:[%s0 + $0xe] sm:$0x3]
    %v3703 = vld [vmem:[%s0 + $0x1e] sm:$0x3]
    %v3704 = vld [vmem:[%s0 + $0x2e] sm:$0x3]
    %3705 = vmatprep.subr.mxu0 %v73
    %3706 = vmatpush1.msra.mxu0 %v72
    %3707 = vmatprep.subr.mxu0 %v76
    %3708 = vmatpush1.msra.mxu0 %v75
    %3709 = vmatprep.subr.mxu0 %v79
    %3710 = vmatpush1.msra.mxu0 %v78
    %3711 = vmatprep.subr.mxu0 %v82
    %3712 = vmatpush1.msra.mxu0 %v81
    %3713 = vmatprep.subr.mxu0 %v85
    %3714 = vmatpush1.msra.mxu0 %v84
    %3715 = vmatprep.subr.mxu0 %v88
    %3716 = vmatpush1.msra.mxu0 %v87
    %3717 = vmatprep.subr.mxu0 %v91
    %3718 = vmatpush1.msra.mxu0 %v90
    %3719 = vmatprep.subr.mxu0 %v94
    %3720 = vmatpush1.msra.mxu0 %v93
    %3721 = vmatprep.subr.mxu0 %v97
    %3722 = vmatpush1.msra.mxu0 %v96
    %3723 = vmatprep.subr.mxu0 %v100
    %3724 = vmatpush1.msra.mxu0 %v99
    %3725 = vmatprep.subr.mxu0 %v103
    %3726 = vmatpush1.msra.mxu0 %v102
    %3727 = vmatprep.subr.mxu0 %v106
    %3728 = vmatpush1.msra.mxu0 %v105
    %3729 = vmatprep.subr.mxu0 %v109
    %3730 = vmatpush1.msra.mxu0 %v108
    %3731 = vmatprep.subr.mxu0 %v112
    %3732 = vmatpush1.msra.mxu0 %v111
    %3733 = vmatprep.subr.mxu0 %v115
    %3734 = vmatpush1.msra.mxu0 %v114
    %3735 = vmatprep.subr.mxu0 %v118
    %3736 = vmatpush1.msra.mxu0 %v117
    %3737 = vmatprep.subr.mxu0 %v121
    %3738 = vmatpush1.msra.mxu0 %v120
    %3739 = vmatprep.subr.mxu0 %v124
    %3740 = vmatpush1.msra.mxu0 %v123
    %3741 = vmatprep.subr.mxu0 %v127
    %3742 = vmatpush1.msra.mxu0 %v126
    %3743 = vmatprep.subr.mxu0 %v130
    %3744 = vmatpush1.msra.mxu0 %v129
    %3745 = vmatprep.subr.mxu0 %v133
    %3746 = vmatpush1.msra.mxu0 %v132
    %3747 = vmatprep.subr.mxu0 %v136
    %3748 = vmatpush1.msra.mxu0 %v135
    %3749 = vmatprep.subr.mxu0 %v139
    %3750 = vmatpush1.msra.mxu0 %v138
    %3751 = vmatprep.subr.mxu0 %v142
    %3752 = vmatpush1.msra.mxu0 %v141
    %3753 = vmatprep.subr.mxu0 %v145
    %3754 = vmatpush1.msra.mxu0 %v144
    %3755 = vmatprep.subr.mxu0 %v148
    %3756 = vmatpush1.msra.mxu0 %v147
    %3757 = vmatprep.subr.mxu0 %v151
    %3758 = vmatpush1.msra.mxu0 %v150
    %3759 = vmatprep.subr.mxu0 %v154
    %3760 = vmatpush1.msra.mxu0 %v153
    %3761 = vmatprep.subr.mxu0 %v157
    %3762 = vmatpush1.msra.mxu0 %v156
    %3763 = vmatprep.subr.mxu0 %v160
    %3764 = vmatpush1.msra.mxu0 %v159
    %3765 = vmatprep.subr.mxu0 %v163
    %3766 = vmatpush1.msra.mxu0 %v162
    %3767 = vmatprep.subr.mxu0 %v166
    %3768 = vmatpush1.msra.mxu0 %v165
    %3769 = vmatprep.mubr.f32.mxu0 %v3703
    %3770 = vmatmul.mubr.f32.gmra.mrb[0].mxu0 %v3702
    %v3771 = vpop.f32.mrb[0].mxu0
    %v3772 = vadd.f32 %v224, %v3771
    %v3773 = vpop.f32.mrb[0].mxu0
    %v3774 = vadd.f32 %v228, %v3773
    %3775 = vdwg.mxu0
    %3776 = vmatprep.subr.mxu0 %v169
    %3777 = vmatpush1.msra.mxu0 %v168
    %3778 = vmatprep.subr.mxu0 %v172
    %3779 = vmatpush1.msra.mxu0 %v171
    %3780 = vmatprep.subr.mxu0 %v175
    %3781 = vmatpush1.msra.mxu0 %v174
    %3782 = vmatprep.subr.mxu0 %v178
    %3783 = vmatpush1.msra.mxu0 %v177
    %3784 = vmatprep.subr.mxu0 %v181
    %3785 = vmatpush1.msra.mxu0 %v180
    %3786 = vmatprep.subr.mxu0 %v184
    %3787 = vmatpush1.msra.mxu0 %v183
    %3788 = vmatprep.subr.mxu0 %v187
    %3789 = vmatpush1.msra.mxu0 %v186
    %3790 = vmatprep.subr.mxu0 %v190
    %3791 = vmatpush1.msra.mxu0 %v189
    %3792 = vmatprep.subr.mxu0 %v193
    %3793 = vmatpush1.msra.mxu0 %v192
    %3794 = vmatprep.subr.mxu0 %v196
    %3795 = vmatpush1.msra.mxu0 %v195
    %3796 = vmatprep.subr.mxu0 %v199
    %3797 = vmatpush1.msra.mxu0 %v198
    %3798 = vmatprep.subr.mxu0 %v202
    %3799 = vmatpush1.msra.mxu0 %v201
    %3800 = vmatprep.subr.mxu0 %v205
    %3801 = vmatpush1.msra.mxu0 %v204
    %3802 = vmatprep.subr.mxu0 %v208
    %3803 = vmatpush1.msra.mxu0 %v207
    %3804 = vmatprep.subr.mxu0 %v211
    %3805 = vmatpush1.msra.mxu0 %v210
    %3806 = vmatprep.subr.mxu0 %v214
    %3807 = vmatpush1.msra.mxu0 %v213
    %3808 = vmatprep.subr.mxu0 0.0
    %3809 = vmatpush1.msra.mxu0 0.0
    %3810 = vmatprep.subr.mxu0 0.0
    %3811 = vmatpush1.msra.mxu0 0.0
    %3812 = vmatprep.subr.mxu0 0.0
    %3813 = vmatpush1.msra.mxu0 0.0
    %3814 = vmatprep.subr.mxu0 0.0
    %3815 = vmatpush1.msra.mxu0 0.0
    %3816 = vmatprep.subr.mxu0 0.0
    %3817 = vmatpush1.msra.mxu0 0.0
    %3818 = vmatprep.subr.mxu0 0.0
    %3819 = vmatpush1.msra.mxu0 0.0
    %3820 = vmatprep.subr.mxu0 0.0
    %3821 = vmatpush1.msra.mxu0 0.0
    %3822 = vmatprep.subr.mxu0 0.0
    %3823 = vmatpush1.msra.mxu0 0.0
    %3824 = vmatprep.subr.mxu0 0.0
    %3825 = vmatpush1.msra.mxu0 0.0
    %3826 = vmatprep.subr.mxu0 0.0
    %3827 = vmatpush1.msra.mxu0 0.0
    %3828 = vmatprep.subr.mxu0 0.0
    %3829 = vmatpush1.msra.mxu0 0.0
    %3830 = vmatprep.subr.mxu0 0.0
    %3831 = vmatpush1.msra.mxu0 0.0
    %3832 = vmatprep.subr.mxu0 0.0
    %3833 = vmatpush1.msra.mxu0 0.0
    %3834 = vmatprep.subr.mxu0 0.0
    %3835 = vmatpush1.msra.mxu0 0.0
    %3836 = vmatprep.subr.mxu0 0.0
    %3837 = vmatpush1.msra.mxu0 0.0
    %3838 = vmatprep.subr.mxu0 0.0
    %3839 = vmatpush1.msra.mxu0 0.0
    %3840 = vmatprep.mubr.f32.mxu0 0.0
    %3841 = vmatmul.mubr.f32.gmra.mrb[0].mxu0 %v3704
    %v3842 = vpop.f32.mrb[0].mxu0
    %v3843 = vadd.f32 %v3772, %v3842
    %v3844 = vpop.f32.mrb[0].mxu0
    %v3845 = vadd.f32 %v3774, %v3844
    %3846 = vdwg.mxu0
    %3847 = vmatprep.subr.mxu0 0.0
    %3848 = vmatpush1.msra.mxu0 %v74
    %3849 = vmatprep.subr.mxu0 0.0
    %3850 = vmatpush1.msra.mxu0 %v77
    %3851 = vmatprep.subr.mxu0 0.0
    %3852 = vmatpush1.msra.mxu0 %v80
    %3853 = vmatprep.subr.mxu0 0.0
    %3854 = vmatpush1.msra.mxu0 %v83
    %3855 = vmatprep.subr.mxu0 0.0
    %3856 = vmatpush1.msra.mxu0 %v86
    %3857 = vmatprep.subr.mxu0 0.0
    %3858 = vmatpush1.msra.mxu0 %v89
    %3859 = vmatprep.subr.mxu0 0.0
    %3860 = vmatpush1.msra.mxu0 %v92
    %3861 = vmatprep.subr.mxu0 0.0
    %3862 = vmatpush1.msra.mxu0 %v95
    %3863 = vmatprep.subr.mxu0 0.0
    %3864 = vmatpush1.msra.mxu0 %v98
    %3865 = vmatprep.subr.mxu0 0.0
    %3866 = vmatpush1.msra.mxu0 %v101
    %3867 = vmatprep.subr.mxu0 0.0
    %3868 = vmatpush1.msra.mxu0 %v104
    %3869 = vmatprep.subr.mxu0 0.0
    %3870 = vmatpush1.msra.mxu0 %v107
    %3871 = vmatprep.subr.mxu0 0.0
    %3872 = vmatpush1.msra.mxu0 %v110
    %3873 = vmatprep.subr.mxu0 0.0
    %3874 = vmatpush1.msra.mxu0 %v113
    %3875 = vmatprep.subr.mxu0 0.0
    %3876 = vmatpush1.msra.mxu0 %v116
    %3877 = vmatprep.subr.mxu0 0.0
    %3878 = vmatpush1.msra.mxu0 %v119
    %3879 = vmatprep.subr.mxu0 0.0
    %3880 = vmatpush1.msra.mxu0 %v122
    %3881 = vmatprep.subr.mxu0 0.0
    %3882 = vmatpush1.msra.mxu0 %v125
    %3883 = vmatprep.subr.mxu0 0.0
    %3884 = vmatpush1.msra.mxu0 %v128
    %3885 = vmatprep.subr.mxu0 0.0
    %3886 = vmatpush1.msra.mxu0 %v131
    %3887 = vmatprep.subr.mxu0 0.0
    %3888 = vmatpush1.msra.mxu0 %v134
    %3889 = vmatprep.subr.mxu0 0.0
    %3890 = vmatpush1.msra.mxu0 %v137
    %3891 = vmatprep.subr.mxu0 0.0
    %3892 = vmatpush1.msra.mxu0 %v140
    %3893 = vmatprep.subr.mxu0 0.0
    %3894 = vmatpush1.msra.mxu0 %v143
    %3895 = vmatprep.subr.mxu0 0.0
    %3896 = vmatpush1.msra.mxu0 %v146
    %3897 = vmatprep.subr.mxu0 0.0
    %3898 = vmatpush1.msra.mxu0 %v149
    %3899 = vmatprep.subr.mxu0 0.0
    %3900 = vmatpush1.msra.mxu0 %v152
    %3901 = vmatprep.subr.mxu0 0.0
    %3902 = vmatpush1.msra.mxu0 %v155
    %3903 = vmatprep.subr.mxu0 0.0
    %3904 = vmatpush1.msra.mxu0 %v158
    %3905 = vmatprep.subr.mxu0 0.0
    %3906 = vmatpush1.msra.mxu0 %v161
    %3907 = vmatprep.subr.mxu0 0.0
    %3908 = vmatpush1.msra.mxu0 %v164
    %3909 = vmatprep.subr.mxu0 0.0
    %3910 = vmatpush1.msra.mxu0 %v167
    %3911 = vmatprep.mubr.f32.mxu0 %v3703
    %3912 = vmatmul.mubr.f32.gmra.mrb[0].mxu0 %v3702
    %v3913 = vpop.f32.mrb[0].mxu0
    %v3914 = vadd.f32 %v232, %v3913
    %v3915 = vpop.f32.mrb[0].mxu0
    %3916 = vdwg.mxu0
    %3917 = vmatprep.subr.mxu0 0.0
    %3918 = vmatpush1.msra.mxu0 %v170
    %3919 = vmatprep.subr.mxu0 0.0
    %3920 = vmatpush1.msra.mxu0 %v173
    %3921 = vmatprep.subr.mxu0 0.0
    %3922 = vmatpush1.msra.mxu0 %v176
    %3923 = vmatprep.subr.mxu0 0.0
    %3924 = vmatpush1.msra.mxu0 %v179
    %3925 = vmatprep.subr.mxu0 0.0
    %3926 = vmatpush1.msra.mxu0 %v182
    %3927 = vmatprep.subr.mxu0 0.0
    %3928 = vmatpush1.msra.mxu0 %v185
    %3929 = vmatprep.subr.mxu0 0.0
    %3930 = vmatpush1.msra.mxu0 %v188
    %3931 = vmatprep.subr.mxu0 0.0
    %3932 = vmatpush1.msra.mxu0 %v191
    %3933 = vmatprep.subr.mxu0 0.0
    %3934 = vmatpush1.msra.mxu0 %v194
    %3935 = vmatprep.subr.mxu0 0.0
    %3936 = vmatpush1.msra.mxu0 %v197
    %3937 = vmatprep.subr.mxu0 0.0
    %3938 = vmatpush1.msra.mxu0 %v200
    %3939 = vmatprep.subr.mxu0 0.0
    %3940 = vmatpush1.msra.mxu0 %v203
    %3941 = vmatprep.subr.mxu0 0.0
    %3942 = vmatpush1.msra.mxu0 %v206
    %3943 = vmatprep.subr.mxu0 0.0
    %3944 = vmatpush1.msra.mxu0 %v209
    %3945 = vmatprep.subr.mxu0 0.0
    %3946 = vmatpush1.msra.mxu0 %v212
    %3947 = vmatprep.subr.mxu0 0.0
    %3948 = vmatpush1.msra.mxu0 %v215
    %3949 = vmatprep.subr.mxu0 0.0
    %3950 = vmatpush1.msra.mxu0 0.0
    %3951 = vmatprep.subr.mxu0 0.0
    %3952 = vmatpush1.msra.mxu0 0.0
    %3953 = vmatprep.subr.mxu0 0.0
    %3954 = vmatpush1.msra.mxu0 0.0
    %3955 = vmatprep.subr.mxu0 0.0
    %3956 = vmatpush1.msra.mxu0 0.0
    %3957 = vmatprep.subr.mxu0 0.0
    %3958 = vmatpush1.msra.mxu0 0.0
    %3959 = vmatprep.subr.mxu0 0.0
    %3960 = vmatpush1.msra.mxu0 0.0
    %3961 = vmatprep.subr.mxu0 0.0
    %3962 = vmatpush1.msra.mxu0 0.0
    %3963 = vmatprep.subr.mxu0 0.0
    %3964 = vmatpush1.msra.mxu0 0.0
    %3965 = vmatprep.subr.mxu0 0.0
    %3966 = vmatpush1.msra.mxu0 0.0
    %3967 = vmatprep.subr.mxu0 0.0
    %3968 = vmatpush1.msra.mxu0 0.0
    %3969 = vmatprep.subr.mxu0 0.0
    %3970 = vmatpush1.msra.mxu0 0.0
    %3971 = vmatprep.subr.mxu0 0.0
    %3972 = vmatpush1.msra.mxu0 0.0
    %3973 = vmatprep.subr.mxu0 0.0
    %3974 = vmatpush1.msra.mxu0 0.0
    %3975 = vmatprep.subr.mxu0 0.0
    %3976 = vmatpush1.msra.mxu0 0.0
    %3977 = vmatprep.subr.mxu0 0.0
    %3978 = vmatpush1.msra.mxu0 0.0
    %3979 = vmatprep.subr.mxu0 0.0
    %3980 = vmatpush1.msra.mxu0 0.0
    %3981 = vmatprep.mubr.f32.mxu0 0.0
    %3982 = vmatmul.mubr.f32.gmra.mrb[0].mxu0 %v3704
    %v3983 = vpop.f32.mrb[0].mxu0
    %v3984 = vadd.f32 %v3914, %v3983
    %v3985 = vpop.f32.mrb[0].mxu0
    %3986 = vdwg.mxu0
    %v3987 = vsub.f32 0.0, %v3843
    %v3988 = vsub.f32 0.0, %v3845
    %v3989 = vsub.f32 0.0, %v3984
    %v3990 = vmul.f32 %v3987, 1.442695
    %v3991 = vpow.pop %v3990
    %v3992 = vmul.f32 %v3988, 1.442695
    %v3993 = vpow.pop %v3992
    %v3994 = vmul.f32 %v3989, 1.442695
    %v3995 = vpow.pop %v3994
    %v3996 = vadd.f32 %v3991, 1.0
    %v3997 = vadd.f32 %v3993, 1.0
    %v3998 = vadd.f32 %v3995, 1.0
    %v3999 = vrcp.pop %v3996
    %v4000 = vmul.f32 1.0, %v3999
    %v4001 = vrcp.pop %v3997
    %v4002 = vmul.f32 1.0, %v4001
    %v4003 = vrcp.pop %v3998
    %v4004 = vmul.f32 1.0, %v4003
    %v4005 = vmul.f32 %v3843, %v4000
    %v4006 = vmul.f32 %v3845, %v4002
    %v4007 = vmul.f32 %v3984, %v4004
    %s4008 = scalar_lea.vmem [#allocation7], 2688
    %v4009 = vld [vmem:[%s4008] sm:$0xff]
    %v4010 = vld [vmem:[%s4008 + $0x8] sm:$0xff]
    %v4011 = vld [vmem:[%s4008 + $0x10] sm:$0xff]
    %v4012 = vld [vmem:[%s4008 + $0x18] sm:$0xff]
    %v4013 = vld [vmem:[%s4008 + $0x20] sm:$0xff]
    %v4014 = vld [vmem:[%s4008 + $0x28] sm:$0xff]
    %v4015 = vld [vmem:[%s4008 + $0x30] sm:$0xff]
    %v4016 = vld [vmem:[%s4008 + $0x38] sm:$0xff]
    %v4017 = vld [vmem:[%s4008 + $0x40] sm:$0xff]
    %v4018 = vld [vmem:[%s4008 + $0x48] sm:$0xff]
    %v4019 = vld [vmem:[%s4008 + $0x50] sm:$0xff]
    %v4020 = vld [vmem:[%s4008 + $0x58] sm:$0xff]
    %v4021 = vld [vmem:[%s4008 + $0x60] sm:$0xff]
    %v4022 = vld [vmem:[%s4008 + $0x68] sm:$0xff]
    %v4023 = vld [vmem:[%s4008 + $0x70] sm:$0xff]
    %v4024 = vld [vmem:[%s4008 + $0x78] sm:$0xff]
    %v4025 = vld [vmem:[%s4008 + $0x80] sm:$0xff]
    %v4026 = vld [vmem:[%s4008 + $0x88] sm:$0xff]
    %v4027 = vld [vmem:[%s4008 + $0x90] sm:$0xff]
    %v4028 = vld [vmem:[%s4008 + $0x98] sm:$0xff]
    %v4029 = vld [vmem:[%s4008 + $0xa0] sm:$0xff]
    %v4030 = vld [vmem:[%s4008 + $0xa8] sm:$0xff]
    %v4031 = vld [vmem:[%s4008 + $0xb0] sm:$0xff]
    %v4032 = vld [vmem:[%s4008 + $0xb8] sm:$0xff]
    %v4033 = vld [vmem:[%s4008 + $0xc0] sm:$0xff]
    %v4034 = vld [vmem:[%s4008 + $0xc8] sm:$0xff]
    %v4035 = vld [vmem:[%s4008 + $0xd0] sm:$0xff]
    %v4036 = vld [vmem:[%s4008 + $0xd8] sm:$0xff]
    %v4037 = vld [vmem:[%s4008 + $0xe0] sm:$0xff]
    %v4038 = vld [vmem:[%s4008 + $0xe8] sm:$0xff]
    %v4039 = vld [vmem:[%s4008 + $0xf0] sm:$0xff]
    %v4040 = vld [vmem:[%s4008 + $0xf8] sm:$0xff]
    %v4041 = vld [vmem:[%s4008 + $0x100] sm:$0xff]
    %v4042 = vld [vmem:[%s4008 + $0x108] sm:$0xff]
    %v4043 = vld [vmem:[%s4008 + $0x110] sm:$0xff]
    %v4044 = vld [vmem:[%s4008 + $0x118] sm:$0xff]
    %v4045 = vld [vmem:[%s4008 + $0x120] sm:$0xff]
    %v4046 = vld [vmem:[%s4008 + $0x128] sm:$0xff]
    %v4047 = vld [vmem:[%s4008 + $0x130] sm:$0xff]
    %v4048 = vld [vmem:[%s4008 + $0x138] sm:$0xff]
    %v4049 = vld [vmem:[%s4008 + $0x140] sm:$0xff]
    %v4050 = vld [vmem:[%s4008 + $0x148] sm:$0xff]
    %v4051 = vld [vmem:[%s4008 + $0x150] sm:$0xff]
    %v4052 = vld [vmem:[%s4008 + $0x158] sm:$0xff]
    %v4053 = vld [vmem:[%s4008 + $0x160] sm:$0xff]
    %v4054 = vld [vmem:[%s4008 + $0x168] sm:$0xff]
    %v4055 = vld [vmem:[%s4008 + $0x170] sm:$0xff]
    %v4056 = vld [vmem:[%s4008 + $0x178] sm:$0xff]
    %4057 = vmatprep.subr.mxu0 0.0
    %4058 = vmatpush1.msra.mxu0 %v4009
    %4059 = vmatprep.subr.mxu0 0.0
    %4060 = vmatpush1.msra.mxu0 %v4010
    %4061 = vmatprep.subr.mxu0 0.0
    %4062 = vmatpush1.msra.mxu0 %v4011
    %4063 = vmatprep.subr.mxu0 0.0
    %4064 = vmatpush1.msra.mxu0 %v4012
    %4065 = vmatprep.subr.mxu0 0.0
    %4066 = vmatpush1.msra.mxu0 %v4013
    %4067 = vmatprep.subr.mxu0 0.0
    %4068 = vmatpush1.msra.mxu0 %v4014
    %4069 = vmatprep.subr.mxu0 0.0
    %4070 = vmatpush1.msra.mxu0 %v4015
    %4071 = vmatprep.subr.mxu0 0.0
    %4072 = vmatpush1.msra.mxu0 %v4016
    %4073 = vmatprep.subr.mxu0 0.0
    %4074 = vmatpush1.msra.mxu0 %v4017
    %4075 = vmatprep.subr.mxu0 0.0
    %4076 = vmatpush1.msra.mxu0 %v4018
    %4077 = vmatprep.subr.mxu0 0.0
    %4078 = vmatpush1.msra.mxu0 %v4019
    %4079 = vmatprep.subr.mxu0 0.0
    %4080 = vmatpush1.msra.mxu0 %v4020
    %4081 = vmatprep.subr.mxu0 0.0
    %4082 = vmatpush1.msra.mxu0 %v4021
    %4083 = vmatprep.subr.mxu0 0.0
    %4084 = vmatpush1.msra.mxu0 %v4022
    %4085 = vmatprep.subr.mxu0 0.0
    %4086 = vmatpush1.msra.mxu0 %v4023
    %4087 = vmatprep.subr.mxu0 0.0
    %4088 = vmatpush1.msra.mxu0 %v4024
    %4089 = vmatprep.subr.mxu0 0.0
    %4090 = vmatpush1.msra.mxu0 %v4025
    %4091 = vmatprep.subr.mxu0 0.0
    %4092 = vmatpush1.msra.mxu0 %v4026
    %4093 = vmatprep.subr.mxu0 0.0
    %4094 = vmatpush1.msra.mxu0 %v4027
    %4095 = vmatprep.subr.mxu0 0.0
    %4096 = vmatpush1.msra.mxu0 %v4028
    %4097 = vmatprep.subr.mxu0 0.0
    %4098 = vmatpush1.msra.mxu0 %v4029
    %4099 = vmatprep.subr.mxu0 0.0
    %4100 = vmatpush1.msra.mxu0 %v4030
    %4101 = vmatprep.subr.mxu0 0.0
    %4102 = vmatpush1.msra.mxu0 %v4031
    %4103 = vmatprep.subr.mxu0 0.0
    %4104 = vmatpush1.msra.mxu0 %v4032
    %4105 = vmatprep.subr.mxu0 0.0
    %4106 = vmatpush1.msra.mxu0 %v4033
    %4107 = vmatprep.subr.mxu0 0.0
    %4108 = vmatpush1.msra.mxu0 %v4034
    %4109 = vmatprep.subr.mxu0 0.0
    %4110 = vmatpush1.msra.mxu0 %v4035
    %4111 = vmatprep.subr.mxu0 0.0
    %4112 = vmatpush1.msra.mxu0 %v4036
    %4113 = vmatprep.subr.mxu0 0.0
    %4114 = vmatpush1.msra.mxu0 %v4037
    %4115 = vmatprep.subr.mxu0 0.0
    %4116 = vmatpush1.msra.mxu0 %v4038
    %4117 = vmatprep.subr.mxu0 0.0
    %4118 = vmatpush1.msra.mxu0 %v4039
    %4119 = vmatprep.subr.mxu0 0.0
    %4120 = vmatpush1.msra.mxu0 %v4040
    %4121 = vmatprep.mubr.f32.mxu0 %v4006
    %4122 = vmatmul.mubr.f32.gmra.mrb[0].mxu0 %v4005
    %v4123 = vpop.f32.mrb[0].mxu0
    %v4124 = vadd.f32 0.0, %v4123
    %v4125 = vpop.f32.mrb[0].mxu0
    %4126 = vdwg.mxu0
    %4127 = vmatprep.subr.mxu0 0.0
    %4128 = vmatpush1.msra.mxu0 %v4041
    %4129 = vmatprep.subr.mxu0 0.0
    %4130 = vmatpush1.msra.mxu0 %v4042
    %4131 = vmatprep.subr.mxu0 0.0
    %4132 = vmatpush1.msra.mxu0 %v4043
    %4133 = vmatprep.subr.mxu0 0.0
    %4134 = vmatpush1.msra.mxu0 %v4044
    %4135 = vmatprep.subr.mxu0 0.0
    %4136 = vmatpush1.msra.mxu0 %v4045
    %4137 = vmatprep.subr.mxu0 0.0
    %4138 = vmatpush1.msra.mxu0 %v4046
    %4139 = vmatprep.subr.mxu0 0.0
    %4140 = vmatpush1.msra.mxu0 %v4047
    %4141 = vmatprep.subr.mxu0 0.0
    %4142 = vmatpush1.msra.mxu0 %v4048
    %4143 = vmatprep.subr.mxu0 0.0
    %4144 = vmatpush1.msra.mxu0 %v4049
    %4145 = vmatprep.subr.mxu0 0.0
    %4146 = vmatpush1.msra.mxu0 %v4050
    %4147 = vmatprep.subr.mxu0 0.0
    %4148 = vmatpush1.msra.mxu0 %v4051
    %4149 = vmatprep.subr.mxu0 0.0
    %4150 = vmatpush1.msra.mxu0 %v4052
    %4151 = vmatprep.subr.mxu0 0.0
    %4152 = vmatpush1.msra.mxu0 %v4053
    %4153 = vmatprep.subr.mxu0 0.0
    %4154 = vmatpush1.msra.mxu0 %v4054
    %4155 = vmatprep.subr.mxu0 0.0
    %4156 = vmatpush1.msra.mxu0 %v4055
    %4157 = vmatprep.subr.mxu0 0.0
    %4158 = vmatpush1.msra.mxu0 %v4056
    %4159 = vmatprep.subr.mxu0 0.0
    %4160 = vmatpush1.msra.mxu0 0.0
    %4161 = vmatprep.subr.mxu0 0.0
    %4162 = vmatpush1.msra.mxu0 0.0
    %4163 = vmatprep.subr.mxu0 0.0
    %4164 = vmatpush1.msra.mxu0 0.0
    %4165 = vmatprep.subr.mxu0 0.0
    %4166 = vmatpush1.msra.mxu0 0.0
    %4167 = vmatprep.subr.mxu0 0.0
    %4168 = vmatpush1.msra.mxu0 0.0
    %4169 = vmatprep.subr.mxu0 0.0
    %4170 = vmatpush1.msra.mxu0 0.0
    %4171 = vmatprep.subr.mxu0 0.0
    %4172 = vmatpush1.msra.mxu0 0.0
    %4173 = vmatprep.subr.mxu0 0.0
    %4174 = vmatpush1.msra.mxu0 0.0
    %4175 = vmatprep.subr.mxu0 0.0
    %4176 = vmatpush1.msra.mxu0 0.0
    %4177 = vmatprep.subr.mxu0 0.0
    %4178 = vmatpush1.msra.mxu0 0.0
    %4179 = vmatprep.subr.mxu0 0.0
    %4180 = vmatpush1.msra.mxu0 0.0
    %4181 = vmatprep.subr.mxu0 0.0
    %4182 = vmatpush1.msra.mxu0 0.0
    %4183 = vmatprep.subr.mxu0 0.0
    %4184 = vmatpush1.msra.mxu0 0.0
    %4185 = vmatprep.subr.mxu0 0.0
    %4186 = vmatpush1.msra.mxu0 0.0
    %4187 = vmatprep.subr.mxu0 0.0
    %4188 = vmatpush1.msra.mxu0 0.0
    %4189 = vmatprep.subr.mxu0 0.0
    %4190 = vmatpush1.msra.mxu0 0.0
    %4191 = vmatprep.mubr.f32.mxu0 0.0
    %4192 = vmatmul.mubr.f32.gmra.mrb[0].mxu0 %v4007
    %v4193 = vpop.f32.mrb[0].mxu0
    %v4194 = vadd.f32 %v4124, %v4193
    %v4195 = vpop.f32.mrb[0].mxu0
    %4196 = vdwg.mxu0
    %v4197 = vadd.f32 %v3701, %v4194
    %v4198 = vld [vmem:[#allocation8] sm:$0x1]
    %v4200 = vlaneseq
    %v4201 = vshrl.u32 %v4200, 7
    %v4202 = vsub.s32 0, %v4201
    %v4203 = vrot.slane %v4198, %v4202
    %v4205 = vadd.f32 %v4197, %v4203
    %4206 = vst [vmem:[#allocation10] sm:$0x3] %v4205
    // Predicated region
    $region38: #{lda_simple_forward.1} parent=1 // pred_check
      _
    $region39: #{lda_simple_forward.1} parent=1 // pred_check_branch
      %4208 = sbr.rel (0) target = $region41
    $region40: #{lda_simple_forward.1} parent=1 // pred_region
      %s4210 = ssub.s32 32, 32
      %4211 = vsyncadd [#allocation4], %s4210
      %s4213 = sshll.u32 [#allocation10], 4
      %s4214 = int_to_ptr.vmem [resolvable:$true] %s4213
      %4216 = dma.vmem_to_hbm [thread:$0]  %s4214, 32, %s5, [#allocation4]
    $region41: #{lda_simple_forward.1} parent=1 // pred_fallthru
      _
    // Predicated region
    $region42: #{lda_simple_forward.1} parent=1 // pred_check
      _
    $region43: #{lda_simple_forward.1} parent=1 // pred_check_branch
      %4218 = sbr.rel (0) target = $region45
    $region44: #{lda_simple_forward.1} parent=1 // pred_region
      %4219 = dma.done [#allocation4], 32
    $region45: #{lda_simple_forward.1} parent=1 // pred_fallthru
      _
    %4220 = vsyncpa [#allocation3], 1
    %4221 = vsyncpa [#allocation6], 1
    %4222 = vsyncpa [#allocation9], 1
    %4223 = vsyncpa [#allocation4], 1

</llo_original>
